<compile_context>
chip_gen: v7x
topology: tpu7x:2x2x1
jax: 0.10.0
libtpu: 0.0.40
codegen_flags: <defaults>
</compile_context>

<pallas_src>
import functools

import numpy as np
import jax
import jax.numpy as jnp
from jax.experimental import pallas as pl
from jax.experimental.pallas import tpu as pltpu

K3 = 3            # conv kernel size
LANE = 128        # TPU lane width
VMEM_LIMIT = 16 * 1024 * 1024


def _round_up(x, m):
    return (x + m - 1) // m * m


# ---------------------------------------------------------------------------
# Generic fused kernel:
#   out[n] = act( sum_t  src[tap_src(t)][n, off_t : off_t + R_out, :] @ W[t] + b )
# Sources, weights and bias are whole-array VMEM blocks; grid is the batch.
# ---------------------------------------------------------------------------
def _tap_matmul_kernel(*refs, taps, n_src, act):
    src_refs = refs[:n_src]
    w_ref, b_ref, o_ref = refs[n_src:n_src + 3]
    r_out = o_ref.shape[1]

    acc = None
    for t, (si, off) in enumerate(taps):
        lhs = src_refs[si][0, pl.ds(off, r_out), :]          # (R_out, L)  bf16
        part = jnp.dot(lhs, w_ref[t], preferred_element_type=jnp.float32)
        acc = part if acc is None else acc + part

    y = acc + b_ref[...]                                      # f32 epilogue
    if act == "relu":
        y = jnp.maximum(y, 0.0)
    elif act == "sigmoid":
        # exp on the EUP + approximate reciprocal (also EUP) keeps the divide
        # off the VALU slot; clip guards against approx error > 1.0.
        y = pl.reciprocal(1.0 + jnp.exp(-y), approx=True)
        y = jnp.clip(y, 0.0, 1.0)
    o_ref[0] = y.astype(o_ref.dtype)


def tap_matmul(sources, w, b, r_out, *, taps, act, out_dtype):
    """sources: list of (N, R_src, L) bf16 arrays; w: (T, L, Npad) bf16;
    b: (1, Npad) f32.  Returns (N, r_out, Npad)."""
    n_src = len(sources)
    N = sources[0].shape[0]
    T, L, npad = w.shape
    assert npad % LANE == 0 and len(taps) == T
    for s in sources:
        assert s.shape[0] == N and s.shape[2] == L

    kernel = functools.partial(_tap_matmul_kernel, taps=tuple(taps),
                               n_src=n_src, act=act)

    in_specs = [pl.BlockSpec((1,) + tuple(s.shape[1:]), lambda n: (n, 0, 0))
                for s in sources]
    in_specs += [
        pl.BlockSpec(tuple(w.shape), lambda n: (0, 0, 0)),
        pl.BlockSpec(tuple(b.shape), lambda n: (0, 0)),
    ]

    out_bytes = N * r_out * npad * jnp.dtype(out_dtype).itemsize
    in_bytes = sum(int(np.prod(s.shape)) * s.dtype.itemsize for s in sources)
    cost = pl.CostEstimate(
        flops=int(2 * N * r_out * L * npad * T),
        transcendentals=int(N * r_out * npad) if act == "sigmoid" else 0,
        bytes_accessed=int(in_bytes + w.size * w.dtype.itemsize
                           + b.size * b.dtype.itemsize + out_bytes),
    )

    return pl.pallas_call(
        kernel,
        out_shape=jax.ShapeDtypeStruct((N, r_out, npad), out_dtype),
        grid=(N,),
        in_specs=in_specs,
        out_specs=pl.BlockSpec((1, r_out, npad), lambda n: (n, 0, 0)),
        compiler_params=pltpu.CompilerParams(
            dimension_semantics=("parallel",),
            vmem_limit_bytes=VMEM_LIMIT,
        ),
        cost_estimate=cost,
    )(*sources, w, b)


# ---------------------------------------------------------------------------
# Init-time weight packing (block-Toeplitz along W, lane padded, bf16)
# ---------------------------------------------------------------------------
def _enc_conv_toeplitz(wt, bt, W, Cin, Cout, Wo, row_len):
    """Conv2d(k3, s2, p1).  wt: torch layout (Cout, Cin, 3, 3).
    Rows >= W*Cin are zero so lane-padded input rows are inert."""
    ncols = Wo * Cout
    npad = _round_up(ncols, LANE)
    T = np.zeros((K3, row_len, npad), np.float32)
    for ki in range(K3):
        for j in range(Wo):
            for kj in range(K3):
                wcol = 2 * j + kj - 1
                if 0 <= wcol < W:
                    T[ki, wcol * Cin:(wcol + 1) * Cin,
                      j * Cout:(j + 1) * Cout] = wt[:, :, ki, kj].T
    b = np.zeros((1, npad), np.float32)
    b[0, :ncols] = np.tile(bt, Wo)
    return jnp.asarray(T, jnp.bfloat16), jnp.asarray(b), npad


def _dec_convt_toeplitz(wt, bt, W, Cin, Cout):
    """ConvTranspose2d(k3, s2, p1, op1), sub-pixel form, 2 row taps (di=0,1).
    Columns are ordered (dy, 2j+dx, co) so the pixel shuffle becomes the free
    reshape (N,H,4W*Cout) -> (N,2H,2W*Cout).  wt: torch (Cin, Cout, 3, 3)."""
    row_len = W * Cin
    ncols = 4 * W * Cout
    npad = _round_up(ncols, LANE)
    G = np.zeros((2, row_len, npad), np.float32)
    for di in range(2):
        for dy in range(2):
            ky = dy + 1 - 2 * di
            if not (0 <= ky < K3):
                continue
            for j in range(W):
                for dx in range(2):
                    for dj in range(2):
                        wj = j + dj
                        kx = dx + 1 - 2 * dj
                        if wj >= W or not (0 <= kx < K3):
                            continue
                        col0 = (dy * (2 * W) + (2 * j + dx)) * Cout
                        G[di, wj * Cin:(wj + 1) * Cin,
                          col0:col0 + Cout] = wt[:, :, ky, kx]
    b = np.zeros((1, npad), np.float32)
    b[0, :ncols] = np.tile(bt, 4 * W)
    return jnp.asarray(G, jnp.bfloat16), jnp.asarray(b), npad


def _final_conv_toeplitz(wt, bt, W, Cin, Cout):
    """ConvTranspose2d(k3, s1, p1) == conv with flipped kernel, 3 row taps.
    wt: torch (Cin, Cout, 3, 3)."""
    row_len = W * Cin
    ncols = W * Cout
    npad = _round_up(ncols, LANE)
    F = np.zeros((K3, row_len, npad), np.float32)
    for ky in range(K3):
        for j in range(W):
            for kx in range(K3):
                wcol = j + kx - 1
                if 0 <= wcol < W:
                    F[ky, wcol * Cin:(wcol + 1) * Cin,
                      j * Cout:(j + 1) * Cout] = wt[:, :, K3 - 1 - ky, K3 - 1 - kx]
    b = np.zeros((1, npad), np.float32)
    b[0, :ncols] = np.tile(bt, W)
    return jnp.asarray(F, jnp.bfloat16), jnp.asarray(b), npad


def init_params(key, input_height, input_width, latent_dim, in_channels, filters):
    keys = iter(jax.random.split(key, 32))
    scale = 0.1

    def rnd(shape):
        return np.asarray(scale * jax.random.normal(next(keys), shape,
                                                    dtype=jnp.float32))

    params = {"enc_convs": [], "dec_convts": []}
    enc_meta, dec_meta = [], []

    # ---- encoder convs (torch Conv2d weight: (out, in, kh, kw)) ----
    c_in, h, w = in_channels, input_height, input_width
    row_len = input_width * in_channels            # dense NHWC rows of the raw input
    for c_out in filters:
        wt, bt = rnd((c_out, c_in, K3, K3)), rnd((c_out,))
        ho, wo = (h - 1) // 2 + 1, (w - 1) // 2 + 1
        lw, lb, npad = _enc_conv_toeplitz(wt, bt, w, c_in, c_out, wo, row_len)
        params["enc_convs"].append({"w": lw, "b": lb})
        enc_meta.append(dict(Ho=ho, Wo=wo, Cout=c_out, npad=npad))
        h, w, c_in = ho, wo, c_out
        row_len = npad                              # outputs stay lane-padded

    c_e, h_e, w_e = filters[-1], h, w
    flat = c_e * h_e * w_e
    lat_pad = _round_up(latent_dim, LANE)
    flat_pad = _round_up(flat, LANE)

    # ---- encoder Linear: rows permuted to NHWC-flat, K covers the lane-padded
    #      encoder output (zero rows for padding lanes -> no slice needed) ----
    enc_w, enc_b = rnd((latent_dim, flat)), rnd((latent_dim,))
    Wl = np.zeros((h_e, row_len, lat_pad), np.float32)
    w_hwc = enc_w.reshape(latent_dim, c_e, h_e, w_e).transpose(2, 3, 1, 0)
    Wl[:, : w_e * c_e, :latent_dim] = w_hwc.reshape(h_e, w_e * c_e, latent_dim)
    Wl = Wl.reshape(1, h_e * row_len, lat_pad)
    bl = np.zeros((1, lat_pad), np.float32)
    bl[0, :latent_dim] = enc_b
    params["enc_lin"] = {"w": jnp.asarray(Wl, jnp.bfloat16), "b": jnp.asarray(bl)}

    # ---- decoder Linear: columns permuted to NHWC-flat, K rows cover the
    #      lane-padded latent (zero rows beyond latent_dim) ----
    dec_w, dec_b = rnd((flat, latent_dim)), rnd((flat,))
    Wd = np.zeros((1, lat_pad, flat_pad), np.float32)
    d_hwc = dec_w.reshape(c_e, h_e, w_e, latent_dim).transpose(1, 2, 0, 3)
    Wd[0, :latent_dim, :flat] = d_hwc.reshape(flat, latent_dim).T
    bd = np.zeros((1, flat_pad), np.float32)
    bd[0, :flat] = dec_b.reshape(c_e, h_e, w_e).transpose(1, 2, 0).reshape(flat)
    params["dec_lin"] = {"w": jnp.asarray(Wd, jnp.bfloat16), "b": jnp.asarray(bd)}

    # ---- decoder ConvTranspose2d stride-2 layers (torch weight: (in,out,kh,kw)) ----
    c_in, hh, ww = c_e, h_e, w_e
    for c_out in reversed(filters):
        wt, bt = rnd((c_in, c_out, K3, K3)), rnd((c_out,))
        G, bg, npad2 = _dec_convt_toeplitz(wt, bt, ww, c_in, c_out)
        params["dec_convts"].append({"w": G, "b": bg})
        dec_meta.append(dict(H=hh, W=ww, Cout=c_out, ncols=4 * ww * c_out))
        hh, ww, c_in = 2 * hh, 2 * ww, c_out

    # ---- final ConvTranspose2d stride-1 + Sigmoid ----
    wt, bt = rnd((c_in, in_channels, K3, K3)), rnd((in_channels,))
    F, bf, _ = _final_conv_toeplitz(wt, bt, ww, c_in, in_channels)
    params["dec_final"] = {"w": F, "b": bf}
    final_meta = dict(H=hh, W=ww, Cout=in_channels, ncols=ww * in_channels)

    cfg = dict(filters=tuple(filters), latent_dim=latent_dim,
               in_channels=in_channels, flat=flat,
               enc_shape=(c_e, h_e, w_e),
               enc_meta=tuple(enc_meta), dec_meta=tuple(dec_meta),
               final_meta=final_meta)
    return params, cfg


# ---------------------------------------------------------------------------
# Forward pass (matches the nn.Sequential order of the PyTorch module)
# ---------------------------------------------------------------------------
def autoencoder_forward(params, x_nchw, cfg):
    N = x_nchw.shape[0]
    x = jnp.transpose(x_nchw, (0, 2, 3, 1)).astype(jnp.bfloat16)     # NCHW -> NHWC
    rows = x.reshape(N, x.shape[1], x.shape[2] * x.shape[3])         # (N, H, W*C)

    # ---- Encoder: Conv2d(k3,s2,p1) + ReLU, fused row-tap matmul kernels ----
    for layer, m in zip(params["enc_convs"], cfg["enc_meta"]):
        xh = jnp.pad(rows, ((0, 0), (1, 1), (0, 0)))                 # H halo (zeros)
        # row-parity split so all in-kernel taps are unit-stride shifted slices
        rows = tap_matmul([xh[:, 0::2, :], xh[:, 1::2, :]],
                          layer["w"], layer["b"], m["Ho"],
                          taps=((0, 0), (1, 0), (0, 1)), act="relu",
                          out_dtype=jnp.bfloat16)                    # (N, Ho, 128)

    # ---- Flatten + Linear (NHWC-flat, lane padding consumed directly) ----
    c_e, h_e, w_e = cfg["enc_shape"]
    x_lin = rows.reshape(1, N, h_e * rows.shape[2])
    z = tap_matmul([x_lin], params["enc_lin"]["w"], params["enc_lin"]["b"],
                   N, taps=((0, 0),), act="none", out_dtype=jnp.bfloat16)

    # ---- Decoder Linear + Unflatten (weights pre-permuted to NHWC order) ----
    hdec = tap_matmul([z], params["dec_lin"]["w"], params["dec_lin"]["b"],
                      N, taps=((0, 0),), act="none", out_dtype=jnp.bfloat16)
    rows = hdec[0, :, :cfg["flat"]].reshape(N, h_e, w_e * c_e)

    # ---- ConvTranspose2d(k3,s2,p1,op1) + ReLU; pixel shuffle = free reshape ----
    for layer, m in zip(params["dec_convts"], cfg["dec_meta"]):
        xb = jnp.pad(rows, ((0, 0), (0, 1), (0, 0)))                 # bottom halo
        y = tap_matmul([xb], layer["w"], layer["b"], m["H"],
                       taps=((0, 0), (0, 1)), act="relu",
                       out_dtype=jnp.bfloat16)                       # (N, H, npad)
        rows = y[:, :, :m["ncols"]].reshape(N, 2 * m["H"],
                                            2 * m["W"] * m["Cout"])

    # ---- Final ConvTranspose2d(k3,s1,p1) + Sigmoid ----
    fm = cfg["final_meta"]
    xb = jnp.pad(rows, ((0, 0), (1, 1), (0, 0)))
    y = tap_matmul([xb], params["dec_final"]["w"], params["dec_final"]["b"],
                   fm["H"], taps=((0, 0), (0, 1), (0, 2)), act="sigmoid",
                   out_dtype=jnp.float32)
    y = y[:, :, :fm["ncols"]].reshape(N, fm["H"], fm["W"], fm["Cout"])
    return jnp.transpose(y, (0, 3, 1, 2))                            # NHWC -> NCHW


if __name__ == "__main__":
    # Small config: 16x16 single-channel images, filters [4, 8, 16], latent 32
    batch, in_channels, H, W = 2, 1, 16, 16
    latent_dim = 32
    filters = [4, 8, 16]

    key = jax.random.PRNGKey(0)
    kp, kx = jax.random.split(key)
    params, config = init_params(kp, H, W, latent_dim, in_channels, filters)
    x = jax.random.normal(kx, (batch, in_channels, H, W), dtype=jnp.float32)

    # config is static Python metadata: close over it (do NOT pass through jit).
    fwd = jax.jit(lambda p, xx: autoencoder_forward(p, xx, config))
    y = jax.block_until_ready(fwd(params, x))

    assert y.shape == (batch, in_channels, H, W), y.shape
    assert bool(jnp.all(jnp.isfinite(y)))
    assert bool(jnp.all((y >= 0.0) & (y <= 1.0)))  # sigmoid output range
    print("KERNEL_OK")
</pallas_src>

<mosaic_0001>
module attributes {stable_mosaic.version = 11 : i64} {
  func.func @_tap_matmul_kernel(%arg0: i32, %arg1: memref<1x9x16xbf16, #tpu.memory_space<vmem>>, %arg2: memref<1x9x16xbf16, #tpu.memory_space<vmem>>, %arg3: memref<3x16x128xbf16, #tpu.memory_space<vmem>>, %arg4: memref<1x128xf32, #tpu.memory_space<vmem>>, %arg5: memref<1x8x128xbf16, #tpu.memory_space<vmem>>) attributes {dimension_semantics = [#tpu.dimension_semantics<parallel>], iteration_bounds = array<i64: 2>, scalar_prefetch = 0 : i64, scratch_operands = 0 : i64, tpu.core_type = #tpu.core_type<tc>, window_params = [{transform_indices = @transform_0, window_bounds = array<i64: 1, 9, 16>}, {transform_indices = @transform_1, window_bounds = array<i64: 1, 9, 16>}, {pipeline_mode = #tpu.pipeline_mode<synchronous>, transform_indices = @transform_2, window_bounds = array<i64: 3, 16, 128>}, {pipeline_mode = #tpu.pipeline_mode<synchronous>, transform_indices = @transform_3, window_bounds = array<i64: 1, 128>}, {transform_indices = @transform_4, window_bounds = array<i64: 1, 8, 128>}]} {
    %c0 = arith.constant 0 : index
    %c0_0 = arith.constant 0 : index
    %c0_1 = arith.constant 0 : index
    %0 = vector.load %arg1[%c0, %c0_0, %c0_1] : memref<1x9x16xbf16, #tpu.memory_space<vmem>>, vector<1x8x16xbf16>
    %1 = vector.shape_cast %0 : vector<1x8x16xbf16> to vector<8x16xbf16>
    %c0_2 = arith.constant 0 : index
    %c0_3 = arith.constant 0 : index
    %c0_4 = arith.constant 0 : index
    %2 = vector.load %arg3[%c0_2, %c0_3, %c0_4] : memref<3x16x128xbf16, #tpu.memory_space<vmem>>, vector<1x16x128xbf16>
    %3 = vector.shape_cast %2 : vector<1x16x128xbf16> to vector<16x128xbf16>
    %cst = arith.constant dense<0.000000e+00> : vector<8x128xf32>
    %4 = tpu.matmul %1, %3, %cst {dimension_numbers = #tpu.dot_dimension_numbers<[1], [0], [0], [1], [0, 0, 1, 1], [], []>} : vector<8x16xbf16>, vector<16x128xbf16>, vector<8x128xf32> -> vector<8x128xf32>
    %c0_5 = arith.constant 0 : index
    %c0_6 = arith.constant 0 : index
    %c0_7 = arith.constant 0 : index
    %5 = vector.load %arg2[%c0_5, %c0_6, %c0_7] : memref<1x9x16xbf16, #tpu.memory_space<vmem>>, vector<1x8x16xbf16>
    %6 = vector.shape_cast %5 : vector<1x8x16xbf16> to vector<8x16xbf16>
    %c1 = arith.constant 1 : index
    %c0_8 = arith.constant 0 : index
    %c0_9 = arith.constant 0 : index
    %7 = vector.load %arg3[%c1, %c0_8, %c0_9] : memref<3x16x128xbf16, #tpu.memory_space<vmem>>, vector<1x16x128xbf16>
    %8 = vector.shape_cast %7 : vector<1x16x128xbf16> to vector<16x128xbf16>
    %cst_10 = arith.constant dense<0.000000e+00> : vector<8x128xf32>
    %9 = tpu.matmul %6, %8, %cst_10 {dimension_numbers = #tpu.dot_dimension_numbers<[1], [0], [0], [1], [0, 0, 1, 1], [], []>} : vector<8x16xbf16>, vector<16x128xbf16>, vector<8x128xf32> -> vector<8x128xf32>
    %10 = arith.addf %4, %9 : vector<8x128xf32>
    %c0_11 = arith.constant 0 : index
    %c1_12 = arith.constant 1 : index
    %c0_13 = arith.constant 0 : index
    %11 = vector.load %arg1[%c0_11, %c1_12, %c0_13] : memref<1x9x16xbf16, #tpu.memory_space<vmem>>, vector<1x8x16xbf16>
    %12 = vector.shape_cast %11 : vector<1x8x16xbf16> to vector<8x16xbf16>
    %c2 = arith.constant 2 : index
    %c0_14 = arith.constant 0 : index
    %c0_15 = arith.constant 0 : index
    %13 = vector.load %arg3[%c2, %c0_14, %c0_15] : memref<3x16x128xbf16, #tpu.memory_space<vmem>>, vector<1x16x128xbf16>
    %14 = vector.shape_cast %13 : vector<1x16x128xbf16> to vector<16x128xbf16>
    %cst_16 = arith.constant dense<0.000000e+00> : vector<8x128xf32>
    %15 = tpu.matmul %12, %14, %cst_16 {dimension_numbers = #tpu.dot_dimension_numbers<[1], [0], [0], [1], [0, 0, 1, 1], [], []>} : vector<8x16xbf16>, vector<16x128xbf16>, vector<8x128xf32> -> vector<8x128xf32>
    %16 = arith.addf %10, %15 : vector<8x128xf32>
    %c0_17 = arith.constant 0 : index
    %c0_18 = arith.constant 0 : index
    %17 = vector.load %arg4[%c0_17, %c0_18] : memref<1x128xf32, #tpu.memory_space<vmem>>, vector<1x128xf32>
    %18 = vector.broadcast %17 : vector<1x128xf32> to vector<8x128xf32>
    %19 = arith.addf %16, %18 : vector<8x128xf32>
    %cst_19 = arith.constant 0.000000e+00 : f32
    %20 = vector.broadcast %cst_19 : f32 to vector<8x128xf32>
    %21 = arith.maximumf %19, %20 : vector<8x128xf32>
    %22 = arith.truncf %21 : vector<8x128xf32> to vector<8x128xbf16>
    %c0_20 = arith.constant 0 : index
    %c0_21 = arith.constant 0 : index
    %c0_22 = arith.constant 0 : index
    %23 = vector.load %arg5[%c0_20, %c0_21, %c0_22] : memref<1x8x128xbf16, #tpu.memory_space<vmem>>, vector<1x8x128xbf16>
    %24 = vector.shape_cast %23 : vector<1x8x128xbf16> to vector<8x128xbf16>
    %25 = vector.shape_cast %22 : vector<8x128xbf16> to vector<1x8x128xbf16>
    tpu.vector_store %arg5[%c0_20, %c0_21, %c0_22], %25 {strides = array<i32>} : memref<1x8x128xbf16, #tpu.memory_space<vmem>>, vector<1x8x128xbf16>,
    return
  }
  func.func @transform_0(%arg0: i32) -> (i32, i32, i32) {
    %c0_i32 = arith.constant 0 : i32
    %c0_i32_0 = arith.constant 0 : i32
    %c0_i32_1 = arith.constant 0 : i32
    return %arg0, %c0_i32, %c0_i32_0 : i32, i32, i32
  }
  func.func @transform_1(%arg0: i32) -> (i32, i32, i32) {
    %c0_i32 = arith.constant 0 : i32
    %c0_i32_0 = arith.constant 0 : i32
    %c0_i32_1 = arith.constant 0 : i32
    return %arg0, %c0_i32, %c0_i32_0 : i32, i32, i32
  }
  func.func @transform_2(%arg0: i32) -> (i32, i32, i32) {
    %c0_i32 = arith.constant 0 : i32
    %c0_i32_0 = arith.constant 0 : i32
    %c0_i32_1 = arith.constant 0 : i32
    %c0_i32_2 = arith.constant 0 : i32
    return %c0_i32, %c0_i32_0, %c0_i32_1 : i32, i32, i32
  }
  func.func @transform_3(%arg0: i32) -> (i32, i32) {
    %c0_i32 = arith.constant 0 : i32
    %c0_i32_0 = arith.constant 0 : i32
    %c0_i32_1 = arith.constant 0 : i32
    return %c0_i32, %c0_i32_0 : i32, i32
  }
  func.func @transform_4(%arg0: i32) -> (i32, i32, i32) {
    %c0_i32 = arith.constant 0 : i32
    %c0_i32_0 = arith.constant 0 : i32
    %c0_i32_1 = arith.constant 0 : i32
    return %arg0, %c0_i32, %c0_i32_0 : i32, i32, i32
  }
}

module attributes {stable_mosaic.version = 11 : i64} {
  func.func @_tap_matmul_kernel(%arg0: i32, %arg1: memref<1x5x128xbf16, #tpu.memory_space<vmem>>, %arg2: memref<1x5x128xbf16, #tpu.memory_space<vmem>>, %arg3: memref<3x128x128xbf16, #tpu.memory_space<vmem>>, %arg4: memref<1x128xf32, #tpu.memory_space<vmem>>, %arg5: memref<1x4x128xbf16, #tpu.memory_space<vmem>>) attributes {dimension_semantics = [#tpu.dimension_semantics<parallel>], iteration_bounds = array<i64: 2>, scalar_prefetch = 0 : i64, scratch_operands = 0 : i64, tpu.core_type = #tpu.core_type<tc>, window_params = [{transform_indices = @transform_0, window_bounds = array<i64: 1, 5, 128>}, {transform_indices = @transform_1, window_bounds = array<i64: 1, 5, 128>}, {pipeline_mode = #tpu.pipeline_mode<synchronous>, transform_indices = @transform_2, window_bounds = array<i64: 3, 128, 128>}, {pipeline_mode = #tpu.pipeline_mode<synchronous>, transform_indices = @transform_3, window_bounds = array<i64: 1, 128>}, {transform_indices = @transform_4, window_bounds = array<i64: 1, 4, 128>}]} {
    %c0 = arith.constant 0 : index
    %c0_0 = arith.constant 0 : index
    %c0_1 = arith.constant 0 : index
    %0 = vector.load %arg1[%c0, %c0_0, %c0_1] : memref<1x5x128xbf16, #tpu.memory_space<vmem>>, vector<1x4x128xbf16>
    %1 = vector.shape_cast %0 : vector<1x4x128xbf16> to vector<4x128xbf16>
    %c0_2 = arith.constant 0 : index
    %c0_3 = arith.constant 0 : index
    %c0_4 = arith.constant 0 : index
    %2 = vector.load %arg3[%c0_2, %c0_3, %c0_4] : memref<3x128x128xbf16, #tpu.memory_space<vmem>>, vector<1x128x128xbf16>
    %3 = vector.shape_cast %2 : vector<1x128x128xbf16> to vector<128x128xbf16>
    %cst = arith.constant dense<0.000000e+00> : vector<4x128xf32>
    %4 = tpu.matmul %1, %3, %cst {dimension_numbers = #tpu.dot_dimension_numbers<[1], [0], [0], [1], [0, 0, 1, 1], [], []>} : vector<4x128xbf16>, vector<128x128xbf16>, vector<4x128xf32> -> vector<4x128xf32>
    %c0_5 = arith.constant 0 : index
    %c0_6 = arith.constant 0 : index
    %c0_7 = arith.constant 0 : index
    %5 = vector.load %arg2[%c0_5, %c0_6, %c0_7] : memref<1x5x128xbf16, #tpu.memory_space<vmem>>, vector<1x4x128xbf16>
    %6 = vector.shape_cast %5 : vector<1x4x128xbf16> to vector<4x128xbf16>
    %c1 = arith.constant 1 : index
    %c0_8 = arith.constant 0 : index
    %c0_9 = arith.constant 0 : index
    %7 = vector.load %arg3[%c1, %c0_8, %c0_9] : memref<3x128x128xbf16, #tpu.memory_space<vmem>>, vector<1x128x128xbf16>
    %8 = vector.shape_cast %7 : vector<1x128x128xbf16> to vector<128x128xbf16>
    %cst_10 = arith.constant dense<0.000000e+00> : vector<4x128xf32>
    %9 = tpu.matmul %6, %8, %cst_10 {dimension_numbers = #tpu.dot_dimension_numbers<[1], [0], [0], [1], [0, 0, 1, 1], [], []>} : vector<4x128xbf16>, vector<128x128xbf16>, vector<4x128xf32> -> vector<4x128xf32>
    %10 = arith.addf %4, %9 : vector<4x128xf32>
    %c0_11 = arith.constant 0 : index
    %c1_12 = arith.constant 1 : index
    %c0_13 = arith.constant 0 : index
    %11 = vector.load %arg1[%c0_11, %c1_12, %c0_13] : memref<1x5x128xbf16, #tpu.memory_space<vmem>>, vector<1x4x128xbf16>
    %12 = vector.shape_cast %11 : vector<1x4x128xbf16> to vector<4x128xbf16>
    %c2 = arith.constant 2 : index
    %c0_14 = arith.constant 0 : index
    %c0_15 = arith.constant 0 : index
    %13 = vector.load %arg3[%c2, %c0_14, %c0_15] : memref<3x128x128xbf16, #tpu.memory_space<vmem>>, vector<1x128x128xbf16>
    %14 = vector.shape_cast %13 : vector<1x128x128xbf16> to vector<128x128xbf16>
    %cst_16 = arith.constant dense<0.000000e+00> : vector<4x128xf32>
    %15 = tpu.matmul %12, %14, %cst_16 {dimension_numbers = #tpu.dot_dimension_numbers<[1], [0], [0], [1], [0, 0, 1, 1], [], []>} : vector<4x128xbf16>, vector<128x128xbf16>, vector<4x128xf32> -> vector<4x128xf32>
    %16 = arith.addf %10, %15 : vector<4x128xf32>
    %c0_17 = arith.constant 0 : index
    %c0_18 = arith.constant 0 : index
    %17 = vector.load %arg4[%c0_17, %c0_18] : memref<1x128xf32, #tpu.memory_space<vmem>>, vector<1x128xf32>
    %18 = vector.broadcast %17 : vector<1x128xf32> to vector<4x128xf32>
    %19 = arith.addf %16, %18 : vector<4x128xf32>
    %cst_19 = arith.constant 0.000000e+00 : f32
    %20 = vector.broadcast %cst_19 : f32 to vector<4x128xf32>
    %21 = arith.maximumf %19, %20 : vector<4x128xf32>
    %22 = arith.truncf %21 : vector<4x128xf32> to vector<4x128xbf16>
    %c0_20 = arith.constant 0 : index
    %c0_21 = arith.constant 0 : index
    %c0_22 = arith.constant 0 : index
    %23 = vector.load %arg5[%c0_20, %c0_21, %c0_22] : memref<1x4x128xbf16, #tpu.memory_space<vmem>>, vector<1x4x128xbf16>
    %24 = vector.shape_cast %23 : vector<1x4x128xbf16> to vector<4x128xbf16>
    %25 = vector.shape_cast %22 : vector<4x128xbf16> to vector<1x4x128xbf16>
    tpu.vector_store %arg5[%c0_20, %c0_21, %c0_22], %25 {strides = array<i32>} : memref<1x4x128xbf16, #tpu.memory_space<vmem>>, vector<1x4x128xbf16>,
    return
  }
  func.func @transform_0(%arg0: i32) -> (i32, i32, i32) {
    %c0_i32 = arith.constant 0 : i32
    %c0_i32_0 = arith.constant 0 : i32
    %c0_i32_1 = arith.constant 0 : i32
    return %arg0, %c0_i32, %c0_i32_0 : i32, i32, i32
  }
  func.func @transform_1(%arg0: i32) -> (i32, i32, i32) {
    %c0_i32 = arith.constant 0 : i32
    %c0_i32_0 = arith.constant 0 : i32
    %c0_i32_1 = arith.constant 0 : i32
    return %arg0, %c0_i32, %c0_i32_0 : i32, i32, i32
  }
  func.func @transform_2(%arg0: i32) -> (i32, i32, i32) {
    %c0_i32 = arith.constant 0 : i32
    %c0_i32_0 = arith.constant 0 : i32
    %c0_i32_1 = arith.constant 0 : i32
    %c0_i32_2 = arith.constant 0 : i32
    return %c0_i32, %c0_i32_0, %c0_i32_1 : i32, i32, i32
  }
  func.func @transform_3(%arg0: i32) -> (i32, i32) {
    %c0_i32 = arith.constant 0 : i32
    %c0_i32_0 = arith.constant 0 : i32
    %c0_i32_1 = arith.constant 0 : i32
    return %c0_i32, %c0_i32_0 : i32, i32
  }
  func.func @transform_4(%arg0: i32) -> (i32, i32, i32) {
    %c0_i32 = arith.constant 0 : i32
    %c0_i32_0 = arith.constant 0 : i32
    %c0_i32_1 = arith.constant 0 : i32
    return %arg0, %c0_i32, %c0_i32_0 : i32, i32, i32
  }
}

module attributes {stable_mosaic.version = 11 : i64} {
  func.func @_tap_matmul_kernel(%arg0: i32, %arg1: memref<1x2x256xbf16, #tpu.memory_space<vmem>>, %arg2: memref<1x256x128xbf16, #tpu.memory_space<vmem>>, %arg3: memref<1x128xf32, #tpu.memory_space<vmem>>, %arg4: memref<1x2x128xbf16, #tpu.memory_space<vmem>>) attributes {dimension_semantics = [#tpu.dimension_semantics<parallel>], iteration_bounds = array<i64: 1>, scalar_prefetch = 0 : i64, scratch_operands = 0 : i64, tpu.core_type = #tpu.core_type<tc>, window_params = [{transform_indices = @transform_0, window_bounds = array<i64: 1, 2, 256>}, {pipeline_mode = #tpu.pipeline_mode<synchronous>, transform_indices = @transform_1, window_bounds = array<i64: 1, 256, 128>}, {pipeline_mode = #tpu.pipeline_mode<synchronous>, transform_indices = @transform_2, window_bounds = array<i64: 1, 128>}, {transform_indices = @transform_3, window_bounds = array<i64: 1, 2, 128>}]} {
    %c0 = arith.constant 0 : index
    %c0_0 = arith.constant 0 : index
    %c0_1 = arith.constant 0 : index
    %0 = vector.load %arg1[%c0, %c0_0, %c0_1] : memref<1x2x256xbf16, #tpu.memory_space<vmem>>, vector<1x2x256xbf16>
    %1 = vector.shape_cast %0 : vector<1x2x256xbf16> to vector<2x256xbf16>
    %c0_2 = arith.constant 0 : index
    %c0_3 = arith.constant 0 : index
    %c0_4 = arith.constant 0 : index
    %2 = vector.load %arg2[%c0_2, %c0_3, %c0_4] : memref<1x256x128xbf16, #tpu.memory_space<vmem>>, vector<1x256x128xbf16>
    %3 = vector.shape_cast %2 : vector<1x256x128xbf16> to vector<256x128xbf16>
    %cst = arith.constant dense<0.000000e+00> : vector<2x128xf32>
    %4 = tpu.matmul %1, %3, %cst {dimension_numbers = #tpu.dot_dimension_numbers<[1], [0], [0], [1], [0, 0, 1, 1], [], []>} : vector<2x256xbf16>, vector<256x128xbf16>, vector<2x128xf32> -> vector<2x128xf32>
    %c0_5 = arith.constant 0 : index
    %c0_6 = arith.constant 0 : index
    %5 = vector.load %arg3[%c0_5, %c0_6] : memref<1x128xf32, #tpu.memory_space<vmem>>, vector<1x128xf32>
    %6 = vector.broadcast %5 : vector<1x128xf32> to vector<2x128xf32>
    %7 = arith.addf %4, %6 : vector<2x128xf32>
    %8 = arith.truncf %7 : vector<2x128xf32> to vector<2x128xbf16>
    %c0_7 = arith.constant 0 : index
    %c0_8 = arith.constant 0 : index
    %c0_9 = arith.constant 0 : index
    %9 = vector.load %arg4[%c0_7, %c0_8, %c0_9] : memref<1x2x128xbf16, #tpu.memory_space<vmem>>, vector<1x2x128xbf16>
    %10 = vector.shape_cast %9 : vector<1x2x128xbf16> to vector<2x128xbf16>
    %11 = vector.shape_cast %8 : vector<2x128xbf16> to vector<1x2x128xbf16>
    tpu.vector_store %arg4[%c0_7, %c0_8, %c0_9], %11 {strides = array<i32>} : memref<1x2x128xbf16, #tpu.memory_space<vmem>>, vector<1x2x128xbf16>,
    return
  }
  func.func @transform_0(%arg0: i32) -> (i32, i32, i32) {
    %c0_i32 = arith.constant 0 : i32
    %c0_i32_0 = arith.constant 0 : i32
    %c0_i32_1 = arith.constant 0 : i32
    return %arg0, %c0_i32, %c0_i32_0 : i32, i32, i32
  }
  func.func @transform_1(%arg0: i32) -> (i32, i32, i32) {
    %c0_i32 = arith.constant 0 : i32
    %c0_i32_0 = arith.constant 0 : i32
    %c0_i32_1 = arith.constant 0 : i32
    %c0_i32_2 = arith.constant 0 : i32
    return %c0_i32, %c0_i32_0, %c0_i32_1 : i32, i32, i32
  }
  func.func @transform_2(%arg0: i32) -> (i32, i32) {
    %c0_i32 = arith.constant 0 : i32
    %c0_i32_0 = arith.constant 0 : i32
    %c0_i32_1 = arith.constant 0 : i32
    return %c0_i32, %c0_i32_0 : i32, i32
  }
  func.func @transform_3(%arg0: i32) -> (i32, i32, i32) {
    %c0_i32 = arith.constant 0 : i32
    %c0_i32_0 = arith.constant 0 : i32
    %c0_i32_1 = arith.constant 0 : i32
    return %arg0, %c0_i32, %c0_i32_0 : i32, i32, i32
  }
}

module attributes {stable_mosaic.version = 11 : i64} {
  func.func @_tap_matmul_kernel(%arg0: i32, %arg1: memref<1x3x128xbf16, #tpu.memory_space<vmem>>, %arg2: memref<1x3x128xbf16, #tpu.memory_space<vmem>>, %arg3: memref<3x128x128xbf16, #tpu.memory_space<vmem>>, %arg4: memref<1x128xf32, #tpu.memory_space<vmem>>, %arg5: memref<1x2x128xbf16, #tpu.memory_space<vmem>>) attributes {dimension_semantics = [#tpu.dimension_semantics<parallel>], iteration_bounds = array<i64: 2>, scalar_prefetch = 0 : i64, scratch_operands = 0 : i64, tpu.core_type = #tpu.core_type<tc>, window_params = [{transform_indices = @transform_0, window_bounds = array<i64: 1, 3, 128>}, {transform_indices = @transform_1, window_bounds = array<i64: 1, 3, 128>}, {pipeline_mode = #tpu.pipeline_mode<synchronous>, transform_indices = @transform_2, window_bounds = array<i64: 3, 128, 128>}, {pipeline_mode = #tpu.pipeline_mode<synchronous>, transform_indices = @transform_3, window_bounds = array<i64: 1, 128>}, {transform_indices = @transform_4, window_bounds = array<i64: 1, 2, 128>}]} {
    %c0 = arith.constant 0 : index
    %c0_0 = arith.constant 0 : index
    %c0_1 = arith.constant 0 : index
    %0 = vector.load %arg1[%c0, %c0_0, %c0_1] : memref<1x3x128xbf16, #tpu.memory_space<vmem>>, vector<1x2x128xbf16>
    %1 = vector.shape_cast %0 : vector<1x2x128xbf16> to vector<2x128xbf16>
    %c0_2 = arith.constant 0 : index
    %c0_3 = arith.constant 0 : index
    %c0_4 = arith.constant 0 : index
    %2 = vector.load %arg3[%c0_2, %c0_3, %c0_4] : memref<3x128x128xbf16, #tpu.memory_space<vmem>>, vector<1x128x128xbf16>
    %3 = vector.shape_cast %2 : vector<1x128x128xbf16> to vector<128x128xbf16>
    %cst = arith.constant dense<0.000000e+00> : vector<2x128xf32>
    %4 = tpu.matmul %1, %3, %cst {dimension_numbers = #tpu.dot_dimension_numbers<[1], [0], [0], [1], [0, 0, 1, 1], [], []>} : vector<2x128xbf16>, vector<128x128xbf16>, vector<2x128xf32> -> vector<2x128xf32>
    %c0_5 = arith.constant 0 : index
    %c0_6 = arith.constant 0 : index
    %c0_7 = arith.constant 0 : index
    %5 = vector.load %arg2[%c0_5, %c0_6, %c0_7] : memref<1x3x128xbf16, #tpu.memory_space<vmem>>, vector<1x2x128xbf16>
    %6 = vector.shape_cast %5 : vector<1x2x128xbf16> to vector<2x128xbf16>
    %c1 = arith.constant 1 : index
    %c0_8 = arith.constant 0 : index
    %c0_9 = arith.constant 0 : index
    %7 = vector.load %arg3[%c1, %c0_8, %c0_9] : memref<3x128x128xbf16, #tpu.memory_space<vmem>>, vector<1x128x128xbf16>
    %8 = vector.shape_cast %7 : vector<1x128x128xbf16> to vector<128x128xbf16>
    %cst_10 = arith.constant dense<0.000000e+00> : vector<2x128xf32>
    %9 = tpu.matmul %6, %8, %cst_10 {dimension_numbers = #tpu.dot_dimension_numbers<[1], [0], [0], [1], [0, 0, 1, 1], [], []>} : vector<2x128xbf16>, vector<128x128xbf16>, vector<2x128xf32> -> vector<2x128xf32>
    %10 = arith.addf %4, %9 : vector<2x128xf32>
    %c0_11 = arith.constant 0 : index
    %c1_12 = arith.constant 1 : index
    %c0_13 = arith.constant 0 : index
    %11 = vector.load %arg1[%c0_11, %c1_12, %c0_13] : memref<1x3x128xbf16, #tpu.memory_space<vmem>>, vector<1x2x128xbf16>
    %12 = vector.shape_cast %11 : vector<1x2x128xbf16> to vector<2x128xbf16>
    %c2 = arith.constant 2 : index
    %c0_14 = arith.constant 0 : index
    %c0_15 = arith.constant 0 : index
    %13 = vector.load %arg3[%c2, %c0_14, %c0_15] : memref<3x128x128xbf16, #tpu.memory_space<vmem>>, vector<1x128x128xbf16>
    %14 = vector.shape_cast %13 : vector<1x128x128xbf16> to vector<128x128xbf16>
    %cst_16 = arith.constant dense<0.000000e+00> : vector<2x128xf32>
    %15 = tpu.matmul %12, %14, %cst_16 {dimension_numbers = #tpu.dot_dimension_numbers<[1], [0], [0], [1], [0, 0, 1, 1], [], []>} : vector<2x128xbf16>, vector<128x128xbf16>, vector<2x128xf32> -> vector<2x128xf32>
    %16 = arith.addf %10, %15 : vector<2x128xf32>
    %c0_17 = arith.constant 0 : index
    %c0_18 = arith.constant 0 : index
    %17 = vector.load %arg4[%c0_17, %c0_18] : memref<1x128xf32, #tpu.memory_space<vmem>>, vector<1x128xf32>
    %18 = vector.broadcast %17 : vector<1x128xf32> to vector<2x128xf32>
    %19 = arith.addf %16, %18 : vector<2x128xf32>
    %cst_19 = arith.constant 0.000000e+00 : f32
    %20 = vector.broadcast %cst_19 : f32 to vector<2x128xf32>
    %21 = arith.maximumf %19, %20 : vector<2x128xf32>
    %22 = arith.truncf %21 : vector<2x128xf32> to vector<2x128xbf16>
    %c0_20 = arith.constant 0 : index
    %c0_21 = arith.constant 0 : index
    %c0_22 = arith.constant 0 : index
    %23 = vector.load %arg5[%c0_20, %c0_21, %c0_22] : memref<1x2x128xbf16, #tpu.memory_space<vmem>>, vector<1x2x128xbf16>
    %24 = vector.shape_cast %23 : vector<1x2x128xbf16> to vector<2x128xbf16>
    %25 = vector.shape_cast %22 : vector<2x128xbf16> to vector<1x2x128xbf16>
    tpu.vector_store %arg5[%c0_20, %c0_21, %c0_22], %25 {strides = array<i32>} : memref<1x2x128xbf16, #tpu.memory_space<vmem>>, vector<1x2x128xbf16>,
    return
  }
  func.func @transform_0(%arg0: i32) -> (i32, i32, i32) {
    %c0_i32 = arith.constant 0 : i32
    %c0_i32_0 = arith.constant 0 : i32
    %c0_i32_1 = arith.constant 0 : i32
    return %arg0, %c0_i32, %c0_i32_0 : i32, i32, i32
  }
  func.func @transform_1(%arg0: i32) -> (i32, i32, i32) {
    %c0_i32 = arith.constant 0 : i32
    %c0_i32_0 = arith.constant 0 : i32
    %c0_i32_1 = arith.constant 0 : i32
    return %arg0, %c0_i32, %c0_i32_0 : i32, i32, i32
  }
  func.func @transform_2(%arg0: i32) -> (i32, i32, i32) {
    %c0_i32 = arith.constant 0 : i32
    %c0_i32_0 = arith.constant 0 : i32
    %c0_i32_1 = arith.constant 0 : i32
    %c0_i32_2 = arith.constant 0 : i32
    return %c0_i32, %c0_i32_0, %c0_i32_1 : i32, i32, i32
  }
  func.func @transform_3(%arg0: i32) -> (i32, i32) {
    %c0_i32 = arith.constant 0 : i32
    %c0_i32_0 = arith.constant 0 : i32
    %c0_i32_1 = arith.constant 0 : i32
    return %c0_i32, %c0_i32_0 : i32, i32
  }
  func.func @transform_4(%arg0: i32) -> (i32, i32, i32) {
    %c0_i32 = arith.constant 0 : i32
    %c0_i32_0 = arith.constant 0 : i32
    %c0_i32_1 = arith.constant 0 : i32
    return %arg0, %c0_i32, %c0_i32_0 : i32, i32, i32
  }
}

module attributes {stable_mosaic.version = 11 : i64} {
  func.func @_tap_matmul_kernel(%arg0: i32, %arg1: memref<1x3x32xbf16, #tpu.memory_space<vmem>>, %arg2: memref<2x32x128xbf16, #tpu.memory_space<vmem>>, %arg3: memref<1x128xf32, #tpu.memory_space<vmem>>, %arg4: memref<1x2x128xbf16, #tpu.memory_space<vmem>>) attributes {dimension_semantics = [#tpu.dimension_semantics<parallel>], iteration_bounds = array<i64: 2>, scalar_prefetch = 0 : i64, scratch_operands = 0 : i64, tpu.core_type = #tpu.core_type<tc>, window_params = [{transform_indices = @transform_0, window_bounds = array<i64: 1, 3, 32>}, {pipeline_mode = #tpu.pipeline_mode<synchronous>, transform_indices = @transform_1, window_bounds = array<i64: 2, 32, 128>}, {pipeline_mode = #tpu.pipeline_mode<synchronous>, transform_indices = @transform_2, window_bounds = array<i64: 1, 128>}, {transform_indices = @transform_3, window_bounds = array<i64: 1, 2, 128>}]} {
    %c0 = arith.constant 0 : index
    %c0_0 = arith.constant 0 : index
    %c0_1 = arith.constant 0 : index
    %0 = vector.load %arg1[%c0, %c0_0, %c0_1] : memref<1x3x32xbf16, #tpu.memory_space<vmem>>, vector<1x2x32xbf16>
    %1 = vector.shape_cast %0 : vector<1x2x32xbf16> to vector<2x32xbf16>
    %c0_2 = arith.constant 0 : index
    %c0_3 = arith.constant 0 : index
    %c0_4 = arith.constant 0 : index
    %2 = vector.load %arg2[%c0_2, %c0_3, %c0_4] : memref<2x32x128xbf16, #tpu.memory_space<vmem>>, vector<1x32x128xbf16>
    %3 = vector.shape_cast %2 : vector<1x32x128xbf16> to vector<32x128xbf16>
    %cst = arith.constant dense<0.000000e+00> : vector<2x128xf32>
    %4 = tpu.matmul %1, %3, %cst {dimension_numbers = #tpu.dot_dimension_numbers<[1], [0], [0], [1], [0, 0, 1, 1], [], []>} : vector<2x32xbf16>, vector<32x128xbf16>, vector<2x128xf32> -> vector<2x128xf32>
    %c0_5 = arith.constant 0 : index
    %c1 = arith.constant 1 : index
    %c0_6 = arith.constant 0 : index
    %5 = vector.load %arg1[%c0_5, %c1, %c0_6] : memref<1x3x32xbf16, #tpu.memory_space<vmem>>, vector<1x2x32xbf16>
    %6 = vector.shape_cast %5 : vector<1x2x32xbf16> to vector<2x32xbf16>
    %c1_7 = arith.constant 1 : index
    %c0_8 = arith.constant 0 : index
    %c0_9 = arith.constant 0 : index
    %7 = vector.load %arg2[%c1_7, %c0_8, %c0_9] : memref<2x32x128xbf16, #tpu.memory_space<vmem>>, vector<1x32x128xbf16>
    %8 = vector.shape_cast %7 : vector<1x32x128xbf16> to vector<32x128xbf16>
    %cst_10 = arith.constant dense<0.000000e+00> : vector<2x128xf32>
    %9 = tpu.matmul %6, %8, %cst_10 {dimension_numbers = #tpu.dot_dimension_numbers<[1], [0], [0], [1], [0, 0, 1, 1], [], []>} : vector<2x32xbf16>, vector<32x128xbf16>, vector<2x128xf32> -> vector<2x128xf32>
    %10 = arith.addf %4, %9 : vector<2x128xf32>
    %c0_11 = arith.constant 0 : index
    %c0_12 = arith.constant 0 : index
    %11 = vector.load %arg3[%c0_11, %c0_12] : memref<1x128xf32, #tpu.memory_space<vmem>>, vector<1x128xf32>
    %12 = vector.broadcast %11 : vector<1x128xf32> to vector<2x128xf32>
    %13 = arith.addf %10, %12 : vector<2x128xf32>
    %cst_13 = arith.constant 0.000000e+00 : f32
    %14 = vector.broadcast %cst_13 : f32 to vector<2x128xf32>
    %15 = arith.maximumf %13, %14 : vector<2x128xf32>
    %16 = arith.truncf %15 : vector<2x128xf32> to vector<2x128xbf16>
    %c0_14 = arith.constant 0 : index
    %c0_15 = arith.constant 0 : index
    %c0_16 = arith.constant 0 : index
    %17 = vector.load %arg4[%c0_14, %c0_15, %c0_16] : memref<1x2x128xbf16, #tpu.memory_space<vmem>>, vector<1x2x128xbf16>
    %18 = vector.shape_cast %17 : vector<1x2x128xbf16> to vector<2x128xbf16>
    %19 = vector.shape_cast %16 : vector<2x128xbf16> to vector<1x2x128xbf16>
    tpu.vector_store %arg4[%c0_14, %c0_15, %c0_16], %19 {strides = array<i32>} : memref<1x2x128xbf16, #tpu.memory_space<vmem>>, vector<1x2x128xbf16>,
    return
  }
  func.func @transform_0(%arg0: i32) -> (i32, i32, i32) {
    %c0_i32 = arith.constant 0 : i32
    %c0_i32_0 = arith.constant 0 : i32
    %c0_i32_1 = arith.constant 0 : i32
    return %arg0, %c0_i32, %c0_i32_0 : i32, i32, i32
  }
  func.func @transform_1(%arg0: i32) -> (i32, i32, i32) {
    %c0_i32 = arith.constant 0 : i32
    %c0_i32_0 = arith.constant 0 : i32
    %c0_i32_1 = arith.constant 0 : i32
    %c0_i32_2 = arith.constant 0 : i32
    return %c0_i32, %c0_i32_0, %c0_i32_1 : i32, i32, i32
  }
  func.func @transform_2(%arg0: i32) -> (i32, i32) {
    %c0_i32 = arith.constant 0 : i32
    %c0_i32_0 = arith.constant 0 : i32
    %c0_i32_1 = arith.constant 0 : i32
    return %c0_i32, %c0_i32_0 : i32, i32
  }
  func.func @transform_3(%arg0: i32) -> (i32, i32, i32) {
    %c0_i32 = arith.constant 0 : i32
    %c0_i32_0 = arith.constant 0 : i32
    %c0_i32_1 = arith.constant 0 : i32
    return %arg0, %c0_i32, %c0_i32_0 : i32, i32, i32
  }
}

module attributes {stable_mosaic.version = 11 : i64} {
  func.func @_tap_matmul_kernel(%arg0: i32, %arg1: memref<1x5x64xbf16, #tpu.memory_space<vmem>>, %arg2: memref<2x64x128xbf16, #tpu.memory_space<vmem>>, %arg3: memref<1x128xf32, #tpu.memory_space<vmem>>, %arg4: memref<1x4x128xbf16, #tpu.memory_space<vmem>>) attributes {dimension_semantics = [#tpu.dimension_semantics<parallel>], iteration_bounds = array<i64: 2>, scalar_prefetch = 0 : i64, scratch_operands = 0 : i64, tpu.core_type = #tpu.core_type<tc>, window_params = [{transform_indices = @transform_0, window_bounds = array<i64: 1, 5, 64>}, {pipeline_mode = #tpu.pipeline_mode<synchronous>, transform_indices = @transform_1, window_bounds = array<i64: 2, 64, 128>}, {pipeline_mode = #tpu.pipeline_mode<synchronous>, transform_indices = @transform_2, window_bounds = array<i64: 1, 128>}, {transform_indices = @transform_3, window_bounds = array<i64: 1, 4, 128>}]} {
    %c0 = arith.constant 0 : index
    %c0_0 = arith.constant 0 : index
    %c0_1 = arith.constant 0 : index
    %0 = vector.load %arg1[%c0, %c0_0, %c0_1] : memref<1x5x64xbf16, #tpu.memory_space<vmem>>, vector<1x4x64xbf16>
    %1 = vector.shape_cast %0 : vector<1x4x64xbf16> to vector<4x64xbf16>
    %c0_2 = arith.constant 0 : index
    %c0_3 = arith.constant 0 : index
    %c0_4 = arith.constant 0 : index
    %2 = vector.load %arg2[%c0_2, %c0_3, %c0_4] : memref<2x64x128xbf16, #tpu.memory_space<vmem>>, vector<1x64x128xbf16>
    %3 = vector.shape_cast %2 : vector<1x64x128xbf16> to vector<64x128xbf16>
    %cst = arith.constant dense<0.000000e+00> : vector<4x128xf32>
    %4 = tpu.matmul %1, %3, %cst {dimension_numbers = #tpu.dot_dimension_numbers<[1], [0], [0], [1], [0, 0, 1, 1], [], []>} : vector<4x64xbf16>, vector<64x128xbf16>, vector<4x128xf32> -> vector<4x128xf32>
    %c0_5 = arith.constant 0 : index
    %c1 = arith.constant 1 : index
    %c0_6 = arith.constant 0 : index
    %5 = vector.load %arg1[%c0_5, %c1, %c0_6] : memref<1x5x64xbf16, #tpu.memory_space<vmem>>, vector<1x4x64xbf16>
    %6 = vector.shape_cast %5 : vector<1x4x64xbf16> to vector<4x64xbf16>
    %c1_7 = arith.constant 1 : index
    %c0_8 = arith.constant 0 : index
    %c0_9 = arith.constant 0 : index
    %7 = vector.load %arg2[%c1_7, %c0_8, %c0_9] : memref<2x64x128xbf16, #tpu.memory_space<vmem>>, vector<1x64x128xbf16>
    %8 = vector.shape_cast %7 : vector<1x64x128xbf16> to vector<64x128xbf16>
    %cst_10 = arith.constant dense<0.000000e+00> : vector<4x128xf32>
    %9 = tpu.matmul %6, %8, %cst_10 {dimension_numbers = #tpu.dot_dimension_numbers<[1], [0], [0], [1], [0, 0, 1, 1], [], []>} : vector<4x64xbf16>, vector<64x128xbf16>, vector<4x128xf32> -> vector<4x128xf32>
    %10 = arith.addf %4, %9 : vector<4x128xf32>
    %c0_11 = arith.constant 0 : index
    %c0_12 = arith.constant 0 : index
    %11 = vector.load %arg3[%c0_11, %c0_12] : memref<1x128xf32, #tpu.memory_space<vmem>>, vector<1x128xf32>
    %12 = vector.broadcast %11 : vector<1x128xf32> to vector<4x128xf32>
    %13 = arith.addf %10, %12 : vector<4x128xf32>
    %cst_13 = arith.constant 0.000000e+00 : f32
    %14 = vector.broadcast %cst_13 : f32 to vector<4x128xf32>
    %15 = arith.maximumf %13, %14 : vector<4x128xf32>
    %16 = arith.truncf %15 : vector<4x128xf32> to vector<4x128xbf16>
    %c0_14 = arith.constant 0 : index
    %c0_15 = arith.constant 0 : index
    %c0_16 = arith.constant 0 : index
    %17 = vector.load %arg4[%c0_14, %c0_15, %c0_16] : memref<1x4x128xbf16, #tpu.memory_space<vmem>>, vector<1x4x128xbf16>
    %18 = vector.shape_cast %17 : vector<1x4x128xbf16> to vector<4x128xbf16>
    %19 = vector.shape_cast %16 : vector<4x128xbf16> to vector<1x4x128xbf16>
    tpu.vector_store %arg4[%c0_14, %c0_15, %c0_16], %19 {strides = array<i32>} : memref<1x4x128xbf16, #tpu.memory_space<vmem>>, vector<1x4x128xbf16>,
    return
  }
  func.func @transform_0(%arg0: i32) -> (i32, i32, i32) {
    %c0_i32 = arith.constant 0 : i32
    %c0_i32_0 = arith.constant 0 : i32
    %c0_i32_1 = arith.constant 0 : i32
    return %arg0, %c0_i32, %c0_i32_0 : i32, i32, i32
  }
  func.func @transform_1(%arg0: i32) -> (i32, i32, i32) {
    %c0_i32 = arith.constant 0 : i32
    %c0_i32_0 = arith.constant 0 : i32
    %c0_i32_1 = arith.constant 0 : i32
    %c0_i32_2 = arith.constant 0 : i32
    return %c0_i32, %c0_i32_0, %c0_i32_1 : i32, i32, i32
  }
  func.func @transform_2(%arg0: i32) -> (i32, i32) {
    %c0_i32 = arith.constant 0 : i32
    %c0_i32_0 = arith.constant 0 : i32
    %c0_i32_1 = arith.constant 0 : i32
    return %c0_i32, %c0_i32_0 : i32, i32
  }
  func.func @transform_3(%arg0: i32) -> (i32, i32, i32) {
    %c0_i32 = arith.constant 0 : i32
    %c0_i32_0 = arith.constant 0 : i32
    %c0_i32_1 = arith.constant 0 : i32
    return %arg0, %c0_i32, %c0_i32_0 : i32, i32, i32
  }
}

module attributes {stable_mosaic.version = 11 : i64} {
  func.func @_tap_matmul_kernel(%arg0: i32, %arg1: memref<1x2x128xbf16, #tpu.memory_space<vmem>>, %arg2: memref<1x128x128xbf16, #tpu.memory_space<vmem>>, %arg3: memref<1x128xf32, #tpu.memory_space<vmem>>, %arg4: memref<1x2x128xbf16, #tpu.memory_space<vmem>>) attributes {dimension_semantics = [#tpu.dimension_semantics<parallel>], iteration_bounds = array<i64: 1>, scalar_prefetch = 0 : i64, scratch_operands = 0 : i64, tpu.core_type = #tpu.core_type<tc>, window_params = [{transform_indices = @transform_0, window_bounds = array<i64: 1, 2, 128>}, {pipeline_mode = #tpu.pipeline_mode<synchronous>, transform_indices = @transform_1, window_bounds = array<i64: 1, 128, 128>}, {pipeline_mode = #tpu.pipeline_mode<synchronous>, transform_indices = @transform_2, window_bounds = array<i64: 1, 128>}, {transform_indices = @transform_3, window_bounds = array<i64: 1, 2, 128>}]} {
    %c0 = arith.constant 0 : index
    %c0_0 = arith.constant 0 : index
    %c0_1 = arith.constant 0 : index
    %0 = vector.load %arg1[%c0, %c0_0, %c0_1] : memref<1x2x128xbf16, #tpu.memory_space<vmem>>, vector<1x2x128xbf16>
    %1 = vector.shape_cast %0 : vector<1x2x128xbf16> to vector<2x128xbf16>
    %c0_2 = arith.constant 0 : index
    %c0_3 = arith.constant 0 : index
    %c0_4 = arith.constant 0 : index
    %2 = vector.load %arg2[%c0_2, %c0_3, %c0_4] : memref<1x128x128xbf16, #tpu.memory_space<vmem>>, vector<1x128x128xbf16>
    %3 = vector.shape_cast %2 : vector<1x128x128xbf16> to vector<128x128xbf16>
    %cst = arith.constant dense<0.000000e+00> : vector<2x128xf32>
    %4 = tpu.matmul %1, %3, %cst {dimension_numbers = #tpu.dot_dimension_numbers<[1], [0], [0], [1], [0, 0, 1, 1], [], []>} : vector<2x128xbf16>, vector<128x128xbf16>, vector<2x128xf32> -> vector<2x128xf32>
    %c0_5 = arith.constant 0 : index
    %c0_6 = arith.constant 0 : index
    %5 = vector.load %arg3[%c0_5, %c0_6] : memref<1x128xf32, #tpu.memory_space<vmem>>, vector<1x128xf32>
    %6 = vector.broadcast %5 : vector<1x128xf32> to vector<2x128xf32>
    %7 = arith.addf %4, %6 : vector<2x128xf32>
    %8 = arith.truncf %7 : vector<2x128xf32> to vector<2x128xbf16>
    %c0_7 = arith.constant 0 : index
    %c0_8 = arith.constant 0 : index
    %c0_9 = arith.constant 0 : index
    %9 = vector.load %arg4[%c0_7, %c0_8, %c0_9] : memref<1x2x128xbf16, #tpu.memory_space<vmem>>, vector<1x2x128xbf16>
    %10 = vector.shape_cast %9 : vector<1x2x128xbf16> to vector<2x128xbf16>
    %11 = vector.shape_cast %8 : vector<2x128xbf16> to vector<1x2x128xbf16>
    tpu.vector_store %arg4[%c0_7, %c0_8, %c0_9], %11 {strides = array<i32>} : memref<1x2x128xbf16, #tpu.memory_space<vmem>>, vector<1x2x128xbf16>,
    return
  }
  func.func @transform_0(%arg0: i32) -> (i32, i32, i32) {
    %c0_i32 = arith.constant 0 : i32
    %c0_i32_0 = arith.constant 0 : i32
    %c0_i32_1 = arith.constant 0 : i32
    return %arg0, %c0_i32, %c0_i32_0 : i32, i32, i32
  }
  func.func @transform_1(%arg0: i32) -> (i32, i32, i32) {
    %c0_i32 = arith.constant 0 : i32
    %c0_i32_0 = arith.constant 0 : i32
    %c0_i32_1 = arith.constant 0 : i32
    %c0_i32_2 = arith.constant 0 : i32
    return %c0_i32, %c0_i32_0, %c0_i32_1 : i32, i32, i32
  }
  func.func @transform_2(%arg0: i32) -> (i32, i32) {
    %c0_i32 = arith.constant 0 : i32
    %c0_i32_0 = arith.constant 0 : i32
    %c0_i32_1 = arith.constant 0 : i32
    return %c0_i32, %c0_i32_0 : i32, i32
  }
  func.func @transform_3(%arg0: i32) -> (i32, i32, i32) {
    %c0_i32 = arith.constant 0 : i32
    %c0_i32_0 = arith.constant 0 : i32
    %c0_i32_1 = arith.constant 0 : i32
    return %arg0, %c0_i32, %c0_i32_0 : i32, i32, i32
  }
}

module attributes {stable_mosaic.version = 11 : i64} {
  func.func @_tap_matmul_kernel(%arg0: i32, %arg1: memref<1x9x64xbf16, #tpu.memory_space<vmem>>, %arg2: memref<2x64x128xbf16, #tpu.memory_space<vmem>>, %arg3: memref<1x128xf32, #tpu.memory_space<vmem>>, %arg4: memref<1x8x128xbf16, #tpu.memory_space<vmem>>) attributes {dimension_semantics = [#tpu.dimension_semantics<parallel>], iteration_bounds = array<i64: 2>, scalar_prefetch = 0 : i64, scratch_operands = 0 : i64, tpu.core_type = #tpu.core_type<tc>, window_params = [{transform_indices = @transform_0, window_bounds = array<i64: 1, 9, 64>}, {pipeline_mode = #tpu.pipeline_mode<synchronous>, transform_indices = @transform_1, window_bounds = array<i64: 2, 64, 128>}, {pipeline_mode = #tpu.pipeline_mode<synchronous>, transform_indices = @transform_2, window_bounds = array<i64: 1, 128>}, {transform_indices = @transform_3, window_bounds = array<i64: 1, 8, 128>}]} {
    %c0 = arith.constant 0 : index
    %c0_0 = arith.constant 0 : index
    %c0_1 = arith.constant 0 : index
    %0 = vector.load %arg1[%c0, %c0_0, %c0_1] : memref<1x9x64xbf16, #tpu.memory_space<vmem>>, vector<1x8x64xbf16>
    %1 = vector.shape_cast %0 : vector<1x8x64xbf16> to vector<8x64xbf16>
    %c0_2 = arith.constant 0 : index
    %c0_3 = arith.constant 0 : index
    %c0_4 = arith.constant 0 : index
    %2 = vector.load %arg2[%c0_2, %c0_3, %c0_4] : memref<2x64x128xbf16, #tpu.memory_space<vmem>>, vector<1x64x128xbf16>
    %3 = vector.shape_cast %2 : vector<1x64x128xbf16> to vector<64x128xbf16>
    %cst = arith.constant dense<0.000000e+00> : vector<8x128xf32>
    %4 = tpu.matmul %1, %3, %cst {dimension_numbers = #tpu.dot_dimension_numbers<[1], [0], [0], [1], [0, 0, 1, 1], [], []>} : vector<8x64xbf16>, vector<64x128xbf16>, vector<8x128xf32> -> vector<8x128xf32>
    %c0_5 = arith.constant 0 : index
    %c1 = arith.constant 1 : index
    %c0_6 = arith.constant 0 : index
    %5 = vector.load %arg1[%c0_5, %c1, %c0_6] : memref<1x9x64xbf16, #tpu.memory_space<vmem>>, vector<1x8x64xbf16>
    %6 = vector.shape_cast %5 : vector<1x8x64xbf16> to vector<8x64xbf16>
    %c1_7 = arith.constant 1 : index
    %c0_8 = arith.constant 0 : index
    %c0_9 = arith.constant 0 : index
    %7 = vector.load %arg2[%c1_7, %c0_8, %c0_9] : memref<2x64x128xbf16, #tpu.memory_space<vmem>>, vector<1x64x128xbf16>
    %8 = vector.shape_cast %7 : vector<1x64x128xbf16> to vector<64x128xbf16>
    %cst_10 = arith.constant dense<0.000000e+00> : vector<8x128xf32>
    %9 = tpu.matmul %6, %8, %cst_10 {dimension_numbers = #tpu.dot_dimension_numbers<[1], [0], [0], [1], [0, 0, 1, 1], [], []>} : vector<8x64xbf16>, vector<64x128xbf16>, vector<8x128xf32> -> vector<8x128xf32>
    %10 = arith.addf %4, %9 : vector<8x128xf32>
    %c0_11 = arith.constant 0 : index
    %c0_12 = arith.constant 0 : index
    %11 = vector.load %arg3[%c0_11, %c0_12] : memref<1x128xf32, #tpu.memory_space<vmem>>, vector<1x128xf32>
    %12 = vector.broadcast %11 : vector<1x128xf32> to vector<8x128xf32>
    %13 = arith.addf %10, %12 : vector<8x128xf32>
    %cst_13 = arith.constant 0.000000e+00 : f32
    %14 = vector.broadcast %cst_13 : f32 to vector<8x128xf32>
    %15 = arith.maximumf %13, %14 : vector<8x128xf32>
    %16 = arith.truncf %15 : vector<8x128xf32> to vector<8x128xbf16>
    %c0_14 = arith.constant 0 : index
    %c0_15 = arith.constant 0 : index
    %c0_16 = arith.constant 0 : index
    %17 = vector.load %arg4[%c0_14, %c0_15, %c0_16] : memref<1x8x128xbf16, #tpu.memory_space<vmem>>, vector<1x8x128xbf16>
    %18 = vector.shape_cast %17 : vector<1x8x128xbf16> to vector<8x128xbf16>
    %19 = vector.shape_cast %16 : vector<8x128xbf16> to vector<1x8x128xbf16>
    tpu.vector_store %arg4[%c0_14, %c0_15, %c0_16], %19 {strides = array<i32>} : memref<1x8x128xbf16, #tpu.memory_space<vmem>>, vector<1x8x128xbf16>,
    return
  }
  func.func @transform_0(%arg0: i32) -> (i32, i32, i32) {
    %c0_i32 = arith.constant 0 : i32
    %c0_i32_0 = arith.constant 0 : i32
    %c0_i32_1 = arith.constant 0 : i32
    return %arg0, %c0_i32, %c0_i32_0 : i32, i32, i32
  }
  func.func @transform_1(%arg0: i32) -> (i32, i32, i32) {
    %c0_i32 = arith.constant 0 : i32
    %c0_i32_0 = arith.constant 0 : i32
    %c0_i32_1 = arith.constant 0 : i32
    %c0_i32_2 = arith.constant 0 : i32
    return %c0_i32, %c0_i32_0, %c0_i32_1 : i32, i32, i32
  }
  func.func @transform_2(%arg0: i32) -> (i32, i32) {
    %c0_i32 = arith.constant 0 : i32
    %c0_i32_0 = arith.constant 0 : i32
    %c0_i32_1 = arith.constant 0 : i32
    return %c0_i32, %c0_i32_0 : i32, i32
  }
  func.func @transform_3(%arg0: i32) -> (i32, i32, i32) {
    %c0_i32 = arith.constant 0 : i32
    %c0_i32_0 = arith.constant 0 : i32
    %c0_i32_1 = arith.constant 0 : i32
    return %arg0, %c0_i32, %c0_i32_0 : i32, i32, i32
  }
}

module attributes {stable_mosaic.version = 11 : i64} {
  func.func @_tap_matmul_kernel(%arg0: i32, %arg1: memref<1x18x64xbf16, #tpu.memory_space<vmem>>, %arg2: memref<3x64x128xbf16, #tpu.memory_space<vmem>>, %arg3: memref<1x128xf32, #tpu.memory_space<vmem>>, %arg4: memref<1x16x128xf32, #tpu.memory_space<vmem>>) attributes {dimension_semantics = [#tpu.dimension_semantics<parallel>], iteration_bounds = array<i64: 2>, scalar_prefetch = 0 : i64, scratch_operands = 0 : i64, tpu.core_type = #tpu.core_type<tc>, window_params = [{transform_indices = @transform_0, window_bounds = array<i64: 1, 18, 64>}, {pipeline_mode = #tpu.pipeline_mode<synchronous>, transform_indices = @transform_1, window_bounds = array<i64: 3, 64, 128>}, {pipeline_mode = #tpu.pipeline_mode<synchronous>, transform_indices = @transform_2, window_bounds = array<i64: 1, 128>}, {transform_indices = @transform_3, window_bounds = array<i64: 1, 16, 128>}]} {
    %c0 = arith.constant 0 : index
    %c0_0 = arith.constant 0 : index
    %c0_1 = arith.constant 0 : index
    %0 = vector.load %arg1[%c0, %c0_0, %c0_1] : memref<1x18x64xbf16, #tpu.memory_space<vmem>>, vector<1x16x64xbf16>
    %1 = vector.shape_cast %0 : vector<1x16x64xbf16> to vector<16x64xbf16>
    %c0_2 = arith.constant 0 : index
    %c0_3 = arith.constant 0 : index
    %c0_4 = arith.constant 0 : index
    %2 = vector.load %arg2[%c0_2, %c0_3, %c0_4] : memref<3x64x128xbf16, #tpu.memory_space<vmem>>, vector<1x64x128xbf16>
    %3 = vector.shape_cast %2 : vector<1x64x128xbf16> to vector<64x128xbf16>
    %cst = arith.constant dense<0.000000e+00> : vector<16x128xf32>
    %4 = tpu.matmul %1, %3, %cst {dimension_numbers = #tpu.dot_dimension_numbers<[1], [0], [0], [1], [0, 0, 1, 1], [], []>} : vector<16x64xbf16>, vector<64x128xbf16>, vector<16x128xf32> -> vector<16x128xf32>
    %c0_5 = arith.constant 0 : index
    %c1 = arith.constant 1 : index
    %c0_6 = arith.constant 0 : index
    %5 = vector.load %arg1[%c0_5, %c1, %c0_6] : memref<1x18x64xbf16, #tpu.memory_space<vmem>>, vector<1x16x64xbf16>
    %6 = vector.shape_cast %5 : vector<1x16x64xbf16> to vector<16x64xbf16>
    %c1_7 = arith.constant 1 : index
    %c0_8 = arith.constant 0 : index
    %c0_9 = arith.constant 0 : index
    %7 = vector.load %arg2[%c1_7, %c0_8, %c0_9] : memref<3x64x128xbf16, #tpu.memory_space<vmem>>, vector<1x64x128xbf16>
    %8 = vector.shape_cast %7 : vector<1x64x128xbf16> to vector<64x128xbf16>
    %cst_10 = arith.constant dense<0.000000e+00> : vector<16x128xf32>
    %9 = tpu.matmul %6, %8, %cst_10 {dimension_numbers = #tpu.dot_dimension_numbers<[1], [0], [0], [1], [0, 0, 1, 1], [], []>} : vector<16x64xbf16>, vector<64x128xbf16>, vector<16x128xf32> -> vector<16x128xf32>
    %10 = arith.addf %4, %9 : vector<16x128xf32>
    %c0_11 = arith.constant 0 : index
    %c2 = arith.constant 2 : index
    %c0_12 = arith.constant 0 : index
    %11 = vector.load %arg1[%c0_11, %c2, %c0_12] : memref<1x18x64xbf16, #tpu.memory_space<vmem>>, vector<1x16x64xbf16>
    %12 = vector.shape_cast %11 : vector<1x16x64xbf16> to vector<16x64xbf16>
    %c2_13 = arith.constant 2 : index
    %c0_14 = arith.constant 0 : index
    %c0_15 = arith.constant 0 : index
    %13 = vector.load %arg2[%c2_13, %c0_14, %c0_15] : memref<3x64x128xbf16, #tpu.memory_space<vmem>>, vector<1x64x128xbf16>
    %14 = vector.shape_cast %13 : vector<1x64x128xbf16> to vector<64x128xbf16>
    %cst_16 = arith.constant dense<0.000000e+00> : vector<16x128xf32>
    %15 = tpu.matmul %12, %14, %cst_16 {dimension_numbers = #tpu.dot_dimension_numbers<[1], [0], [0], [1], [0, 0, 1, 1], [], []>} : vector<16x64xbf16>, vector<64x128xbf16>, vector<16x128xf32> -> vector<16x128xf32>
    %16 = arith.addf %10, %15 : vector<16x128xf32>
    %c0_17 = arith.constant 0 : index
    %c0_18 = arith.constant 0 : index
    %17 = vector.load %arg3[%c0_17, %c0_18] : memref<1x128xf32, #tpu.memory_space<vmem>>, vector<1x128xf32>
    %18 = vector.broadcast %17 : vector<1x128xf32> to vector<16x128xf32>
    %19 = arith.addf %16, %18 : vector<16x128xf32>
    %cst_19 = arith.constant 0.000000e+00 : f32
    %20 = vector.broadcast %cst_19 : f32 to vector<16x128xf32>
    %21 = arith.subf %20, %19 : vector<16x128xf32>
    %22 = math.exp %21 : vector<16x128xf32>
    %cst_20 = arith.constant 1.000000e+00 : f32
    %23 = vector.broadcast %cst_20 : f32 to vector<16x128xf32>
    %24 = arith.addf %23, %22 : vector<16x128xf32>
    %25 = tpu.reciprocal %24 {approx = true} : vector<16x128xf32> -> vector<16x128xf32>
    %cst_21 = arith.constant 0.000000e+00 : f32
    %cst_22 = arith.constant 1.000000e+00 : f32
    %26 = vector.broadcast %cst_21 : f32 to vector<16x128xf32>
    %27 = arith.maximumf %26, %25 : vector<16x128xf32>
    %28 = vector.broadcast %cst_22 : f32 to vector<16x128xf32>
    %29 = arith.minimumf %28, %27 : vector<16x128xf32>
    %c0_23 = arith.constant 0 : index
    %c0_24 = arith.constant 0 : index
    %c0_25 = arith.constant 0 : index
    %30 = vector.load %arg4[%c0_23, %c0_24, %c0_25] : memref<1x16x128xf32, #tpu.memory_space<vmem>>, vector<1x16x128xf32>
    %31 = vector.shape_cast %30 : vector<1x16x128xf32> to vector<16x128xf32>
    %32 = vector.shape_cast %29 : vector<16x128xf32> to vector<1x16x128xf32>
    tpu.vector_store %arg4[%c0_23, %c0_24, %c0_25], %32 {strides = array<i32>} : memref<1x16x128xf32, #tpu.memory_space<vmem>>, vector<1x16x128xf32>,
    return
  }
  func.func @transform_0(%arg0: i32) -> (i32, i32, i32) {
    %c0_i32 = arith.constant 0 : i32
    %c0_i32_0 = arith.constant 0 : i32
    %c0_i32_1 = arith.constant 0 : i32
    return %arg0, %c0_i32, %c0_i32_0 : i32, i32, i32
  }
  func.func @transform_1(%arg0: i32) -> (i32, i32, i32) {
    %c0_i32 = arith.constant 0 : i32
    %c0_i32_0 = arith.constant 0 : i32
    %c0_i32_1 = arith.constant 0 : i32
    %c0_i32_2 = arith.constant 0 : i32
    return %c0_i32, %c0_i32_0, %c0_i32_1 : i32, i32, i32
  }
  func.func @transform_2(%arg0: i32) -> (i32, i32) {
    %c0_i32 = arith.constant 0 : i32
    %c0_i32_0 = arith.constant 0 : i32
    %c0_i32_1 = arith.constant 0 : i32
    return %c0_i32, %c0_i32_0 : i32, i32
  }
  func.func @transform_3(%arg0: i32) -> (i32, i32, i32) {
    %c0_i32 = arith.constant 0 : i32
    %c0_i32_0 = arith.constant 0 : i32
    %c0_i32_1 = arith.constant 0 : i32
    return %arg0, %c0_i32, %c0_i32_0 : i32, i32, i32
  }
}

</mosaic_0001>

<llo_original>
// kernel: _lambda_.12
$region0: #{_lambda_.12}
  #allocation0 [shape = 'u32[]', space=smem, size = 0x4, offset = 0x4, fixed_abs, tag = 'smem constant byte address 0x4 - core index']
  #allocation1 [shape = 'u32[144,128]{1,0:T(1,128)}', space=vmem, size = 0x12000, scoped, tag = 'internal scratch']
  %s0 = inlined_call_operand.vmem [shape: bf16[1,2,256], index: 0, kind: input, shape index: {}]
  %s1 = inlined_call_operand.vmem [shape: bf16[1,256,128], index: 1, kind: input, shape index: {}]
  %s2 = inlined_call_operand.vmem [shape: f32[1,128], index: 2, kind: input, shape index: {}]
  %s3 = inlined_call_operand.vmem [shape: bf16[1,2,128], index: 3, kind: output, shape index: {}]
  %s4 = sld [smem:[#allocation0]]
  $region22: #{_lambda_.12} parent=0
    _
  %s6 = ssub.s32 1, %s4
  %s7 = scalar_select 0, %s6, %s4
  // Predicated region
  $region2: #{_lambda_.12} parent=0 // pred_check
    _
  $region3: #{_lambda_.12} parent=0 // pred_check_branch
    %9 = sbr.rel (0) target = $region5
  $region4: #{_lambda_.12} parent=0 // pred_region
    _
  $region5: #{_lambda_.12} parent=0 // pred_fallthru
    _
  // Predicated region
  $region6: #{_lambda_.12} parent=0 // pred_check
    _
  $region7: #{_lambda_.12} parent=0 // pred_check_branch
    %11 = sbr.rel (0) target = $region9
  $region8: #{_lambda_.12} parent=0 // pred_region
    _
  $region9: #{_lambda_.12} parent=0 // pred_fallthru
    _
  // Predicated region
  $region10: #{_lambda_.12} parent=0 // pred_check
    _
  $region11: #{_lambda_.12} parent=0 // pred_check_branch
    %13 = sbr.rel (0) target = $region13
  $region12: #{_lambda_.12} parent=0 // pred_region
    _
  $region13: #{_lambda_.12} parent=0 // pred_fallthru
    _
  %v15 = vld [vmem:[%s0] sm:$0x3]
  %v16 = vld [vmem:[%s1] sm:$0xf]
  %v17 = vld [vmem:[%s1 + $0x4] sm:$0xf]
  %v18 = vld [vmem:[%s1 + $0x8] sm:$0xf]
  %v19 = vld [vmem:[%s1 + $0xc] sm:$0xf]
  %v20 = vld [vmem:[%s1 + $0x10] sm:$0xf]
  %v21 = vld [vmem:[%s1 + $0x14] sm:$0xf]
  %v22 = vld [vmem:[%s1 + $0x18] sm:$0xf]
  %v23 = vld [vmem:[%s1 + $0x1c] sm:$0xf]
  %v24 = vld [vmem:[%s1 + $0x20] sm:$0xf]
  %v25 = vld [vmem:[%s1 + $0x24] sm:$0xf]
  %v26 = vld [vmem:[%s1 + $0x28] sm:$0xf]
  %v27 = vld [vmem:[%s1 + $0x2c] sm:$0xf]
  %v28 = vld [vmem:[%s1 + $0x30] sm:$0xf]
  %v29 = vld [vmem:[%s1 + $0x34] sm:$0xf]
  %v30 = vld [vmem:[%s1 + $0x38] sm:$0xf]
  %v31 = vld [vmem:[%s1 + $0x3c] sm:$0xf]
  %v32 = vld [vmem:[%s1 + $0x40] sm:$0xf]
  %v33 = vld [vmem:[%s1 + $0x44] sm:$0xf]
  %v34 = vld [vmem:[%s1 + $0x48] sm:$0xf]
  %v35 = vld [vmem:[%s1 + $0x4c] sm:$0xf]
  %v36 = vld [vmem:[%s1 + $0x50] sm:$0xf]
  %v37 = vld [vmem:[%s1 + $0x54] sm:$0xf]
  %v38 = vld [vmem:[%s1 + $0x58] sm:$0xf]
  %v39 = vld [vmem:[%s1 + $0x5c] sm:$0xf]
  %v40 = vld [vmem:[%s1 + $0x60] sm:$0xf]
  %v41 = vld [vmem:[%s1 + $0x64] sm:$0xf]
  %v42 = vld [vmem:[%s1 + $0x68] sm:$0xf]
  %v43 = vld [vmem:[%s1 + $0x6c] sm:$0xf]
  %v44 = vld [vmem:[%s1 + $0x70] sm:$0xf]
  %v45 = vld [vmem:[%s1 + $0x74] sm:$0xf]
  %v46 = vld [vmem:[%s1 + $0x78] sm:$0xf]
  %v47 = vld [vmem:[%s1 + $0x7c] sm:$0xf]
  %v48 = vld [vmem:[%s2] sm:$0x1]
  %v50 = vlaneseq
  %v51 = vshrl.u32 %v50, 7
  %v52 = vsub.s32 0, %v51
  %v53 = vrot.slane %v48, %v52
  %v57 = vunpack.c.l.s4 1966171168
  %v58 = vunpack.c.0.s8 %v57
  %v59 = vlaneseq
  %v60 = vshrl.u32 %v59, 7
  %v61 = vsub.s32 %v58, %v60
  %v62 = vrot.slane %v15, %v61
  %v63 = vcombine.high %v62, %v62
  %v65 = vunpack.c.l.s4 1966171168
  %v66 = vunpack.c.0.s8 %v65
  %v67 = vlaneseq
  %v68 = vshrl.u32 %v67, 7
  %v69 = vsub.s32 %v66, %v68
  %v70 = vrot.slane %v62, %v69
  %v72 = vunpack.c.l.s4 1966171168
  %v73 = vunpack.c.0.s8 %v72
  %v74 = vlaneseq
  %v75 = vshrl.u32 %v74, 7
  %v76 = vsub.s32 %v73, %v75
  %v77 = vrot.slane %v63, %v76
  %v112 = vunpack.c.l.b16 %v16
  %v113 = vunpack.c.l.b16 %v17
  %v114 = vunpack.c.l.b16 %v18
  %v115 = vunpack.c.l.b16 %v19
  %v116 = vunpack.c.l.b16 %v20
  %v117 = vunpack.c.l.b16 %v21
  %v118 = vunpack.c.l.b16 %v22
  %v119 = vunpack.c.l.b16 %v23
  %v120 = vunpack.c.l.b16 %v24
  %v121 = vunpack.c.l.b16 %v25
  %v122 = vunpack.c.l.b16 %v26
  %v123 = vunpack.c.l.b16 %v27
  %v124 = vunpack.c.l.b16 %v28
  %v125 = vunpack.c.l.b16 %v29
  %v126 = vunpack.c.l.b16 %v30
  %v127 = vunpack.c.l.b16 %v31
  %v128 = vunpack.c.l.b16 %v32
  %v129 = vunpack.c.l.b16 %v33
  %v130 = vunpack.c.l.b16 %v34
  %v131 = vunpack.c.l.b16 %v35
  %v132 = vunpack.c.l.b16 %v36
  %v133 = vunpack.c.l.b16 %v37
  %v134 = vunpack.c.l.b16 %v38
  %v135 = vunpack.c.l.b16 %v39
  %v136 = vunpack.c.l.b16 %v40
  %v137 = vunpack.c.l.b16 %v41
  %v138 = vunpack.c.l.b16 %v42
  %v139 = vunpack.c.l.b16 %v43
  %v140 = vunpack.c.l.b16 %v44
  %v141 = vunpack.c.l.b16 %v45
  %v142 = vunpack.c.l.b16 %v46
  %v143 = vunpack.c.l.b16 %v47
  %v144 = vpack.c.b16 %v113, %v112
  %v145 = vpack.c.b16 %v115, %v114
  %v146 = vpack.c.b16 %v117, %v116
  %v147 = vpack.c.b16 %v119, %v118
  %v148 = vpack.c.b16 %v121, %v120
  %v149 = vpack.c.b16 %v123, %v122
  %v150 = vpack.c.b16 %v125, %v124
  %v151 = vpack.c.b16 %v127, %v126
  %v152 = vpack.c.b16 %v129, %v128
  %v153 = vpack.c.b16 %v131, %v130
  %v154 = vpack.c.b16 %v133, %v132
  %v155 = vpack.c.b16 %v135, %v134
  %v156 = vpack.c.b16 %v137, %v136
  %v157 = vpack.c.b16 %v139, %v138
  %v158 = vpack.c.b16 %v141, %v140
  %v159 = vpack.c.b16 %v143, %v142
  %176 = vmatprep.subr.bf16.mxu0 0
  %177 = vmatpush1.bf16.msra.mxu0 %v144
  %178 = vmatprep.subr.bf16.mxu0 0
  %179 = vmatpush1.bf16.msra.mxu0 %v145
  %180 = vmatprep.subr.bf16.mxu0 0
  %181 = vmatpush1.bf16.msra.mxu0 %v146
  %182 = vmatprep.subr.bf16.mxu0 0
  %183 = vmatpush1.bf16.msra.mxu0 %v147
  %184 = vmatprep.subr.bf16.mxu0 0
  %185 = vmatpush1.bf16.msra.mxu0 %v148
  %186 = vmatprep.subr.bf16.mxu0 0
  %187 = vmatpush1.bf16.msra.mxu0 %v149
  %188 = vmatprep.subr.bf16.mxu0 0
  %189 = vmatpush1.bf16.msra.mxu0 %v150
  %190 = vmatprep.subr.bf16.mxu0 0
  %191 = vmatpush1.bf16.msra.mxu0 %v151
  %192 = vmatprep.subr.bf16.mxu0 0
  %193 = vmatpush1.bf16.msra.mxu0 %v152
  %194 = vmatprep.subr.bf16.mxu0 0
  %195 = vmatpush1.bf16.msra.mxu0 %v153
  %196 = vmatprep.subr.bf16.mxu0 0
  %197 = vmatpush1.bf16.msra.mxu0 %v154
  %198 = vmatprep.subr.bf16.mxu0 0
  %199 = vmatpush1.bf16.msra.mxu0 %v155
  %200 = vmatprep.subr.bf16.mxu0 0
  %201 = vmatpush1.bf16.msra.mxu0 %v156
  %202 = vmatprep.subr.bf16.mxu0 0
  %203 = vmatpush1.bf16.msra.mxu0 %v157
  %204 = vmatprep.subr.bf16.mxu0 0
  %205 = vmatpush1.bf16.msra.mxu0 %v158
  %206 = vmatprep.subr.bf16.mxu0 0
  %207 = vmatpush1.bf16.msra.mxu0 %v159
  %208 = vmatprep.mubr.bf16.mxu0 %v77
  %209 = vmatmul.mubr.bf16.gmra.mrb[0].mxu0 %v70
  %v210 = vpop.f32.mrb[0].mxu0
  %v211 = vadd.f32 %v53, %v210
  %v212 = vpop.f32.mrb[0].mxu0
  %v213 = vpop.f32.mrb[0].mxu0
  %v214 = vpop.f32.mrb[0].mxu0
  %215 = vdwg.mxu0
  %v216 = vpack.c.bf16 %v211, %v211
  %217 = vst [vmem:[%s3] sm:$0x1] %v216
  // Predicated region
  $region14: #{_lambda_.12} parent=0 // pred_check
    _
  $region15: #{_lambda_.12} parent=0 // pred_check_branch
    %219 = sbr.rel (0) target = $region17
  $region16: #{_lambda_.12} parent=0 // pred_region
    _
  $region17: #{_lambda_.12} parent=0 // pred_fallthru
    _
  // Predicated region
  $region18: #{_lambda_.12} parent=0 // pred_check
    _
  $region19: #{_lambda_.12} parent=0 // pred_check_branch
    %221 = sbr.rel (0) target = $region21
  $region20: #{_lambda_.12} parent=0 // pred_region
    _
  $region21: #{_lambda_.12} parent=0 // pred_fallthru
    _

// kernel: _lambda_.9
$region0: #{_lambda_.9}
  #allocation0 [shape = 'u32[]', space=smem, size = 0x4, offset = 0x4, fixed_abs, tag = 'smem constant byte address 0x4 - core index']
  #allocation1 [shape = 'u32[144,128]{1,0:T(1,128)}', space=vmem, size = 0x12000, scoped, tag = 'internal scratch']
  %s0 = inlined_call_operand.vmem [shape: bf16[2,9,16], index: 0, kind: input, shape index: {}]
  %s1 = inlined_call_operand.vmem [shape: bf16[2,9,16], index: 1, kind: input, shape index: {}]
  %s2 = inlined_call_operand.hbm [shape: bf16[3,16,128], index: 2, kind: input, shape index: {}]
  %s3 = inlined_call_operand.hbm [shape: f32[1,128], index: 3, kind: input, shape index: {}]
  %s4 = inlined_call_operand.vmem [shape: bf16[2,8,128], index: 4, kind: output, shape index: {}]
  %s5 = sld [smem:[#allocation0]]
  $region57: #{_lambda_.9} parent=0
    _
  %s7 = ssub.s32 1, %s5
  %s8 = scalar_select 0, %s7, %s5
  $region1: #{_lambda_.9} parent=0
    #allocation2 [shape = 'u8[12288]{0}', space=vmem, size = 0x3000, scoped, tag = 'input window, operand 2, single buffered']
    #allocation3 [shape = 's32[2]{0}', space=sflag, size = 0x8, scoped, tag = 'scoped memory for _lambda_.9']
    #allocation4 [shape = 'u8[512]{0}', space=vmem, size = 0x400, scoped, tag = 'input window, operand 3, single buffered']
    #allocation5 [shape = 's32[1]{0}', space=sflag, size = 0x4, scoped, tag = 'scoped memory for _lambda_.9']
    %9 = vsyncpa [#allocation3], 0
    %10 = vsyncpa [#allocation5], 0
    loop: start=0, step=1, limit=4
    $region2: #{_lambda_.9} parent=1 // loop_pre_header
      _
    $region3: #{_lambda_.9} parent=1 // loop_header
      %s12 = sphi 0, %s16
      %p13 = scmp.ge.s32.totalorder %s12, 4
      %s22 = sphi 0, %s24
      %s25 = sphi 0, %s22
      %s26 = sphi 0, %s25
      %s42 = sphi 0, %s26
      %s48 = sphi 0, %s50
      %s51 = sphi 0, %s48
      %s52 = sphi 0, %s51
      %s68 = sphi 0, %s52
      %s72 = sphi 0, %s72
      %s74 = sphi 0, %s72
      %s75 = sphi 0, %s74
      %s89 = sphi 0, %s75
      %s93 = sphi 0, %s93
      %s95 = sphi 0, %s93
      %s96 = sphi 0, %s95
      %s110 = sphi 0, %s96
      %s116 = sphi 0, %s118
      %s119 = sphi 0, %s116
      %s120 = sphi 0, %s119
      %s136 = sphi 0, %s120
    $region4: #{_lambda_.9} parent=1 // loop_header_branch
      %15 = sbr.rel (%p13) target = $region8
    $region5: #{_lambda_.9} parent=1 // loop_body
      %s17 = ssub.s32 %s12, 1
      %s18 = ssub.s32 %s12, 2
      %s19 = sadd.s32 %s12, 1
      %s20 = ssub.s32 %s12, %s19
      %p21 = scmp.eq.s32.totalorder %s20, 0
      %s23 = sadd.s32 %s22, 1
      %s24 = scalar_select %p21, %s22, %s23
      %p27 = pneg %p21
      %p28 = scmp.eq.s32.totalorder %s12, 1
      %p29 = por %p27, %p28
      %p30 = scmp.ne.s32.totalorder %s22, %s25
      %p31 = scmp.eq.s32.totalorder %s12, 0
      %p32 = por %p30, %p31
      %p33 = scmp.ne.s32.totalorder %s22, %s25
      %p34 = scmp.eq.s32.totalorder %s17, 1
      %p35 = por %p33, %p34
      %p36 = scmp.ne.s32.totalorder %s25, %s26
      %p37 = scmp.eq.s32.totalorder %s17, 0
      %p38 = por %p36, %p37
      %p39 = scmp.ne.s32.totalorder %s25, %s26
      %p40 = scmp.eq.s32.totalorder %s18, 1
      %p41 = por %p39, %p40
      %p43 = scmp.ne.s32.totalorder %s26, %s42
      %p44 = scmp.eq.s32.totalorder %s18, 0
      %p45 = por %p43, %p44
      %s46 = ssub.s32 %s12, %s19
      %p47 = scmp.eq.s32.totalorder %s46, 0
      %s49 = sadd.s32 %s48, 1
      %s50 = scalar_select %p47, %s48, %s49
      %p53 = pneg %p47
      %p54 = scmp.eq.s32.totalorder %s12, 1
      %p55 = por %p53, %p54
      %p56 = scmp.ne.s32.totalorder %s48, %s51
      %p57 = scmp.eq.s32.totalorder %s12, 0
      %p58 = por %p56, %p57
      %p59 = scmp.ne.s32.totalorder %s48, %s51
      %p60 = scmp.eq.s32.totalorder %s17, 1
      %p61 = por %p59, %p60
      %p62 = scmp.ne.s32.totalorder %s51, %s52
      %p63 = scmp.eq.s32.totalorder %s17, 0
      %p64 = por %p62, %p63
      %p65 = scmp.ne.s32.totalorder %s51, %s52
      %p66 = scmp.eq.s32.totalorder %s18, 1
      %p67 = por %p65, %p66
      %p69 = scmp.ne.s32.totalorder %s52, %s68
      %p70 = scmp.eq.s32.totalorder %s18, 0
      %p71 = por %p69, %p70
      %s73 = sadd.s32 %s72, 1
      %p76 = scmp.eq.s32.totalorder %s12, 1
      %p77 = scmp.ne.s32.totalorder %s72, %s74
      %p78 = scmp.eq.s32.totalorder %s12, 0
      %p79 = por %p77, %p78
      %p80 = scmp.ne.s32.totalorder %s72, %s74
      %p81 = scmp.eq.s32.totalorder %s17, 1
      %p82 = por %p80, %p81
      %p83 = scmp.ne.s32.totalorder %s74, %s75
      %p84 = scmp.eq.s32.totalorder %s17, 0
      %p85 = por %p83, %p84
      %p86 = scmp.ne.s32.totalorder %s74, %s75
      %p87 = scmp.eq.s32.totalorder %s18, 1
      %p88 = por %p86, %p87
      %p90 = scmp.ne.s32.totalorder %s75, %s89
      %p91 = scmp.eq.s32.totalorder %s18, 0
      %p92 = por %p90, %p91
      %s94 = sadd.s32 %s93, 1
      %p97 = scmp.eq.s32.totalorder %s12, 1
      %p98 = scmp.ne.s32.totalorder %s93, %s95
      %p99 = scmp.eq.s32.totalorder %s12, 0
      %p100 = por %p98, %p99
      %p101 = scmp.ne.s32.totalorder %s93, %s95
      %p102 = scmp.eq.s32.totalorder %s17, 1
      %p103 = por %p101, %p102
      %p104 = scmp.ne.s32.totalorder %s95, %s96
      %p105 = scmp.eq.s32.totalorder %s17, 0
      %p106 = por %p104, %p105
      %p107 = scmp.ne.s32.totalorder %s95, %s96
      %p108 = scmp.eq.s32.totalorder %s18, 1
      %p109 = por %p107, %p108
      %p111 = scmp.ne.s32.totalorder %s96, %s110
      %p112 = scmp.eq.s32.totalorder %s18, 0
      %p113 = por %p111, %p112
      %s114 = ssub.s32 %s12, %s19
      %p115 = scmp.eq.s32.totalorder %s114, 0
      %s117 = sadd.s32 %s116, 1
      %s118 = scalar_select %p115, %s116, %s117
      %p121 = pneg %p115
      %p122 = scmp.eq.s32.totalorder %s12, 1
      %p123 = por %p121, %p122
      %p124 = scmp.ne.s32.totalorder %s116, %s119
      %p125 = scmp.eq.s32.totalorder %s12, 0
      %p126 = por %p124, %p125
      %p127 = scmp.ne.s32.totalorder %s116, %s119
      %p128 = scmp.eq.s32.totalorder %s17, 1
      %p129 = por %p127, %p128
      %p130 = scmp.ne.s32.totalorder %s119, %s120
      %p131 = scmp.eq.s32.totalorder %s17, 0
      %p132 = por %p130, %p131
      %p133 = scmp.ne.s32.totalorder %s119, %s120
      %p134 = scmp.eq.s32.totalorder %s18, 1
      %p135 = por %p133, %p134
      %p137 = scmp.ne.s32.totalorder %s120, %s136
      %p138 = scmp.eq.s32.totalorder %s18, 0
      %p139 = por %p137, %p138
      %p140 = scmp.le.s32.totalorder 1, %s12
      %p141 = scmp.lt.s32.totalorder %s12, 3
      %p142 = pnand %p140, %p141
      %p143 = pneg %p142
      // Predicated region
      $region9: #{_lambda_.9} parent=5 // pred_check
        _
      $region10: #{_lambda_.9} parent=5 // pred_check_branch
        %145 = sbr.rel (%p142) target = $region12
      $region11: #{_lambda_.9} parent=5 // pred_region
        %s146 = ssub.s32 %s12, 1
        // Predicated region
        $region13: #{_lambda_.9} parent=11 // pred_check
          %p147 = pneg %p85
        $region14: #{_lambda_.9} parent=11 // pred_check_branch
          %149 = sbr.rel (%p147) target = $region16
        $region15: #{_lambda_.9} parent=11 // pred_region
          %s151 = ssub.s32 384, 384
          %152 = vsyncadd [#allocation3], %s151
          %s153 = sshll.u32 [#allocation2], 4
          %s154 = int_to_ptr.vmem [resolvable:$true] %s153
          %159 = dma.hbm_to_vmem [thread:$0]  %s2, 384, %s154, [#allocation3], 64, 64, 4
        $region16: #{_lambda_.9} parent=11 // pred_fallthru
          _
        // Predicated region
        $region17: #{_lambda_.9} parent=11 // pred_check
          %p160 = pneg %p106
        $region18: #{_lambda_.9} parent=11 // pred_check_branch
          %162 = sbr.rel (%p160) target = $region20
        $region19: #{_lambda_.9} parent=11 // pred_region
          %s164 = ssub.s32 16, 16
          %165 = vsyncadd [#allocation5], %s164
          %s167 = sshll.u32 [#allocation4], 4
          %s168 = int_to_ptr.vmem [resolvable:$true] %s167
          %170 = dma.hbm_to_vmem [thread:$0]  %s3, 16, %s168, [#allocation5]
        $region20: #{_lambda_.9} parent=11 // pred_fallthru
          _
      $region12: #{_lambda_.9} parent=5 // pred_fallthru
        _
      %p171 = scmp.lt.s32.totalorder %s12, 2
      // Predicated region
      $region21: #{_lambda_.9} parent=5 // pred_check
        %p172 = pneg %p171
      $region22: #{_lambda_.9} parent=5 // pred_check_branch
        %174 = sbr.rel (%p172) target = $region24
      $region23: #{_lambda_.9} parent=5 // pred_region
        // Predicated region
        $region25: #{_lambda_.9} parent=23 // pred_check
          %p175 = pneg %p32
        $region26: #{_lambda_.9} parent=23 // pred_check_branch
          %177 = sbr.rel (%p175) target = $region28
        $region27: #{_lambda_.9} parent=23 // pred_region
          %p178 = scmp.lt.s32.totalorder %s12, 1
          %s179 = scalar_select %p178, %s12, 1
          %s180 = smul.addr %s179, 2
          %s181 = smul.addr %s180, 4
          %s182 = scalar_lea.vmem %s0, %s181
        $region28: #{_lambda_.9} parent=23 // pred_fallthru
          _
        // Predicated region
        $region29: #{_lambda_.9} parent=23 // pred_check
          %p183 = pneg %p58
        $region30: #{_lambda_.9} parent=23 // pred_check_branch
          %185 = sbr.rel (%p183) target = $region32
        $region31: #{_lambda_.9} parent=23 // pred_region
          %p186 = scmp.lt.s32.totalorder %s12, 1
          %s187 = scalar_select %p186, %s12, 1
          %s188 = smul.addr %s187, 2
          %s189 = smul.addr %s188, 4
          %s190 = scalar_lea.vmem %s1, %s189
        $region32: #{_lambda_.9} parent=23 // pred_fallthru
          _
      $region24: #{_lambda_.9} parent=5 // pred_fallthru
        _
      %p191 = scmp.le.s32.totalorder 1, %s12
      %p192 = scmp.lt.s32.totalorder %s12, 3
      %p193 = pnand %p191, %p192
      %p194 = pneg %p193
      // Predicated region
      $region33: #{_lambda_.9} parent=5 // pred_check
        _
      $region34: #{_lambda_.9} parent=5 // pred_check_branch
        %196 = sbr.rel (%p193) target = $region36
      $region35: #{_lambda_.9} parent=5 // pred_region
        %s197 = ssub.s32 %s12, 1
        // Predicated region
        $region37: #{_lambda_.9} parent=35 // pred_check
          %p198 = pneg %p85
        $region38: #{_lambda_.9} parent=35 // pred_check_branch
          %200 = sbr.rel (%p198) target = $region40
        $region39: #{_lambda_.9} parent=35 // pred_region
          %201 = dma.done [#allocation3], 384
        $region40: #{_lambda_.9} parent=35 // pred_fallthru
          _
        // Predicated region
        $region41: #{_lambda_.9} parent=35 // pred_check
          %p202 = pneg %p106
        $region42: #{_lambda_.9} parent=35 // pred_check_branch
          %204 = sbr.rel (%p202) target = $region44
        $region43: #{_lambda_.9} parent=35 // pred_region
          %205 = dma.done [#allocation5], 16
        $region44: #{_lambda_.9} parent=35 // pred_fallthru
          _
        %p206 = scmp.lt.s32.totalorder %s17, 1
        %s207 = scalar_select %p206, %s17, 1
        %s208 = smul.addr %s207, 2
        %s209 = smul.addr %s208, 4
        %s210 = scalar_lea.vmem %s0, %s209
        %p211 = pneg %p38
        %p212 = pneg %p35
        %p213 = scmp.lt.s32.totalorder %s17, 1
        %s214 = scalar_select %p213, %s17, 1
        %s215 = smul.addr %s214, 2
        %s216 = smul.addr %s215, 4
        %s217 = scalar_lea.vmem %s1, %s216
        %p218 = pneg %p64
        %p219 = pneg %p61
        %p220 = pneg %p85
        %p221 = pneg %p82
        %p222 = pneg %p106
        %p223 = pneg %p103
        %p224 = pneg %p132
        %p225 = pneg %p129
        %p226 = scmp.lt.s32.totalorder %s17, 1
        %s227 = scalar_select %p226, %s17, 1
        %s228 = smul.addr %s227, 4
        %s229 = scalar_lea.vmem %s4, %s228
        %p230 = scmp.lt.s32.totalorder %s17, 1
        %s231 = scalar_select %p230, %s17, 1
        %s232 = smul.addr %s231, 2
        %s233 = smul.addr %s232, 4
        %s234 = scalar_lea.vmem %s0, %s233
        %p235 = scmp.lt.s32.totalorder %s17, 1
        %s236 = scalar_select %p235, %s17, 1
        %s237 = smul.addr %s236, 2
        %s238 = smul.addr %s237, 4
        %s239 = scalar_lea.vmem %s1, %s238
        %p240 = scmp.lt.s32.totalorder %s17, 1
        %s241 = scalar_select %p240, %s17, 1
        %s242 = smul.addr %s241, 4
        %s243 = scalar_lea.vmem %s4, %s242
        %v245 = vld [vmem:[%s234] sm:$0xf]
        %v246 = vld [vmem:[#allocation2] sm:$0xf]
        %v247 = vld [vmem:[#allocation2 + $0x4] sm:$0xf]
        %v248 = vld [vmem:[%s239] sm:$0xf]
        %s249 = scalar_lea.vmem [#allocation2], 8
        %v250 = vld [vmem:[%s249] sm:$0xf]
        %v251 = vld [vmem:[%s249 + $0x4] sm:$0xf]
        %v254 = vunpack.c.l.b16 %v250
        %v255 = vunpack.c.l.b16 %v251
        %v256 = vpack.c.b16 %v255, %v254
        %vm258 = vcmask 130048
        %v260 = vsel %vm258, %v248, 0
        %262 = vmatprep.subr.bf16.mxu0 0
        %263 = vmatpush1.bf16.msra.mxu0 %v256
        %264 = vmatprep.subr.bf16.mxu0 0
        %265 = vmatpush1.bf16.msra.mxu0 0
        %266 = vmatprep.subr.bf16.mxu0 0
        %267 = vmatpush1.bf16.msra.mxu0 0
        %268 = vmatprep.subr.bf16.mxu0 0
        %269 = vmatpush1.bf16.msra.mxu0 0
        %270 = vmatprep.subr.bf16.mxu0 0
        %271 = vmatpush1.bf16.msra.mxu0 0
        %272 = vmatprep.subr.bf16.mxu0 0
        %273 = vmatpush1.bf16.msra.mxu0 0
        %274 = vmatprep.subr.bf16.mxu0 0
        %275 = vmatpush1.bf16.msra.mxu0 0
        %276 = vmatprep.subr.bf16.mxu0 0
        %277 = vmatpush1.bf16.msra.mxu0 0
        %278 = vmatprep.subr.bf16.mxu0 0
        %279 = vmatpush1.bf16.msra.mxu0 0
        %280 = vmatprep.subr.bf16.mxu0 0
        %281 = vmatpush1.bf16.msra.mxu0 0
        %282 = vmatprep.subr.bf16.mxu0 0
        %283 = vmatpush1.bf16.msra.mxu0 0
        %284 = vmatprep.subr.bf16.mxu0 0
        %285 = vmatpush1.bf16.msra.mxu0 0
        %286 = vmatprep.subr.bf16.mxu0 0
        %287 = vmatpush1.bf16.msra.mxu0 0
        %288 = vmatprep.subr.bf16.mxu0 0
        %289 = vmatpush1.bf16.msra.mxu0 0
        %290 = vmatprep.subr.bf16.mxu0 0
        %291 = vmatpush1.bf16.msra.mxu0 0
        %292 = vmatprep.subr.bf16.mxu0 0
        %293 = vmatpush1.bf16.msra.mxu0 0
        %294 = vmatprep.mubr.bf16.mxu0 0
        %295 = vmatmul.mubr.bf16.gmra.mrb[0].mxu0 %v260
        %v296 = vpop.f32.mrb[0].mxu0
        %v297 = vadd.f32 0.0, %v296
        %v298 = vpop.f32.mrb[0].mxu0
        %v299 = vpop.f32.mrb[0].mxu0
        %v300 = vpop.f32.mrb[0].mxu0
        %301 = vdwg.mxu0
        %v304 = vunpack.c.l.b16 %v246
        %v305 = vunpack.c.l.b16 %v247
        %v306 = vpack.c.b16 %v305, %v304
        %v309 = vsel %vm258, %v245, 0
        %311 = vmatprep.subr.bf16.mxu0 0
        %312 = vmatpush1.bf16.msra.mxu0 %v306
        %313 = vmatprep.subr.bf16.mxu0 0
        %314 = vmatpush1.bf16.msra.mxu0 0
        %315 = vmatprep.subr.bf16.mxu0 0
        %316 = vmatpush1.bf16.msra.mxu0 0
        %317 = vmatprep.subr.bf16.mxu0 0
        %318 = vmatpush1.bf16.msra.mxu0 0
        %319 = vmatprep.subr.bf16.mxu0 0
        %320 = vmatpush1.bf16.msra.mxu0 0
        %321 = vmatprep.subr.bf16.mxu0 0
        %322 = vmatpush1.bf16.msra.mxu0 0
        %323 = vmatprep.subr.bf16.mxu0 0
        %324 = vmatpush1.bf16.msra.mxu0 0
        %325 = vmatprep.subr.bf16.mxu0 0
        %326 = vmatpush1.bf16.msra.mxu0 0
        %327 = vmatprep.subr.bf16.mxu0 0
        %328 = vmatpush1.bf16.msra.mxu0 0
        %329 = vmatprep.subr.bf16.mxu0 0
        %330 = vmatpush1.bf16.msra.mxu0 0
        %331 = vmatprep.subr.bf16.mxu0 0
        %332 = vmatpush1.bf16.msra.mxu0 0
        %333 = vmatprep.subr.bf16.mxu0 0
        %334 = vmatpush1.bf16.msra.mxu0 0
        %335 = vmatprep.subr.bf16.mxu0 0
        %336 = vmatpush1.bf16.msra.mxu0 0
        %337 = vmatprep.subr.bf16.mxu0 0
        %338 = vmatpush1.bf16.msra.mxu0 0
        %339 = vmatprep.subr.bf16.mxu0 0
        %340 = vmatpush1.bf16.msra.mxu0 0
        %341 = vmatprep.subr.bf16.mxu0 0
        %342 = vmatpush1.bf16.msra.mxu0 0
        %343 = vmatprep.mubr.bf16.mxu0 0
        %344 = vmatmul.mubr.bf16.gmra.mrb[0].mxu0 %v309
        %v345 = vpop.f32.mrb[0].mxu0
        %v346 = vadd.f32 %v297, %v345
        %v347 = vpop.f32.mrb[0].mxu0
        %v348 = vpop.f32.mrb[0].mxu0
        %v349 = vpop.f32.mrb[0].mxu0
        %350 = vdwg.mxu0
        %v351 = vld [vmem:[%s234] sm:$0xf]
        %v352 = vld [vmem:[%s234 + $0x4] sm:$0x1]
        %s353 = scalar_lea.vmem [#allocation2], 16
        %v354 = vld [vmem:[%s353] sm:$0xf]
        %v355 = vld [vmem:[%s353 + $0x4] sm:$0xf]
        %v358 = vunpack.c.l.b16 %v351
        %v359 = vunpack.c.l.b16 %v352
        %v360 = vpack.c.b16 %v359, %v358
        %v362 = vshrl.u32 %v360, 16
        %v364 = vshll.u32 %v360, 16
        %v366 = vrot.slane %v364, 1
        %v367 = vor.u32 %v362, %v366
        %v370 = vunpack.c.l.b16 %v354
        %v371 = vunpack.c.l.b16 %v355
        %v372 = vpack.c.b16 %v371, %v370
        %v375 = vsel %vm258, %v367, 0
        %377 = vmatprep.subr.bf16.mxu0 0
        %378 = vmatpush1.bf16.msra.mxu0 %v372
        %379 = vmatprep.subr.bf16.mxu0 0
        %380 = vmatpush1.bf16.msra.mxu0 0
        %381 = vmatprep.subr.bf16.mxu0 0
        %382 = vmatpush1.bf16.msra.mxu0 0
        %383 = vmatprep.subr.bf16.mxu0 0
        %384 = vmatpush1.bf16.msra.mxu0 0
        %385 = vmatprep.subr.bf16.mxu0 0
        %386 = vmatpush1.bf16.msra.mxu0 0
        %387 = vmatprep.subr.bf16.mxu0 0
        %388 = vmatpush1.bf16.msra.mxu0 0
        %389 = vmatprep.subr.bf16.mxu0 0
        %390 = vmatpush1.bf16.msra.mxu0 0
        %391 = vmatprep.subr.bf16.mxu0 0
        %392 = vmatpush1.bf16.msra.mxu0 0
        %393 = vmatprep.subr.bf16.mxu0 0
        %394 = vmatpush1.bf16.msra.mxu0 0
        %395 = vmatprep.subr.bf16.mxu0 0
        %396 = vmatpush1.bf16.msra.mxu0 0
        %397 = vmatprep.subr.bf16.mxu0 0
        %398 = vmatpush1.bf16.msra.mxu0 0
        %399 = vmatprep.subr.bf16.mxu0 0
        %400 = vmatpush1.bf16.msra.mxu0 0
        %401 = vmatprep.subr.bf16.mxu0 0
        %402 = vmatpush1.bf16.msra.mxu0 0
        %403 = vmatprep.subr.bf16.mxu0 0
        %404 = vmatpush1.bf16.msra.mxu0 0
        %405 = vmatprep.subr.bf16.mxu0 0
        %406 = vmatpush1.bf16.msra.mxu0 0
        %407 = vmatprep.subr.bf16.mxu0 0
        %408 = vmatpush1.bf16.msra.mxu0 0
        %409 = vmatprep.mubr.bf16.mxu0 0
        %410 = vmatmul.mubr.bf16.gmra.mrb[0].mxu0 %v375
        %v411 = vpop.f32.mrb[0].mxu0
        %v412 = vadd.f32 0.0, %v411
        %v413 = vpop.f32.mrb[0].mxu0
        %v414 = vpop.f32.mrb[0].mxu0
        %v415 = vpop.f32.mrb[0].mxu0
        %416 = vdwg.mxu0
        %v417 = vadd.f32 %v346, %v412
        %v418 = vld [vmem:[#allocation4] sm:$0x1]
        %v420 = vlaneseq
        %v421 = vshrl.u32 %v420, 7
        %v422 = vsub.s32 0, %v421
        %v423 = vrot.slane %v418, %v422
        %v425 = vadd.f32 %v417, %v423
        %v426 = vmax.f32 %v425, 0.0
        %v427 = vpack.c.bf16 %v426, %v426
        %428 = vst [vmem:[%s243] sm:$0xf] %v427
        %p429 = scmp.lt.s32.totalorder %s17, 1
        %s430 = scalar_select %p429, %s17, 1
        %s431 = smul.addr %s430, 4
        %s432 = scalar_lea.vmem %s4, %s431
        // Predicated region
        $region45: #{_lambda_.9} parent=35 // pred_check
          %p433 = pneg %p129
        $region46: #{_lambda_.9} parent=35 // pred_check_branch
          %435 = sbr.rel (%p433) target = $region48
        $region47: #{_lambda_.9} parent=35 // pred_region
          _
        $region48: #{_lambda_.9} parent=35 // pred_fallthru
          _
      $region36: #{_lambda_.9} parent=5 // pred_fallthru
        _
      %p436 = scmp.le.s32.totalorder 2, %s12
      // Predicated region
      $region49: #{_lambda_.9} parent=5 // pred_check
        %p437 = pneg %p436
      $region50: #{_lambda_.9} parent=5 // pred_check_branch
        %439 = sbr.rel (%p437) target = $region52
      $region51: #{_lambda_.9} parent=5 // pred_region
        %s440 = ssub.s32 %s12, 2
        // Predicated region
        $region53: #{_lambda_.9} parent=51 // pred_check
          %p441 = pneg %p135
        $region54: #{_lambda_.9} parent=51 // pred_check_branch
          %443 = sbr.rel (%p441) target = $region56
        $region55: #{_lambda_.9} parent=51 // pred_region
          %p444 = scmp.lt.s32.totalorder %s18, 1
          %s445 = scalar_select %p444, %s18, 1
          %s446 = smul.addr %s445, 4
          %s447 = scalar_lea.vmem %s4, %s446
        $region56: #{_lambda_.9} parent=51 // pred_fallthru
          _
      $region52: #{_lambda_.9} parent=5 // pred_fallthru
        _
    $region6: #{_lambda_.9} parent=1 // loop_footer
      %s16 = sadd.s32 1, %s12
    $region7: #{_lambda_.9} parent=1 // loop_footer_branch
      %11 = sbr.rel target = $region3
    $region8: #{_lambda_.9} parent=1 // loop_exit
      _
    %448 = vsyncpa [#allocation3], 1
    %s449 = scalar_lea.sflag [#allocation3], 1
    %450 = vsyncpa %s449, 1
    %451 = vsyncpa [#allocation5], 1

// kernel: _lambda_.10
$region0: #{_lambda_.10}
  #allocation0 [shape = 'u32[]', space=smem, size = 0x4, offset = 0x4, fixed_abs, tag = 'smem constant byte address 0x4 - core index']
  #allocation1 [shape = 'u32[144,128]{1,0:T(1,128)}', space=vmem, size = 0x12000, scoped, tag = 'internal scratch']
  %s0 = inlined_call_operand.vmem [shape: bf16[2,5,128], index: 0, kind: input, shape index: {}]
  %s1 = inlined_call_operand.vmem [shape: bf16[2,5,128], index: 1, kind: input, shape index: {}]
  %s2 = inlined_call_operand.vmem [shape: bf16[3,128,128], index: 2, kind: input, shape index: {}]
  %s3 = inlined_call_operand.vmem [shape: f32[1,128], index: 3, kind: input, shape index: {}]
  %s4 = inlined_call_operand.vmem [shape: bf16[2,4,128], index: 4, kind: output, shape index: {}]
  %s5 = sld [smem:[#allocation0]]
  $region49: #{_lambda_.10} parent=0
    _
  %s7 = ssub.s32 1, %s5
  %s8 = scalar_select 0, %s7, %s5
  loop: start=0, step=1, limit=4
  $region2: #{_lambda_.10} parent=0 // loop_pre_header
    _
  $region3: #{_lambda_.10} parent=0 // loop_header
    %s10 = sphi 0, %s14
    %p11 = scmp.ge.s32.totalorder %s10, 4
    %s20 = sphi 0, %s22
    %s23 = sphi 0, %s20
    %s24 = sphi 0, %s23
    %s40 = sphi 0, %s24
    %s46 = sphi 0, %s48
    %s49 = sphi 0, %s46
    %s50 = sphi 0, %s49
    %s66 = sphi 0, %s50
    %s70 = sphi 0, %s70
    %s72 = sphi 0, %s70
    %s73 = sphi 0, %s72
    %s87 = sphi 0, %s73
    %s91 = sphi 0, %s91
    %s93 = sphi 0, %s91
    %s94 = sphi 0, %s93
    %s108 = sphi 0, %s94
    %s114 = sphi 0, %s116
    %s117 = sphi 0, %s114
    %s118 = sphi 0, %s117
    %s134 = sphi 0, %s118
  $region4: #{_lambda_.10} parent=0 // loop_header_branch
    %13 = sbr.rel (%p11) target = $region8
  $region5: #{_lambda_.10} parent=0 // loop_body
    %s15 = ssub.s32 %s10, 1
    %s16 = ssub.s32 %s10, 2
    %s17 = sadd.s32 %s10, 1
    %s18 = ssub.s32 %s10, %s17
    %p19 = scmp.eq.s32.totalorder %s18, 0
    %s21 = sadd.s32 %s20, 1
    %s22 = scalar_select %p19, %s20, %s21
    %p25 = pneg %p19
    %p26 = scmp.eq.s32.totalorder %s10, 1
    %p27 = por %p25, %p26
    %p28 = scmp.ne.s32.totalorder %s20, %s23
    %p29 = scmp.eq.s32.totalorder %s10, 0
    %p30 = por %p28, %p29
    %p31 = scmp.ne.s32.totalorder %s20, %s23
    %p32 = scmp.eq.s32.totalorder %s15, 1
    %p33 = por %p31, %p32
    %p34 = scmp.ne.s32.totalorder %s23, %s24
    %p35 = scmp.eq.s32.totalorder %s15, 0
    %p36 = por %p34, %p35
    %p37 = scmp.ne.s32.totalorder %s23, %s24
    %p38 = scmp.eq.s32.totalorder %s16, 1
    %p39 = por %p37, %p38
    %p41 = scmp.ne.s32.totalorder %s24, %s40
    %p42 = scmp.eq.s32.totalorder %s16, 0
    %p43 = por %p41, %p42
    %s44 = ssub.s32 %s10, %s17
    %p45 = scmp.eq.s32.totalorder %s44, 0
    %s47 = sadd.s32 %s46, 1
    %s48 = scalar_select %p45, %s46, %s47
    %p51 = pneg %p45
    %p52 = scmp.eq.s32.totalorder %s10, 1
    %p53 = por %p51, %p52
    %p54 = scmp.ne.s32.totalorder %s46, %s49
    %p55 = scmp.eq.s32.totalorder %s10, 0
    %p56 = por %p54, %p55
    %p57 = scmp.ne.s32.totalorder %s46, %s49
    %p58 = scmp.eq.s32.totalorder %s15, 1
    %p59 = por %p57, %p58
    %p60 = scmp.ne.s32.totalorder %s49, %s50
    %p61 = scmp.eq.s32.totalorder %s15, 0
    %p62 = por %p60, %p61
    %p63 = scmp.ne.s32.totalorder %s49, %s50
    %p64 = scmp.eq.s32.totalorder %s16, 1
    %p65 = por %p63, %p64
    %p67 = scmp.ne.s32.totalorder %s50, %s66
    %p68 = scmp.eq.s32.totalorder %s16, 0
    %p69 = por %p67, %p68
    %s71 = sadd.s32 %s70, 1
    %p74 = scmp.eq.s32.totalorder %s10, 1
    %p75 = scmp.ne.s32.totalorder %s70, %s72
    %p76 = scmp.eq.s32.totalorder %s10, 0
    %p77 = por %p75, %p76
    %p78 = scmp.ne.s32.totalorder %s70, %s72
    %p79 = scmp.eq.s32.totalorder %s15, 1
    %p80 = por %p78, %p79
    %p81 = scmp.ne.s32.totalorder %s72, %s73
    %p82 = scmp.eq.s32.totalorder %s15, 0
    %p83 = por %p81, %p82
    %p84 = scmp.ne.s32.totalorder %s72, %s73
    %p85 = scmp.eq.s32.totalorder %s16, 1
    %p86 = por %p84, %p85
    %p88 = scmp.ne.s32.totalorder %s73, %s87
    %p89 = scmp.eq.s32.totalorder %s16, 0
    %p90 = por %p88, %p89
    %s92 = sadd.s32 %s91, 1
    %p95 = scmp.eq.s32.totalorder %s10, 1
    %p96 = scmp.ne.s32.totalorder %s91, %s93
    %p97 = scmp.eq.s32.totalorder %s10, 0
    %p98 = por %p96, %p97
    %p99 = scmp.ne.s32.totalorder %s91, %s93
    %p100 = scmp.eq.s32.totalorder %s15, 1
    %p101 = por %p99, %p100
    %p102 = scmp.ne.s32.totalorder %s93, %s94
    %p103 = scmp.eq.s32.totalorder %s15, 0
    %p104 = por %p102, %p103
    %p105 = scmp.ne.s32.totalorder %s93, %s94
    %p106 = scmp.eq.s32.totalorder %s16, 1
    %p107 = por %p105, %p106
    %p109 = scmp.ne.s32.totalorder %s94, %s108
    %p110 = scmp.eq.s32.totalorder %s16, 0
    %p111 = por %p109, %p110
    %s112 = ssub.s32 %s10, %s17
    %p113 = scmp.eq.s32.totalorder %s112, 0
    %s115 = sadd.s32 %s114, 1
    %s116 = scalar_select %p113, %s114, %s115
    %p119 = pneg %p113
    %p120 = scmp.eq.s32.totalorder %s10, 1
    %p121 = por %p119, %p120
    %p122 = scmp.ne.s32.totalorder %s114, %s117
    %p123 = scmp.eq.s32.totalorder %s10, 0
    %p124 = por %p122, %p123
    %p125 = scmp.ne.s32.totalorder %s114, %s117
    %p126 = scmp.eq.s32.totalorder %s15, 1
    %p127 = por %p125, %p126
    %p128 = scmp.ne.s32.totalorder %s117, %s118
    %p129 = scmp.eq.s32.totalorder %s15, 0
    %p130 = por %p128, %p129
    %p131 = scmp.ne.s32.totalorder %s117, %s118
    %p132 = scmp.eq.s32.totalorder %s16, 1
    %p133 = por %p131, %p132
    %p135 = scmp.ne.s32.totalorder %s118, %s134
    %p136 = scmp.eq.s32.totalorder %s16, 0
    %p137 = por %p135, %p136
    %p138 = scmp.le.s32.totalorder 1, %s10
    %p139 = scmp.lt.s32.totalorder %s10, 3
    %p140 = pnand %p138, %p139
    %p141 = pneg %p140
    // Predicated region
    $region9: #{_lambda_.10} parent=5 // pred_check
      _
    $region10: #{_lambda_.10} parent=5 // pred_check_branch
      %143 = sbr.rel (%p140) target = $region12
    $region11: #{_lambda_.10} parent=5 // pred_region
      %s144 = ssub.s32 %s10, 1
      // Predicated region
      $region13: #{_lambda_.10} parent=11 // pred_check
        %p145 = pneg %p83
      $region14: #{_lambda_.10} parent=11 // pred_check_branch
        %147 = sbr.rel (%p145) target = $region16
      $region15: #{_lambda_.10} parent=11 // pred_region
        _
      $region16: #{_lambda_.10} parent=11 // pred_fallthru
        _
      // Predicated region
      $region17: #{_lambda_.10} parent=11 // pred_check
        %p148 = pneg %p104
      $region18: #{_lambda_.10} parent=11 // pred_check_branch
        %150 = sbr.rel (%p148) target = $region20
      $region19: #{_lambda_.10} parent=11 // pred_region
        _
      $region20: #{_lambda_.10} parent=11 // pred_fallthru
        _
    $region12: #{_lambda_.10} parent=5 // pred_fallthru
      _
    %p151 = scmp.lt.s32.totalorder %s10, 2
    // Predicated region
    $region21: #{_lambda_.10} parent=5 // pred_check
      %p152 = pneg %p151
    $region22: #{_lambda_.10} parent=5 // pred_check_branch
      %154 = sbr.rel (%p152) target = $region24
    $region23: #{_lambda_.10} parent=5 // pred_region
      // Predicated region
      $region25: #{_lambda_.10} parent=23 // pred_check
        %p155 = pneg %p30
      $region26: #{_lambda_.10} parent=23 // pred_check_branch
        %157 = sbr.rel (%p155) target = $region28
      $region27: #{_lambda_.10} parent=23 // pred_region
        %p158 = scmp.lt.s32.totalorder %s10, 1
        %s159 = scalar_select %p158, %s10, 1
        %s160 = smul.addr %s159, 4
        %s161 = scalar_lea.vmem %s0, %s160
      $region28: #{_lambda_.10} parent=23 // pred_fallthru
        _
      // Predicated region
      $region29: #{_lambda_.10} parent=23 // pred_check
        %p162 = pneg %p56
      $region30: #{_lambda_.10} parent=23 // pred_check_branch
        %164 = sbr.rel (%p162) target = $region32
      $region31: #{_lambda_.10} parent=23 // pred_region
        %p165 = scmp.lt.s32.totalorder %s10, 1
        %s166 = scalar_select %p165, %s10, 1
        %s167 = smul.addr %s166, 4
        %s168 = scalar_lea.vmem %s1, %s167
      $region32: #{_lambda_.10} parent=23 // pred_fallthru
        _
    $region24: #{_lambda_.10} parent=5 // pred_fallthru
      _
    %p169 = scmp.le.s32.totalorder 1, %s10
    %p170 = scmp.lt.s32.totalorder %s10, 3
    %p171 = pnand %p169, %p170
    %p172 = pneg %p171
    // Predicated region
    $region33: #{_lambda_.10} parent=5 // pred_check
      _
    $region34: #{_lambda_.10} parent=5 // pred_check_branch
      %174 = sbr.rel (%p171) target = $region36
    $region35: #{_lambda_.10} parent=5 // pred_region
      %s175 = ssub.s32 %s10, 1
      %p176 = scmp.lt.s32.totalorder %s15, 1
      %s177 = scalar_select %p176, %s15, 1
      %s178 = smul.addr %s177, 4
      %s179 = scalar_lea.vmem %s0, %s178
      %p180 = pneg %p36
      %p181 = pneg %p33
      %p182 = scmp.lt.s32.totalorder %s15, 1
      %s183 = scalar_select %p182, %s15, 1
      %s184 = smul.addr %s183, 4
      %s185 = scalar_lea.vmem %s1, %s184
      %p186 = pneg %p62
      %p187 = pneg %p59
      %p188 = pneg %p83
      %p189 = pneg %p80
      %p190 = pneg %p104
      %p191 = pneg %p101
      %p192 = pneg %p130
      %p193 = pneg %p127
      %p194 = scmp.lt.s32.totalorder %s15, 1
      %s195 = scalar_select %p194, %s15, 1
      %s196 = smul.addr %s195, 2
      %s197 = scalar_lea.vmem %s4, %s196
      %p198 = scmp.lt.s32.totalorder %s15, 1
      %s199 = scalar_select %p198, %s15, 1
      %s200 = smul.addr %s199, 4
      %s201 = scalar_lea.vmem %s0, %s200
      %p202 = scmp.lt.s32.totalorder %s15, 1
      %s203 = scalar_select %p202, %s15, 1
      %s204 = smul.addr %s203, 4
      %s205 = scalar_lea.vmem %s1, %s204
      %p206 = scmp.lt.s32.totalorder %s15, 1
      %s207 = scalar_select %p206, %s15, 1
      %s208 = smul.addr %s207, 2
      %s209 = scalar_lea.vmem %s4, %s208
      %v211 = vld [vmem:[%s201] sm:$0x3]
      %v212 = vld [vmem:[%s2] sm:$0xf]
      %v213 = vld [vmem:[%s2 + $0x4] sm:$0xf]
      %v214 = vld [vmem:[%s2 + $0x8] sm:$0xf]
      %v215 = vld [vmem:[%s2 + $0xc] sm:$0xf]
      %v216 = vld [vmem:[%s2 + $0x10] sm:$0xf]
      %v217 = vld [vmem:[%s2 + $0x14] sm:$0xf]
      %v218 = vld [vmem:[%s2 + $0x18] sm:$0xf]
      %v219 = vld [vmem:[%s2 + $0x1c] sm:$0xf]
      %v220 = vld [vmem:[%s2 + $0x20] sm:$0xf]
      %v221 = vld [vmem:[%s2 + $0x24] sm:$0xf]
      %v222 = vld [vmem:[%s2 + $0x28] sm:$0xf]
      %v223 = vld [vmem:[%s2 + $0x2c] sm:$0xf]
      %v224 = vld [vmem:[%s2 + $0x30] sm:$0xf]
      %v225 = vld [vmem:[%s2 + $0x34] sm:$0xf]
      %v226 = vld [vmem:[%s2 + $0x38] sm:$0xf]
      %v227 = vld [vmem:[%s2 + $0x3c] sm:$0xf]
      %v228 = vld [vmem:[%s205] sm:$0x3]
      %s229 = scalar_lea.vmem %s2, 64
      %v230 = vld [vmem:[%s229] sm:$0xf]
      %v231 = vld [vmem:[%s229 + $0x4] sm:$0xf]
      %v232 = vld [vmem:[%s229 + $0x8] sm:$0xf]
      %v233 = vld [vmem:[%s229 + $0xc] sm:$0xf]
      %v234 = vld [vmem:[%s229 + $0x10] sm:$0xf]
      %v235 = vld [vmem:[%s229 + $0x14] sm:$0xf]
      %v236 = vld [vmem:[%s229 + $0x18] sm:$0xf]
      %v237 = vld [vmem:[%s229 + $0x1c] sm:$0xf]
      %v238 = vld [vmem:[%s229 + $0x20] sm:$0xf]
      %v239 = vld [vmem:[%s229 + $0x24] sm:$0xf]
      %v240 = vld [vmem:[%s229 + $0x28] sm:$0xf]
      %v241 = vld [vmem:[%s229 + $0x2c] sm:$0xf]
      %v242 = vld [vmem:[%s229 + $0x30] sm:$0xf]
      %v243 = vld [vmem:[%s229 + $0x34] sm:$0xf]
      %v244 = vld [vmem:[%s229 + $0x38] sm:$0xf]
      %v245 = vld [vmem:[%s229 + $0x3c] sm:$0xf]
      %v262 = vunpack.c.l.b16 %v230
      %v263 = vunpack.c.l.b16 %v231
      %v264 = vunpack.c.l.b16 %v232
      %v265 = vunpack.c.l.b16 %v233
      %v266 = vunpack.c.l.b16 %v234
      %v267 = vunpack.c.l.b16 %v235
      %v268 = vunpack.c.l.b16 %v236
      %v269 = vunpack.c.l.b16 %v237
      %v270 = vunpack.c.l.b16 %v238
      %v271 = vunpack.c.l.b16 %v239
      %v272 = vunpack.c.l.b16 %v240
      %v273 = vunpack.c.l.b16 %v241
      %v274 = vunpack.c.l.b16 %v242
      %v275 = vunpack.c.l.b16 %v243
      %v276 = vunpack.c.l.b16 %v244
      %v277 = vunpack.c.l.b16 %v245
      %v278 = vpack.c.b16 %v263, %v262
      %v279 = vpack.c.b16 %v265, %v264
      %v280 = vpack.c.b16 %v267, %v266
      %v281 = vpack.c.b16 %v269, %v268
      %v282 = vpack.c.b16 %v271, %v270
      %v283 = vpack.c.b16 %v273, %v272
      %v284 = vpack.c.b16 %v275, %v274
      %v285 = vpack.c.b16 %v277, %v276
      %294 = vmatprep.subr.bf16.mxu0 0
      %295 = vmatpush1.bf16.msra.mxu0 %v278
      %296 = vmatprep.subr.bf16.mxu0 0
      %297 = vmatpush1.bf16.msra.mxu0 %v279
      %298 = vmatprep.subr.bf16.mxu0 0
      %299 = vmatpush1.bf16.msra.mxu0 %v280
      %300 = vmatprep.subr.bf16.mxu0 0
      %301 = vmatpush1.bf16.msra.mxu0 %v281
      %302 = vmatprep.subr.bf16.mxu0 0
      %303 = vmatpush1.bf16.msra.mxu0 %v282
      %304 = vmatprep.subr.bf16.mxu0 0
      %305 = vmatpush1.bf16.msra.mxu0 %v283
      %306 = vmatprep.subr.bf16.mxu0 0
      %307 = vmatpush1.bf16.msra.mxu0 %v284
      %308 = vmatprep.subr.bf16.mxu0 0
      %309 = vmatpush1.bf16.msra.mxu0 %v285
      %310 = vmatprep.subr.bf16.mxu0 0
      %311 = vmatpush1.bf16.msra.mxu0 0
      %312 = vmatprep.subr.bf16.mxu0 0
      %313 = vmatpush1.bf16.msra.mxu0 0
      %314 = vmatprep.subr.bf16.mxu0 0
      %315 = vmatpush1.bf16.msra.mxu0 0
      %316 = vmatprep.subr.bf16.mxu0 0
      %317 = vmatpush1.bf16.msra.mxu0 0
      %318 = vmatprep.subr.bf16.mxu0 0
      %319 = vmatpush1.bf16.msra.mxu0 0
      %320 = vmatprep.subr.bf16.mxu0 0
      %321 = vmatpush1.bf16.msra.mxu0 0
      %322 = vmatprep.subr.bf16.mxu0 0
      %323 = vmatpush1.bf16.msra.mxu0 0
      %324 = vmatprep.subr.bf16.mxu0 0
      %325 = vmatpush1.bf16.msra.mxu0 0
      %326 = vmatprep.mubr.bf16.mxu0 0
      %327 = vmatmul.mubr.bf16.gmra.mrb[0].mxu0 %v228
      %v328 = vpop.f32.mrb[0].mxu0
      %v329 = vadd.f32 0.0, %v328
      %v330 = vpop.f32.mrb[0].mxu0
      %v331 = vpop.f32.mrb[0].mxu0
      %v332 = vpop.f32.mrb[0].mxu0
      %333 = vdwg.mxu0
      %v350 = vunpack.c.l.b16 %v212
      %v351 = vunpack.c.l.b16 %v213
      %v352 = vunpack.c.l.b16 %v214
      %v353 = vunpack.c.l.b16 %v215
      %v354 = vunpack.c.l.b16 %v216
      %v355 = vunpack.c.l.b16 %v217
      %v356 = vunpack.c.l.b16 %v218
      %v357 = vunpack.c.l.b16 %v219
      %v358 = vunpack.c.l.b16 %v220
      %v359 = vunpack.c.l.b16 %v221
      %v360 = vunpack.c.l.b16 %v222
      %v361 = vunpack.c.l.b16 %v223
      %v362 = vunpack.c.l.b16 %v224
      %v363 = vunpack.c.l.b16 %v225
      %v364 = vunpack.c.l.b16 %v226
      %v365 = vunpack.c.l.b16 %v227
      %v366 = vpack.c.b16 %v351, %v350
      %v367 = vpack.c.b16 %v353, %v352
      %v368 = vpack.c.b16 %v355, %v354
      %v369 = vpack.c.b16 %v357, %v356
      %v370 = vpack.c.b16 %v359, %v358
      %v371 = vpack.c.b16 %v361, %v360
      %v372 = vpack.c.b16 %v363, %v362
      %v373 = vpack.c.b16 %v365, %v364
      %382 = vmatprep.subr.bf16.mxu0 0
      %383 = vmatpush1.bf16.msra.mxu0 %v366
      %384 = vmatprep.subr.bf16.mxu0 0
      %385 = vmatpush1.bf16.msra.mxu0 %v367
      %386 = vmatprep.subr.bf16.mxu0 0
      %387 = vmatpush1.bf16.msra.mxu0 %v368
      %388 = vmatprep.subr.bf16.mxu0 0
      %389 = vmatpush1.bf16.msra.mxu0 %v369
      %390 = vmatprep.subr.bf16.mxu0 0
      %391 = vmatpush1.bf16.msra.mxu0 %v370
      %392 = vmatprep.subr.bf16.mxu0 0
      %393 = vmatpush1.bf16.msra.mxu0 %v371
      %394 = vmatprep.subr.bf16.mxu0 0
      %395 = vmatpush1.bf16.msra.mxu0 %v372
      %396 = vmatprep.subr.bf16.mxu0 0
      %397 = vmatpush1.bf16.msra.mxu0 %v373
      %398 = vmatprep.subr.bf16.mxu0 0
      %399 = vmatpush1.bf16.msra.mxu0 0
      %400 = vmatprep.subr.bf16.mxu0 0
      %401 = vmatpush1.bf16.msra.mxu0 0
      %402 = vmatprep.subr.bf16.mxu0 0
      %403 = vmatpush1.bf16.msra.mxu0 0
      %404 = vmatprep.subr.bf16.mxu0 0
      %405 = vmatpush1.bf16.msra.mxu0 0
      %406 = vmatprep.subr.bf16.mxu0 0
      %407 = vmatpush1.bf16.msra.mxu0 0
      %408 = vmatprep.subr.bf16.mxu0 0
      %409 = vmatpush1.bf16.msra.mxu0 0
      %410 = vmatprep.subr.bf16.mxu0 0
      %411 = vmatpush1.bf16.msra.mxu0 0
      %412 = vmatprep.subr.bf16.mxu0 0
      %413 = vmatpush1.bf16.msra.mxu0 0
      %414 = vmatprep.mubr.bf16.mxu0 0
      %415 = vmatmul.mubr.bf16.gmra.mrb[0].mxu0 %v211
      %v416 = vpop.f32.mrb[0].mxu0
      %v417 = vadd.f32 %v329, %v416
      %v418 = vpop.f32.mrb[0].mxu0
      %v419 = vpop.f32.mrb[0].mxu0
      %v420 = vpop.f32.mrb[0].mxu0
      %421 = vdwg.mxu0
      %v422 = vld [vmem:[%s201] sm:$0x7]
      %s423 = scalar_lea.vmem %s2, 128
      %v424 = vld [vmem:[%s423] sm:$0xf]
      %v425 = vld [vmem:[%s423 + $0x4] sm:$0xf]
      %v426 = vld [vmem:[%s423 + $0x8] sm:$0xf]
      %v427 = vld [vmem:[%s423 + $0xc] sm:$0xf]
      %v428 = vld [vmem:[%s423 + $0x10] sm:$0xf]
      %v429 = vld [vmem:[%s423 + $0x14] sm:$0xf]
      %v430 = vld [vmem:[%s423 + $0x18] sm:$0xf]
      %v431 = vld [vmem:[%s423 + $0x1c] sm:$0xf]
      %v432 = vld [vmem:[%s423 + $0x20] sm:$0xf]
      %v433 = vld [vmem:[%s423 + $0x24] sm:$0xf]
      %v434 = vld [vmem:[%s423 + $0x28] sm:$0xf]
      %v435 = vld [vmem:[%s423 + $0x2c] sm:$0xf]
      %v436 = vld [vmem:[%s423 + $0x30] sm:$0xf]
      %v437 = vld [vmem:[%s423 + $0x34] sm:$0xf]
      %v438 = vld [vmem:[%s423 + $0x38] sm:$0xf]
      %v439 = vld [vmem:[%s423 + $0x3c] sm:$0xf]
      %v441 = vunpack.c.l.b16 %v422
      %v442 = vpack.c.b16 %v441, %v441
      %v444 = vshrl.u32 %v442, 16
      %v446 = vshll.u32 %v442, 16
      %v448 = vrot.slane %v446, 1
      %v449 = vor.u32 %v444, %v448
      %v467 = vunpack.c.l.b16 %v424
      %v468 = vunpack.c.l.b16 %v425
      %v469 = vunpack.c.l.b16 %v426
      %v470 = vunpack.c.l.b16 %v427
      %v471 = vunpack.c.l.b16 %v428
      %v472 = vunpack.c.l.b16 %v429
      %v473 = vunpack.c.l.b16 %v430
      %v474 = vunpack.c.l.b16 %v431
      %v475 = vunpack.c.l.b16 %v432
      %v476 = vunpack.c.l.b16 %v433
      %v477 = vunpack.c.l.b16 %v434
      %v478 = vunpack.c.l.b16 %v435
      %v479 = vunpack.c.l.b16 %v436
      %v480 = vunpack.c.l.b16 %v437
      %v481 = vunpack.c.l.b16 %v438
      %v482 = vunpack.c.l.b16 %v439
      %v483 = vpack.c.b16 %v468, %v467
      %v484 = vpack.c.b16 %v470, %v469
      %v485 = vpack.c.b16 %v472, %v471
      %v486 = vpack.c.b16 %v474, %v473
      %v487 = vpack.c.b16 %v476, %v475
      %v488 = vpack.c.b16 %v478, %v477
      %v489 = vpack.c.b16 %v480, %v479
      %v490 = vpack.c.b16 %v482, %v481
      %499 = vmatprep.subr.bf16.mxu0 0
      %500 = vmatpush1.bf16.msra.mxu0 %v483
      %501 = vmatprep.subr.bf16.mxu0 0
      %502 = vmatpush1.bf16.msra.mxu0 %v484
      %503 = vmatprep.subr.bf16.mxu0 0
      %504 = vmatpush1.bf16.msra.mxu0 %v485
      %505 = vmatprep.subr.bf16.mxu0 0
      %506 = vmatpush1.bf16.msra.mxu0 %v486
      %507 = vmatprep.subr.bf16.mxu0 0
      %508 = vmatpush1.bf16.msra.mxu0 %v487
      %509 = vmatprep.subr.bf16.mxu0 0
      %510 = vmatpush1.bf16.msra.mxu0 %v488
      %511 = vmatprep.subr.bf16.mxu0 0
      %512 = vmatpush1.bf16.msra.mxu0 %v489
      %513 = vmatprep.subr.bf16.mxu0 0
      %514 = vmatpush1.bf16.msra.mxu0 %v490
      %515 = vmatprep.subr.bf16.mxu0 0
      %516 = vmatpush1.bf16.msra.mxu0 0
      %517 = vmatprep.subr.bf16.mxu0 0
      %518 = vmatpush1.bf16.msra.mxu0 0
      %519 = vmatprep.subr.bf16.mxu0 0
      %520 = vmatpush1.bf16.msra.mxu0 0
      %521 = vmatprep.subr.bf16.mxu0 0
      %522 = vmatpush1.bf16.msra.mxu0 0
      %523 = vmatprep.subr.bf16.mxu0 0
      %524 = vmatpush1.bf16.msra.mxu0 0
      %525 = vmatprep.subr.bf16.mxu0 0
      %526 = vmatpush1.bf16.msra.mxu0 0
      %527 = vmatprep.subr.bf16.mxu0 0
      %528 = vmatpush1.bf16.msra.mxu0 0
      %529 = vmatprep.subr.bf16.mxu0 0
      %530 = vmatpush1.bf16.msra.mxu0 0
      %531 = vmatprep.mubr.bf16.mxu0 0
      %532 = vmatmul.mubr.bf16.gmra.mrb[0].mxu0 %v449
      %v533 = vpop.f32.mrb[0].mxu0
      %v534 = vadd.f32 0.0, %v533
      %v535 = vpop.f32.mrb[0].mxu0
      %v536 = vpop.f32.mrb[0].mxu0
      %v537 = vpop.f32.mrb[0].mxu0
      %538 = vdwg.mxu0
      %v539 = vadd.f32 %v417, %v534
      %v540 = vld [vmem:[%s3] sm:$0x1]
      %v542 = vlaneseq
      %v543 = vshrl.u32 %v542, 7
      %v544 = vsub.s32 0, %v543
      %v545 = vrot.slane %v540, %v544
      %v547 = vadd.f32 %v539, %v545
      %v548 = vmax.f32 %v547, 0.0
      %v549 = vpack.c.bf16 %v548, %v548
      %550 = vst [vmem:[%s209] sm:$0x3] %v549
      %p551 = scmp.lt.s32.totalorder %s15, 1
      %s552 = scalar_select %p551, %s15, 1
      %s553 = smul.addr %s552, 2
      %s554 = scalar_lea.vmem %s4, %s553
      // Predicated region
      $region37: #{_lambda_.10} parent=35 // pred_check
        %p555 = pneg %p127
      $region38: #{_lambda_.10} parent=35 // pred_check_branch
        %557 = sbr.rel (%p555) target = $region40
      $region39: #{_lambda_.10} parent=35 // pred_region
        _
      $region40: #{_lambda_.10} parent=35 // pred_fallthru
        _
    $region36: #{_lambda_.10} parent=5 // pred_fallthru
      _
    %p558 = scmp.le.s32.totalorder 2, %s10
    // Predicated region
    $region41: #{_lambda_.10} parent=5 // pred_check
      %p559 = pneg %p558
    $region42: #{_lambda_.10} parent=5 // pred_check_branch
      %561 = sbr.rel (%p559) target = $region44
    $region43: #{_lambda_.10} parent=5 // pred_region
      %s562 = ssub.s32 %s10, 2
      // Predicated region
      $region45: #{_lambda_.10} parent=43 // pred_check
        %p563 = pneg %p133
      $region46: #{_lambda_.10} parent=43 // pred_check_branch
        %565 = sbr.rel (%p563) target = $region48
      $region47: #{_lambda_.10} parent=43 // pred_region
        %p566 = scmp.lt.s32.totalorder %s16, 1
        %s567 = scalar_select %p566, %s16, 1
        %s568 = smul.addr %s567, 2
        %s569 = scalar_lea.vmem %s4, %s568
      $region48: #{_lambda_.10} parent=43 // pred_fallthru
        _
    $region44: #{_lambda_.10} parent=5 // pred_fallthru
      _
  $region6: #{_lambda_.10} parent=0 // loop_footer
    %s14 = sadd.s32 1, %s10
  $region7: #{_lambda_.10} parent=0 // loop_footer_branch
    %9 = sbr.rel target = $region3
  $region8: #{_lambda_.10} parent=0 // loop_exit
    _

// kernel: _lambda_.11
$region0: #{_lambda_.11}
  #allocation0 [shape = 'u32[]', space=smem, size = 0x4, offset = 0x4, fixed_abs, tag = 'smem constant byte address 0x4 - core index']
  #allocation1 [shape = 'u32[144,128]{1,0:T(1,128)}', space=vmem, size = 0x12000, scoped, tag = 'internal scratch']
  %s0 = inlined_call_operand.vmem [shape: bf16[2,3,128], index: 0, kind: input, shape index: {}]
  %s1 = inlined_call_operand.vmem [shape: bf16[2,3,128], index: 1, kind: input, shape index: {}]
  %s2 = inlined_call_operand.vmem [shape: bf16[3,128,128], index: 2, kind: input, shape index: {}]
  %s3 = inlined_call_operand.vmem [shape: f32[1,128], index: 3, kind: input, shape index: {}]
  %s4 = inlined_call_operand.vmem [shape: bf16[2,2,128], index: 4, kind: output, shape index: {}]
  %s5 = sld [smem:[#allocation0]]
  $region49: #{_lambda_.11} parent=0
    _
  %s7 = ssub.s32 1, %s5
  %s8 = scalar_select 0, %s7, %s5
  loop: start=0, step=1, limit=4
  $region2: #{_lambda_.11} parent=0 // loop_pre_header
    _
  $region3: #{_lambda_.11} parent=0 // loop_header
    %s10 = sphi 0, %s14
    %p11 = scmp.ge.s32.totalorder %s10, 4
    %s20 = sphi 0, %s22
    %s23 = sphi 0, %s20
    %s24 = sphi 0, %s23
    %s40 = sphi 0, %s24
    %s46 = sphi 0, %s48
    %s49 = sphi 0, %s46
    %s50 = sphi 0, %s49
    %s66 = sphi 0, %s50
    %s70 = sphi 0, %s70
    %s72 = sphi 0, %s70
    %s73 = sphi 0, %s72
    %s87 = sphi 0, %s73
    %s91 = sphi 0, %s91
    %s93 = sphi 0, %s91
    %s94 = sphi 0, %s93
    %s108 = sphi 0, %s94
    %s114 = sphi 0, %s116
    %s117 = sphi 0, %s114
    %s118 = sphi 0, %s117
    %s134 = sphi 0, %s118
  $region4: #{_lambda_.11} parent=0 // loop_header_branch
    %13 = sbr.rel (%p11) target = $region8
  $region5: #{_lambda_.11} parent=0 // loop_body
    %s15 = ssub.s32 %s10, 1
    %s16 = ssub.s32 %s10, 2
    %s17 = sadd.s32 %s10, 1
    %s18 = ssub.s32 %s10, %s17
    %p19 = scmp.eq.s32.totalorder %s18, 0
    %s21 = sadd.s32 %s20, 1
    %s22 = scalar_select %p19, %s20, %s21
    %p25 = pneg %p19
    %p26 = scmp.eq.s32.totalorder %s10, 1
    %p27 = por %p25, %p26
    %p28 = scmp.ne.s32.totalorder %s20, %s23
    %p29 = scmp.eq.s32.totalorder %s10, 0
    %p30 = por %p28, %p29
    %p31 = scmp.ne.s32.totalorder %s20, %s23
    %p32 = scmp.eq.s32.totalorder %s15, 1
    %p33 = por %p31, %p32
    %p34 = scmp.ne.s32.totalorder %s23, %s24
    %p35 = scmp.eq.s32.totalorder %s15, 0
    %p36 = por %p34, %p35
    %p37 = scmp.ne.s32.totalorder %s23, %s24
    %p38 = scmp.eq.s32.totalorder %s16, 1
    %p39 = por %p37, %p38
    %p41 = scmp.ne.s32.totalorder %s24, %s40
    %p42 = scmp.eq.s32.totalorder %s16, 0
    %p43 = por %p41, %p42
    %s44 = ssub.s32 %s10, %s17
    %p45 = scmp.eq.s32.totalorder %s44, 0
    %s47 = sadd.s32 %s46, 1
    %s48 = scalar_select %p45, %s46, %s47
    %p51 = pneg %p45
    %p52 = scmp.eq.s32.totalorder %s10, 1
    %p53 = por %p51, %p52
    %p54 = scmp.ne.s32.totalorder %s46, %s49
    %p55 = scmp.eq.s32.totalorder %s10, 0
    %p56 = por %p54, %p55
    %p57 = scmp.ne.s32.totalorder %s46, %s49
    %p58 = scmp.eq.s32.totalorder %s15, 1
    %p59 = por %p57, %p58
    %p60 = scmp.ne.s32.totalorder %s49, %s50
    %p61 = scmp.eq.s32.totalorder %s15, 0
    %p62 = por %p60, %p61
    %p63 = scmp.ne.s32.totalorder %s49, %s50
    %p64 = scmp.eq.s32.totalorder %s16, 1
    %p65 = por %p63, %p64
    %p67 = scmp.ne.s32.totalorder %s50, %s66
    %p68 = scmp.eq.s32.totalorder %s16, 0
    %p69 = por %p67, %p68
    %s71 = sadd.s32 %s70, 1
    %p74 = scmp.eq.s32.totalorder %s10, 1
    %p75 = scmp.ne.s32.totalorder %s70, %s72
    %p76 = scmp.eq.s32.totalorder %s10, 0
    %p77 = por %p75, %p76
    %p78 = scmp.ne.s32.totalorder %s70, %s72
    %p79 = scmp.eq.s32.totalorder %s15, 1
    %p80 = por %p78, %p79
    %p81 = scmp.ne.s32.totalorder %s72, %s73
    %p82 = scmp.eq.s32.totalorder %s15, 0
    %p83 = por %p81, %p82
    %p84 = scmp.ne.s32.totalorder %s72, %s73
    %p85 = scmp.eq.s32.totalorder %s16, 1
    %p86 = por %p84, %p85
    %p88 = scmp.ne.s32.totalorder %s73, %s87
    %p89 = scmp.eq.s32.totalorder %s16, 0
    %p90 = por %p88, %p89
    %s92 = sadd.s32 %s91, 1
    %p95 = scmp.eq.s32.totalorder %s10, 1
    %p96 = scmp.ne.s32.totalorder %s91, %s93
    %p97 = scmp.eq.s32.totalorder %s10, 0
    %p98 = por %p96, %p97
    %p99 = scmp.ne.s32.totalorder %s91, %s93
    %p100 = scmp.eq.s32.totalorder %s15, 1
    %p101 = por %p99, %p100
    %p102 = scmp.ne.s32.totalorder %s93, %s94
    %p103 = scmp.eq.s32.totalorder %s15, 0
    %p104 = por %p102, %p103
    %p105 = scmp.ne.s32.totalorder %s93, %s94
    %p106 = scmp.eq.s32.totalorder %s16, 1
    %p107 = por %p105, %p106
    %p109 = scmp.ne.s32.totalorder %s94, %s108
    %p110 = scmp.eq.s32.totalorder %s16, 0
    %p111 = por %p109, %p110
    %s112 = ssub.s32 %s10, %s17
    %p113 = scmp.eq.s32.totalorder %s112, 0
    %s115 = sadd.s32 %s114, 1
    %s116 = scalar_select %p113, %s114, %s115
    %p119 = pneg %p113
    %p120 = scmp.eq.s32.totalorder %s10, 1
    %p121 = por %p119, %p120
    %p122 = scmp.ne.s32.totalorder %s114, %s117
    %p123 = scmp.eq.s32.totalorder %s10, 0
    %p124 = por %p122, %p123
    %p125 = scmp.ne.s32.totalorder %s114, %s117
    %p126 = scmp.eq.s32.totalorder %s15, 1
    %p127 = por %p125, %p126
    %p128 = scmp.ne.s32.totalorder %s117, %s118
    %p129 = scmp.eq.s32.totalorder %s15, 0
    %p130 = por %p128, %p129
    %p131 = scmp.ne.s32.totalorder %s117, %s118
    %p132 = scmp.eq.s32.totalorder %s16, 1
    %p133 = por %p131, %p132
    %p135 = scmp.ne.s32.totalorder %s118, %s134
    %p136 = scmp.eq.s32.totalorder %s16, 0
    %p137 = por %p135, %p136
    %p138 = scmp.le.s32.totalorder 1, %s10
    %p139 = scmp.lt.s32.totalorder %s10, 3
    %p140 = pnand %p138, %p139
    %p141 = pneg %p140
    // Predicated region
    $region9: #{_lambda_.11} parent=5 // pred_check
      _
    $region10: #{_lambda_.11} parent=5 // pred_check_branch
      %143 = sbr.rel (%p140) target = $region12
    $region11: #{_lambda_.11} parent=5 // pred_region
      %s144 = ssub.s32 %s10, 1
      // Predicated region
      $region13: #{_lambda_.11} parent=11 // pred_check
        %p145 = pneg %p83
      $region14: #{_lambda_.11} parent=11 // pred_check_branch
        %147 = sbr.rel (%p145) target = $region16
      $region15: #{_lambda_.11} parent=11 // pred_region
        _
      $region16: #{_lambda_.11} parent=11 // pred_fallthru
        _
      // Predicated region
      $region17: #{_lambda_.11} parent=11 // pred_check
        %p148 = pneg %p104
      $region18: #{_lambda_.11} parent=11 // pred_check_branch
        %150 = sbr.rel (%p148) target = $region20
      $region19: #{_lambda_.11} parent=11 // pred_region
        _
      $region20: #{_lambda_.11} parent=11 // pred_fallthru
        _
    $region12: #{_lambda_.11} parent=5 // pred_fallthru
      _
    %p151 = scmp.lt.s32.totalorder %s10, 2
    // Predicated region
    $region21: #{_lambda_.11} parent=5 // pred_check
      %p152 = pneg %p151
    $region22: #{_lambda_.11} parent=5 // pred_check_branch
      %154 = sbr.rel (%p152) target = $region24
    $region23: #{_lambda_.11} parent=5 // pred_region
      // Predicated region
      $region25: #{_lambda_.11} parent=23 // pred_check
        %p155 = pneg %p30
      $region26: #{_lambda_.11} parent=23 // pred_check_branch
        %157 = sbr.rel (%p155) target = $region28
      $region27: #{_lambda_.11} parent=23 // pred_region
        %p158 = scmp.lt.s32.totalorder %s10, 1
        %s159 = scalar_select %p158, %s10, 1
        %s160 = smul.addr %s159, 2
        %s161 = scalar_lea.vmem %s0, %s160
      $region28: #{_lambda_.11} parent=23 // pred_fallthru
        _
      // Predicated region
      $region29: #{_lambda_.11} parent=23 // pred_check
        %p162 = pneg %p56
      $region30: #{_lambda_.11} parent=23 // pred_check_branch
        %164 = sbr.rel (%p162) target = $region32
      $region31: #{_lambda_.11} parent=23 // pred_region
        %p165 = scmp.lt.s32.totalorder %s10, 1
        %s166 = scalar_select %p165, %s10, 1
        %s167 = smul.addr %s166, 2
        %s168 = scalar_lea.vmem %s1, %s167
      $region32: #{_lambda_.11} parent=23 // pred_fallthru
        _
    $region24: #{_lambda_.11} parent=5 // pred_fallthru
      _
    %p169 = scmp.le.s32.totalorder 1, %s10
    %p170 = scmp.lt.s32.totalorder %s10, 3
    %p171 = pnand %p169, %p170
    %p172 = pneg %p171
    // Predicated region
    $region33: #{_lambda_.11} parent=5 // pred_check
      _
    $region34: #{_lambda_.11} parent=5 // pred_check_branch
      %174 = sbr.rel (%p171) target = $region36
    $region35: #{_lambda_.11} parent=5 // pred_region
      %s175 = ssub.s32 %s10, 1
      %p176 = scmp.lt.s32.totalorder %s15, 1
      %s177 = scalar_select %p176, %s15, 1
      %s178 = smul.addr %s177, 2
      %s179 = scalar_lea.vmem %s0, %s178
      %p180 = pneg %p36
      %p181 = pneg %p33
      %p182 = scmp.lt.s32.totalorder %s15, 1
      %s183 = scalar_select %p182, %s15, 1
      %s184 = smul.addr %s183, 2
      %s185 = scalar_lea.vmem %s1, %s184
      %p186 = pneg %p62
      %p187 = pneg %p59
      %p188 = pneg %p83
      %p189 = pneg %p80
      %p190 = pneg %p104
      %p191 = pneg %p101
      %p192 = pneg %p130
      %p193 = pneg %p127
      %p194 = scmp.lt.s32.totalorder %s15, 1
      %s195 = scalar_select %p194, %s15, 1
      %s196 = scalar_lea.vmem %s4, %s195
      %p197 = scmp.lt.s32.totalorder %s15, 1
      %s198 = scalar_select %p197, %s15, 1
      %s199 = smul.addr %s198, 2
      %s200 = scalar_lea.vmem %s0, %s199
      %p201 = scmp.lt.s32.totalorder %s15, 1
      %s202 = scalar_select %p201, %s15, 1
      %s203 = smul.addr %s202, 2
      %s204 = scalar_lea.vmem %s1, %s203
      %p205 = scmp.lt.s32.totalorder %s15, 1
      %s206 = scalar_select %p205, %s15, 1
      %s207 = scalar_lea.vmem %s4, %s206
      %v209 = vld [vmem:[%s200] sm:$0x1]
      %v210 = vld [vmem:[%s2] sm:$0xf]
      %v211 = vld [vmem:[%s2 + $0x4] sm:$0xf]
      %v212 = vld [vmem:[%s2 + $0x8] sm:$0xf]
      %v213 = vld [vmem:[%s2 + $0xc] sm:$0xf]
      %v214 = vld [vmem:[%s2 + $0x10] sm:$0xf]
      %v215 = vld [vmem:[%s2 + $0x14] sm:$0xf]
      %v216 = vld [vmem:[%s2 + $0x18] sm:$0xf]
      %v217 = vld [vmem:[%s2 + $0x1c] sm:$0xf]
      %v218 = vld [vmem:[%s2 + $0x20] sm:$0xf]
      %v219 = vld [vmem:[%s2 + $0x24] sm:$0xf]
      %v220 = vld [vmem:[%s2 + $0x28] sm:$0xf]
      %v221 = vld [vmem:[%s2 + $0x2c] sm:$0xf]
      %v222 = vld [vmem:[%s2 + $0x30] sm:$0xf]
      %v223 = vld [vmem:[%s2 + $0x34] sm:$0xf]
      %v224 = vld [vmem:[%s2 + $0x38] sm:$0xf]
      %v225 = vld [vmem:[%s2 + $0x3c] sm:$0xf]
      %v226 = vld [vmem:[%s204] sm:$0x1]
      %s227 = scalar_lea.vmem %s2, 64
      %v228 = vld [vmem:[%s227] sm:$0xf]
      %v229 = vld [vmem:[%s227 + $0x4] sm:$0xf]
      %v230 = vld [vmem:[%s227 + $0x8] sm:$0xf]
      %v231 = vld [vmem:[%s227 + $0xc] sm:$0xf]
      %v232 = vld [vmem:[%s227 + $0x10] sm:$0xf]
      %v233 = vld [vmem:[%s227 + $0x14] sm:$0xf]
      %v234 = vld [vmem:[%s227 + $0x18] sm:$0xf]
      %v235 = vld [vmem:[%s227 + $0x1c] sm:$0xf]
      %v236 = vld [vmem:[%s227 + $0x20] sm:$0xf]
      %v237 = vld [vmem:[%s227 + $0x24] sm:$0xf]
      %v238 = vld [vmem:[%s227 + $0x28] sm:$0xf]
      %v239 = vld [vmem:[%s227 + $0x2c] sm:$0xf]
      %v240 = vld [vmem:[%s227 + $0x30] sm:$0xf]
      %v241 = vld [vmem:[%s227 + $0x34] sm:$0xf]
      %v242 = vld [vmem:[%s227 + $0x38] sm:$0xf]
      %v243 = vld [vmem:[%s227 + $0x3c] sm:$0xf]
      %v260 = vunpack.c.l.b16 %v228
      %v261 = vunpack.c.l.b16 %v229
      %v262 = vunpack.c.l.b16 %v230
      %v263 = vunpack.c.l.b16 %v231
      %v264 = vunpack.c.l.b16 %v232
      %v265 = vunpack.c.l.b16 %v233
      %v266 = vunpack.c.l.b16 %v234
      %v267 = vunpack.c.l.b16 %v235
      %v268 = vunpack.c.l.b16 %v236
      %v269 = vunpack.c.l.b16 %v237
      %v270 = vunpack.c.l.b16 %v238
      %v271 = vunpack.c.l.b16 %v239
      %v272 = vunpack.c.l.b16 %v240
      %v273 = vunpack.c.l.b16 %v241
      %v274 = vunpack.c.l.b16 %v242
      %v275 = vunpack.c.l.b16 %v243
      %v276 = vpack.c.b16 %v261, %v260
      %v277 = vpack.c.b16 %v263, %v262
      %v278 = vpack.c.b16 %v265, %v264
      %v279 = vpack.c.b16 %v267, %v266
      %v280 = vpack.c.b16 %v269, %v268
      %v281 = vpack.c.b16 %v271, %v270
      %v282 = vpack.c.b16 %v273, %v272
      %v283 = vpack.c.b16 %v275, %v274
      %292 = vmatprep.subr.bf16.mxu0 0
      %293 = vmatpush1.bf16.msra.mxu0 %v276
      %294 = vmatprep.subr.bf16.mxu0 0
      %295 = vmatpush1.bf16.msra.mxu0 %v277
      %296 = vmatprep.subr.bf16.mxu0 0
      %297 = vmatpush1.bf16.msra.mxu0 %v278
      %298 = vmatprep.subr.bf16.mxu0 0
      %299 = vmatpush1.bf16.msra.mxu0 %v279
      %300 = vmatprep.subr.bf16.mxu0 0
      %301 = vmatpush1.bf16.msra.mxu0 %v280
      %302 = vmatprep.subr.bf16.mxu0 0
      %303 = vmatpush1.bf16.msra.mxu0 %v281
      %304 = vmatprep.subr.bf16.mxu0 0
      %305 = vmatpush1.bf16.msra.mxu0 %v282
      %306 = vmatprep.subr.bf16.mxu0 0
      %307 = vmatpush1.bf16.msra.mxu0 %v283
      %308 = vmatprep.subr.bf16.mxu0 0
      %309 = vmatpush1.bf16.msra.mxu0 0
      %310 = vmatprep.subr.bf16.mxu0 0
      %311 = vmatpush1.bf16.msra.mxu0 0
      %312 = vmatprep.subr.bf16.mxu0 0
      %313 = vmatpush1.bf16.msra.mxu0 0
      %314 = vmatprep.subr.bf16.mxu0 0
      %315 = vmatpush1.bf16.msra.mxu0 0
      %316 = vmatprep.subr.bf16.mxu0 0
      %317 = vmatpush1.bf16.msra.mxu0 0
      %318 = vmatprep.subr.bf16.mxu0 0
      %319 = vmatpush1.bf16.msra.mxu0 0
      %320 = vmatprep.subr.bf16.mxu0 0
      %321 = vmatpush1.bf16.msra.mxu0 0
      %322 = vmatprep.subr.bf16.mxu0 0
      %323 = vmatpush1.bf16.msra.mxu0 0
      %324 = vmatprep.mubr.bf16.mxu0 0
      %325 = vmatmul.mubr.bf16.gmra.mrb[0].mxu0 %v226
      %v326 = vpop.f32.mrb[0].mxu0
      %v327 = vadd.f32 0.0, %v326
      %v328 = vpop.f32.mrb[0].mxu0
      %v329 = vpop.f32.mrb[0].mxu0
      %v330 = vpop.f32.mrb[0].mxu0
      %331 = vdwg.mxu0
      %v348 = vunpack.c.l.b16 %v210
      %v349 = vunpack.c.l.b16 %v211
      %v350 = vunpack.c.l.b16 %v212
      %v351 = vunpack.c.l.b16 %v213
      %v352 = vunpack.c.l.b16 %v214
      %v353 = vunpack.c.l.b16 %v215
      %v354 = vunpack.c.l.b16 %v216
      %v355 = vunpack.c.l.b16 %v217
      %v356 = vunpack.c.l.b16 %v218
      %v357 = vunpack.c.l.b16 %v219
      %v358 = vunpack.c.l.b16 %v220
      %v359 = vunpack.c.l.b16 %v221
      %v360 = vunpack.c.l.b16 %v222
      %v361 = vunpack.c.l.b16 %v223
      %v362 = vunpack.c.l.b16 %v224
      %v363 = vunpack.c.l.b16 %v225
      %v364 = vpack.c.b16 %v349, %v348
      %v365 = vpack.c.b16 %v351, %v350
      %v366 = vpack.c.b16 %v353, %v352
      %v367 = vpack.c.b16 %v355, %v354
      %v368 = vpack.c.b16 %v357, %v356
      %v369 = vpack.c.b16 %v359, %v358
      %v370 = vpack.c.b16 %v361, %v360
      %v371 = vpack.c.b16 %v363, %v362
      %380 = vmatprep.subr.bf16.mxu0 0
      %381 = vmatpush1.bf16.msra.mxu0 %v364
      %382 = vmatprep.subr.bf16.mxu0 0
      %383 = vmatpush1.bf16.msra.mxu0 %v365
      %384 = vmatprep.subr.bf16.mxu0 0
      %385 = vmatpush1.bf16.msra.mxu0 %v366
      %386 = vmatprep.subr.bf16.mxu0 0
      %387 = vmatpush1.bf16.msra.mxu0 %v367
      %388 = vmatprep.subr.bf16.mxu0 0
      %389 = vmatpush1.bf16.msra.mxu0 %v368
      %390 = vmatprep.subr.bf16.mxu0 0
      %391 = vmatpush1.bf16.msra.mxu0 %v369
      %392 = vmatprep.subr.bf16.mxu0 0
      %393 = vmatpush1.bf16.msra.mxu0 %v370
      %394 = vmatprep.subr.bf16.mxu0 0
      %395 = vmatpush1.bf16.msra.mxu0 %v371
      %396 = vmatprep.subr.bf16.mxu0 0
      %397 = vmatpush1.bf16.msra.mxu0 0
      %398 = vmatprep.subr.bf16.mxu0 0
      %399 = vmatpush1.bf16.msra.mxu0 0
      %400 = vmatprep.subr.bf16.mxu0 0
      %401 = vmatpush1.bf16.msra.mxu0 0
      %402 = vmatprep.subr.bf16.mxu0 0
      %403 = vmatpush1.bf16.msra.mxu0 0
      %404 = vmatprep.subr.bf16.mxu0 0
      %405 = vmatpush1.bf16.msra.mxu0 0
      %406 = vmatprep.subr.bf16.mxu0 0
      %407 = vmatpush1.bf16.msra.mxu0 0
      %408 = vmatprep.subr.bf16.mxu0 0
      %409 = vmatpush1.bf16.msra.mxu0 0
      %410 = vmatprep.subr.bf16.mxu0 0
      %411 = vmatpush1.bf16.msra.mxu0 0
      %412 = vmatprep.mubr.bf16.mxu0 0
      %413 = vmatmul.mubr.bf16.gmra.mrb[0].mxu0 %v209
      %v414 = vpop.f32.mrb[0].mxu0
      %v415 = vadd.f32 %v327, %v414
      %v416 = vpop.f32.mrb[0].mxu0
      %v417 = vpop.f32.mrb[0].mxu0
      %v418 = vpop.f32.mrb[0].mxu0
      %419 = vdwg.mxu0
      %v420 = vld [vmem:[%s200] sm:$0x3]
      %s421 = scalar_lea.vmem %s2, 128
      %v422 = vld [vmem:[%s421] sm:$0xf]
      %v423 = vld [vmem:[%s421 + $0x4] sm:$0xf]
      %v424 = vld [vmem:[%s421 + $0x8] sm:$0xf]
      %v425 = vld [vmem:[%s421 + $0xc] sm:$0xf]
      %v426 = vld [vmem:[%s421 + $0x10] sm:$0xf]
      %v427 = vld [vmem:[%s421 + $0x14] sm:$0xf]
      %v428 = vld [vmem:[%s421 + $0x18] sm:$0xf]
      %v429 = vld [vmem:[%s421 + $0x1c] sm:$0xf]
      %v430 = vld [vmem:[%s421 + $0x20] sm:$0xf]
      %v431 = vld [vmem:[%s421 + $0x24] sm:$0xf]
      %v432 = vld [vmem:[%s421 + $0x28] sm:$0xf]
      %v433 = vld [vmem:[%s421 + $0x2c] sm:$0xf]
      %v434 = vld [vmem:[%s421 + $0x30] sm:$0xf]
      %v435 = vld [vmem:[%s421 + $0x34] sm:$0xf]
      %v436 = vld [vmem:[%s421 + $0x38] sm:$0xf]
      %v437 = vld [vmem:[%s421 + $0x3c] sm:$0xf]
      %v440 = vunpack.c.l.s4 1983009808
      %v441 = vunpack.c.0.s8 %v440
      %v442 = vlaneseq
      %v443 = vshrl.u32 %v442, 7
      %v444 = vsub.s32 %v441, %v443
      %v445 = vrot.slane %v420, %v444
      %v447 = vshrl.u32 %v445, 16
      %v449 = vshll.u32 %v445, 16
      %v451 = vrot.slane %v449, 1
      %v452 = vor.u32 %v447, %v451
      %v470 = vunpack.c.l.b16 %v422
      %v471 = vunpack.c.l.b16 %v423
      %v472 = vunpack.c.l.b16 %v424
      %v473 = vunpack.c.l.b16 %v425
      %v474 = vunpack.c.l.b16 %v426
      %v475 = vunpack.c.l.b16 %v427
      %v476 = vunpack.c.l.b16 %v428
      %v477 = vunpack.c.l.b16 %v429
      %v478 = vunpack.c.l.b16 %v430
      %v479 = vunpack.c.l.b16 %v431
      %v480 = vunpack.c.l.b16 %v432
      %v481 = vunpack.c.l.b16 %v433
      %v482 = vunpack.c.l.b16 %v434
      %v483 = vunpack.c.l.b16 %v435
      %v484 = vunpack.c.l.b16 %v436
      %v485 = vunpack.c.l.b16 %v437
      %v486 = vpack.c.b16 %v471, %v470
      %v487 = vpack.c.b16 %v473, %v472
      %v488 = vpack.c.b16 %v475, %v474
      %v489 = vpack.c.b16 %v477, %v476
      %v490 = vpack.c.b16 %v479, %v478
      %v491 = vpack.c.b16 %v481, %v480
      %v492 = vpack.c.b16 %v483, %v482
      %v493 = vpack.c.b16 %v485, %v484
      %502 = vmatprep.subr.bf16.mxu0 0
      %503 = vmatpush1.bf16.msra.mxu0 %v486
      %504 = vmatprep.subr.bf16.mxu0 0
      %505 = vmatpush1.bf16.msra.mxu0 %v487
      %506 = vmatprep.subr.bf16.mxu0 0
      %507 = vmatpush1.bf16.msra.mxu0 %v488
      %508 = vmatprep.subr.bf16.mxu0 0
      %509 = vmatpush1.bf16.msra.mxu0 %v489
      %510 = vmatprep.subr.bf16.mxu0 0
      %511 = vmatpush1.bf16.msra.mxu0 %v490
      %512 = vmatprep.subr.bf16.mxu0 0
      %513 = vmatpush1.bf16.msra.mxu0 %v491
      %514 = vmatprep.subr.bf16.mxu0 0
      %515 = vmatpush1.bf16.msra.mxu0 %v492
      %516 = vmatprep.subr.bf16.mxu0 0
      %517 = vmatpush1.bf16.msra.mxu0 %v493
      %518 = vmatprep.subr.bf16.mxu0 0
      %519 = vmatpush1.bf16.msra.mxu0 0
      %520 = vmatprep.subr.bf16.mxu0 0
      %521 = vmatpush1.bf16.msra.mxu0 0
      %522 = vmatprep.subr.bf16.mxu0 0
      %523 = vmatpush1.bf16.msra.mxu0 0
      %524 = vmatprep.subr.bf16.mxu0 0
      %525 = vmatpush1.bf16.msra.mxu0 0
      %526 = vmatprep.subr.bf16.mxu0 0
      %527 = vmatpush1.bf16.msra.mxu0 0
      %528 = vmatprep.subr.bf16.mxu0 0
      %529 = vmatpush1.bf16.msra.mxu0 0
      %530 = vmatprep.subr.bf16.mxu0 0
      %531 = vmatpush1.bf16.msra.mxu0 0
      %532 = vmatprep.subr.bf16.mxu0 0
      %533 = vmatpush1.bf16.msra.mxu0 0
      %534 = vmatprep.mubr.bf16.mxu0 0
      %535 = vmatmul.mubr.bf16.gmra.mrb[0].mxu0 %v452
      %v536 = vpop.f32.mrb[0].mxu0
      %v537 = vadd.f32 0.0, %v536
      %v538 = vpop.f32.mrb[0].mxu0
      %v539 = vpop.f32.mrb[0].mxu0
      %v540 = vpop.f32.mrb[0].mxu0
      %541 = vdwg.mxu0
      %v542 = vadd.f32 %v415, %v537
      %v543 = vld [vmem:[%s3] sm:$0x1]
      %v545 = vlaneseq
      %v546 = vshrl.u32 %v545, 7
      %v547 = vsub.s32 0, %v546
      %v548 = vrot.slane %v543, %v547
      %v550 = vadd.f32 %v542, %v548
      %v551 = vmax.f32 %v550, 0.0
      %v552 = vpack.c.bf16 %v551, %v551
      %553 = vst [vmem:[%s207] sm:$0x1] %v552
      %p554 = scmp.lt.s32.totalorder %s15, 1
      %s555 = scalar_select %p554, %s15, 1
      %s556 = scalar_lea.vmem %s4, %s555
      // Predicated region
      $region37: #{_lambda_.11} parent=35 // pred_check
        %p557 = pneg %p127
      $region38: #{_lambda_.11} parent=35 // pred_check_branch
        %559 = sbr.rel (%p557) target = $region40
      $region39: #{_lambda_.11} parent=35 // pred_region
        _
      $region40: #{_lambda_.11} parent=35 // pred_fallthru
        _
    $region36: #{_lambda_.11} parent=5 // pred_fallthru
      _
    %p560 = scmp.le.s32.totalorder 2, %s10
    // Predicated region
    $region41: #{_lambda_.11} parent=5 // pred_check
      %p561 = pneg %p560
    $region42: #{_lambda_.11} parent=5 // pred_check_branch
      %563 = sbr.rel (%p561) target = $region44
    $region43: #{_lambda_.11} parent=5 // pred_region
      %s564 = ssub.s32 %s10, 2
      // Predicated region
      $region45: #{_lambda_.11} parent=43 // pred_check
        %p565 = pneg %p133
      $region46: #{_lambda_.11} parent=43 // pred_check_branch
        %567 = sbr.rel (%p565) target = $region48
      $region47: #{_lambda_.11} parent=43 // pred_region
        %p568 = scmp.lt.s32.totalorder %s16, 1
        %s569 = scalar_select %p568, %s16, 1
        %s570 = scalar_lea.vmem %s4, %s569
      $region48: #{_lambda_.11} parent=43 // pred_fallthru
        _
    $region44: #{_lambda_.11} parent=5 // pred_fallthru
      _
  $region6: #{_lambda_.11} parent=0 // loop_footer
    %s14 = sadd.s32 1, %s10
  $region7: #{_lambda_.11} parent=0 // loop_footer_branch
    %9 = sbr.rel target = $region3
  $region8: #{_lambda_.11} parent=0 // loop_exit
    _

// kernel: squeeze.1
$region0: #{squeeze.1}
  %s0 = inlined_call_operand.vmem [shape: bf16[1,2,64], index: 0, kind: input, shape index: {}]
  %s1 = inlined_call_operand.vmem [shape: bf16[2,2,32], index: 1, kind: output, shape index: {}]
  $region1: #{squeeze.1} parent=0
    #allocation0 [shape = 'u8[8192]{0}', space=vmem, size = 0x2000, scoped, tag = 'scoped mem for output reshape']
    #allocation1 [shape = 'u8[4096]{0}', space=vmem, size = 0x1000, scoped, tag = 'scoped mem for input reshape']
    %s3 = smul.u32 1, 2
    %s4 = sshllo.u32 0, %s3
    %s5 = sshrl.u32 %s4, 1
    %s6 = sor.u32 %s4, %s5
    %s7 = sand.u32 %s6, 85
    %s8 = sshrl.u32 %s7, 1
    %s9 = sor.u32 %s7, %s8
    %s10 = sand.u32 51, %s9
    %s11 = sshrl.u32 %s10, 2
    %s12 = sor.u32 %s10, %s11
    %s13 = sand.u32 15, %s12
    %v14 = vld [vmem:[%s0] sm:%s13]
    %v15 = vunpack.c.l.bf16 %v14
    %v16 = vunpack.c.h.bf16 %v14
    %17 = vst [vmem:[#allocation1] sm:%s4] %v15
    %v18 = vld [vmem:[#allocation1] sm:$0x3]
    %vm19 = vcmask 261120
    %20 = vst.msk [vmem:[#allocation0] ss:$8 sm:$0x3] %vm19, %v18
    %v21 = vld [vmem:[#allocation1] sm:$0x3]
    %22 = vrot.lane.b32.xlu0 %v21, 96
    %v23 = vpop.permute.xlu0 %22
    %vm24 = vcmask 261120
    %s25 = scalar_lea.vmem [#allocation0], 1
    %26 = vst.msk [vmem:[%s25] ss:$8 sm:$0x3] %vm24, %v23
    %s28 = smul.u32 1, 2
    %s29 = sshllo.u32 0, %s28
    %s30 = sshrl.u32 %s28, 1
    %v31 = vld [vmem:[#allocation0] sm:%s29]
    %v32 = vpack.c.bf16 0.0, %v31
    %s33 = sshllo.u32 0, %s30
    %34 = vst [vmem:[%s1] sm:%s33] %v32
    %s35 = scalar_lea.vmem [#allocation0], 8
    %v36 = vld [vmem:[%s35] sm:%s29]
    %v37 = vpack.c.bf16 0.0, %v36
    %s38 = sshllo.u32 0, %s30
    %s39 = scalar_lea.vmem %s1, 1
    %40 = vst [vmem:[%s39] sm:%s38] %v37

// kernel: _lambda_.14
$region0: #{_lambda_.14}
  #allocation0 [shape = 'u32[]', space=smem, size = 0x4, offset = 0x4, fixed_abs, tag = 'smem constant byte address 0x4 - core index']
  #allocation1 [shape = 'u32[144,128]{1,0:T(1,128)}', space=vmem, size = 0x12000, scoped, tag = 'internal scratch']
  %s0 = inlined_call_operand.vmem [shape: bf16[2,3,32], index: 0, kind: input, shape index: {}]
  %s1 = inlined_call_operand.vmem [shape: bf16[2,32,128], index: 1, kind: input, shape index: {}]
  %s2 = inlined_call_operand.vmem [shape: f32[1,128], index: 2, kind: input, shape index: {}]
  %s3 = inlined_call_operand.vmem [shape: bf16[2,2,128], index: 3, kind: output, shape index: {}]
  %s4 = sld [smem:[#allocation0]]
  $region45: #{_lambda_.14} parent=0
    _
  %s6 = ssub.s32 1, %s4
  %s7 = scalar_select 0, %s6, %s4
  loop: start=0, step=1, limit=4
  $region2: #{_lambda_.14} parent=0 // loop_pre_header
    _
  $region3: #{_lambda_.14} parent=0 // loop_header
    %s9 = sphi 0, %s13
    %p10 = scmp.ge.s32.totalorder %s9, 4
    %s19 = sphi 0, %s21
    %s22 = sphi 0, %s19
    %s23 = sphi 0, %s22
    %s39 = sphi 0, %s23
    %s43 = sphi 0, %s43
    %s45 = sphi 0, %s43
    %s46 = sphi 0, %s45
    %s60 = sphi 0, %s46
    %s64 = sphi 0, %s64
    %s66 = sphi 0, %s64
    %s67 = sphi 0, %s66
    %s81 = sphi 0, %s67
    %s87 = sphi 0, %s89
    %s90 = sphi 0, %s87
    %s91 = sphi 0, %s90
    %s107 = sphi 0, %s91
  $region4: #{_lambda_.14} parent=0 // loop_header_branch
    %12 = sbr.rel (%p10) target = $region8
  $region5: #{_lambda_.14} parent=0 // loop_body
    %s14 = ssub.s32 %s9, 1
    %s15 = ssub.s32 %s9, 2
    %s16 = sadd.s32 %s9, 1
    %s17 = ssub.s32 %s9, %s16
    %p18 = scmp.eq.s32.totalorder %s17, 0
    %s20 = sadd.s32 %s19, 1
    %s21 = scalar_select %p18, %s19, %s20
    %p24 = pneg %p18
    %p25 = scmp.eq.s32.totalorder %s9, 1
    %p26 = por %p24, %p25
    %p27 = scmp.ne.s32.totalorder %s19, %s22
    %p28 = scmp.eq.s32.totalorder %s9, 0
    %p29 = por %p27, %p28
    %p30 = scmp.ne.s32.totalorder %s19, %s22
    %p31 = scmp.eq.s32.totalorder %s14, 1
    %p32 = por %p30, %p31
    %p33 = scmp.ne.s32.totalorder %s22, %s23
    %p34 = scmp.eq.s32.totalorder %s14, 0
    %p35 = por %p33, %p34
    %p36 = scmp.ne.s32.totalorder %s22, %s23
    %p37 = scmp.eq.s32.totalorder %s15, 1
    %p38 = por %p36, %p37
    %p40 = scmp.ne.s32.totalorder %s23, %s39
    %p41 = scmp.eq.s32.totalorder %s15, 0
    %p42 = por %p40, %p41
    %s44 = sadd.s32 %s43, 1
    %p47 = scmp.eq.s32.totalorder %s9, 1
    %p48 = scmp.ne.s32.totalorder %s43, %s45
    %p49 = scmp.eq.s32.totalorder %s9, 0
    %p50 = por %p48, %p49
    %p51 = scmp.ne.s32.totalorder %s43, %s45
    %p52 = scmp.eq.s32.totalorder %s14, 1
    %p53 = por %p51, %p52
    %p54 = scmp.ne.s32.totalorder %s45, %s46
    %p55 = scmp.eq.s32.totalorder %s14, 0
    %p56 = por %p54, %p55
    %p57 = scmp.ne.s32.totalorder %s45, %s46
    %p58 = scmp.eq.s32.totalorder %s15, 1
    %p59 = por %p57, %p58
    %p61 = scmp.ne.s32.totalorder %s46, %s60
    %p62 = scmp.eq.s32.totalorder %s15, 0
    %p63 = por %p61, %p62
    %s65 = sadd.s32 %s64, 1
    %p68 = scmp.eq.s32.totalorder %s9, 1
    %p69 = scmp.ne.s32.totalorder %s64, %s66
    %p70 = scmp.eq.s32.totalorder %s9, 0
    %p71 = por %p69, %p70
    %p72 = scmp.ne.s32.totalorder %s64, %s66
    %p73 = scmp.eq.s32.totalorder %s14, 1
    %p74 = por %p72, %p73
    %p75 = scmp.ne.s32.totalorder %s66, %s67
    %p76 = scmp.eq.s32.totalorder %s14, 0
    %p77 = por %p75, %p76
    %p78 = scmp.ne.s32.totalorder %s66, %s67
    %p79 = scmp.eq.s32.totalorder %s15, 1
    %p80 = por %p78, %p79
    %p82 = scmp.ne.s32.totalorder %s67, %s81
    %p83 = scmp.eq.s32.totalorder %s15, 0
    %p84 = por %p82, %p83
    %s85 = ssub.s32 %s9, %s16
    %p86 = scmp.eq.s32.totalorder %s85, 0
    %s88 = sadd.s32 %s87, 1
    %s89 = scalar_select %p86, %s87, %s88
    %p92 = pneg %p86
    %p93 = scmp.eq.s32.totalorder %s9, 1
    %p94 = por %p92, %p93
    %p95 = scmp.ne.s32.totalorder %s87, %s90
    %p96 = scmp.eq.s32.totalorder %s9, 0
    %p97 = por %p95, %p96
    %p98 = scmp.ne.s32.totalorder %s87, %s90
    %p99 = scmp.eq.s32.totalorder %s14, 1
    %p100 = por %p98, %p99
    %p101 = scmp.ne.s32.totalorder %s90, %s91
    %p102 = scmp.eq.s32.totalorder %s14, 0
    %p103 = por %p101, %p102
    %p104 = scmp.ne.s32.totalorder %s90, %s91
    %p105 = scmp.eq.s32.totalorder %s15, 1
    %p106 = por %p104, %p105
    %p108 = scmp.ne.s32.totalorder %s91, %s107
    %p109 = scmp.eq.s32.totalorder %s15, 0
    %p110 = por %p108, %p109
    %p111 = scmp.le.s32.totalorder 1, %s9
    %p112 = scmp.lt.s32.totalorder %s9, 3
    %p113 = pnand %p111, %p112
    %p114 = pneg %p113
    // Predicated region
    $region9: #{_lambda_.14} parent=5 // pred_check
      _
    $region10: #{_lambda_.14} parent=5 // pred_check_branch
      %116 = sbr.rel (%p113) target = $region12
    $region11: #{_lambda_.14} parent=5 // pred_region
      %s117 = ssub.s32 %s9, 1
      // Predicated region
      $region13: #{_lambda_.14} parent=11 // pred_check
        %p118 = pneg %p56
      $region14: #{_lambda_.14} parent=11 // pred_check_branch
        %120 = sbr.rel (%p118) target = $region16
      $region15: #{_lambda_.14} parent=11 // pred_region
        _
      $region16: #{_lambda_.14} parent=11 // pred_fallthru
        _
      // Predicated region
      $region17: #{_lambda_.14} parent=11 // pred_check
        %p121 = pneg %p77
      $region18: #{_lambda_.14} parent=11 // pred_check_branch
        %123 = sbr.rel (%p121) target = $region20
      $region19: #{_lambda_.14} parent=11 // pred_region
        _
      $region20: #{_lambda_.14} parent=11 // pred_fallthru
        _
    $region12: #{_lambda_.14} parent=5 // pred_fallthru
      _
    %p124 = scmp.lt.s32.totalorder %s9, 2
    // Predicated region
    $region21: #{_lambda_.14} parent=5 // pred_check
      %p125 = pneg %p124
    $region22: #{_lambda_.14} parent=5 // pred_check_branch
      %127 = sbr.rel (%p125) target = $region24
    $region23: #{_lambda_.14} parent=5 // pred_region
      // Predicated region
      $region25: #{_lambda_.14} parent=23 // pred_check
        %p128 = pneg %p29
      $region26: #{_lambda_.14} parent=23 // pred_check_branch
        %130 = sbr.rel (%p128) target = $region28
      $region27: #{_lambda_.14} parent=23 // pred_region
        %p131 = scmp.lt.s32.totalorder %s9, 1
        %s132 = scalar_select %p131, %s9, 1
        %s133 = smul.addr %s132, 2
        %s134 = scalar_lea.vmem %s0, %s133
      $region28: #{_lambda_.14} parent=23 // pred_fallthru
        _
    $region24: #{_lambda_.14} parent=5 // pred_fallthru
      _
    %p135 = scmp.le.s32.totalorder 1, %s9
    %p136 = scmp.lt.s32.totalorder %s9, 3
    %p137 = pnand %p135, %p136
    %p138 = pneg %p137
    // Predicated region
    $region29: #{_lambda_.14} parent=5 // pred_check
      _
    $region30: #{_lambda_.14} parent=5 // pred_check_branch
      %140 = sbr.rel (%p137) target = $region32
    $region31: #{_lambda_.14} parent=5 // pred_region
      %s141 = ssub.s32 %s9, 1
      %p142 = scmp.lt.s32.totalorder %s14, 1
      %s143 = scalar_select %p142, %s14, 1
      %s144 = smul.addr %s143, 2
      %s145 = scalar_lea.vmem %s0, %s144
      %p146 = pneg %p35
      %p147 = pneg %p32
      %p148 = pneg %p56
      %p149 = pneg %p53
      %p150 = pneg %p77
      %p151 = pneg %p74
      %p152 = pneg %p103
      %p153 = pneg %p100
      %p154 = scmp.lt.s32.totalorder %s14, 1
      %s155 = scalar_select %p154, %s14, 1
      %s156 = scalar_lea.vmem %s3, %s155
      %p157 = scmp.lt.s32.totalorder %s14, 1
      %s158 = scalar_select %p157, %s14, 1
      %s159 = smul.addr %s158, 2
      %s160 = scalar_lea.vmem %s0, %s159
      %p161 = scmp.lt.s32.totalorder %s14, 1
      %s162 = scalar_select %p161, %s14, 1
      %s163 = scalar_lea.vmem %s3, %s162
      %v165 = vld [vmem:[%s160] sm:$0x1]
      %v166 = vld [vmem:[%s1] sm:$0xf]
      %v167 = vld [vmem:[%s1 + $0x4] sm:$0xf]
      %v168 = vld [vmem:[%s1 + $0x8] sm:$0xf]
      %v169 = vld [vmem:[%s1 + $0xc] sm:$0xf]
      %v170 = vld [vmem:[%s160] sm:$0x3]
      %s171 = scalar_lea.vmem %s1, 16
      %v172 = vld [vmem:[%s171] sm:$0xf]
      %v173 = vld [vmem:[%s171 + $0x4] sm:$0xf]
      %v174 = vld [vmem:[%s171 + $0x8] sm:$0xf]
      %v175 = vld [vmem:[%s171 + $0xc] sm:$0xf]
      %v178 = vunpack.c.l.s4 1983009808
      %v179 = vunpack.c.0.s8 %v178
      %v180 = vlaneseq
      %v181 = vshrl.u32 %v180, 7
      %v182 = vsub.s32 %v179, %v181
      %v183 = vrot.slane %v170, %v182
      %v185 = vshrl.u32 %v183, 16
      %v187 = vshll.u32 %v183, 16
      %v189 = vrot.slane %v187, 1
      %v190 = vor.u32 %v185, %v189
      %v195 = vunpack.c.l.b16 %v172
      %v196 = vunpack.c.l.b16 %v173
      %v197 = vunpack.c.l.b16 %v174
      %v198 = vunpack.c.l.b16 %v175
      %v199 = vpack.c.b16 %v196, %v195
      %v200 = vpack.c.b16 %v198, %v197
      %vm203 = vcmask 261120
      %v205 = vsel %vm203, %v190, 0
      %207 = vmatprep.subr.bf16.mxu0 0
      %208 = vmatpush1.bf16.msra.mxu0 %v199
      %209 = vmatprep.subr.bf16.mxu0 0
      %210 = vmatpush1.bf16.msra.mxu0 %v200
      %211 = vmatprep.subr.bf16.mxu0 0
      %212 = vmatpush1.bf16.msra.mxu0 0
      %213 = vmatprep.subr.bf16.mxu0 0
      %214 = vmatpush1.bf16.msra.mxu0 0
      %215 = vmatprep.subr.bf16.mxu0 0
      %216 = vmatpush1.bf16.msra.mxu0 0
      %217 = vmatprep.subr.bf16.mxu0 0
      %218 = vmatpush1.bf16.msra.mxu0 0
      %219 = vmatprep.subr.bf16.mxu0 0
      %220 = vmatpush1.bf16.msra.mxu0 0
      %221 = vmatprep.subr.bf16.mxu0 0
      %222 = vmatpush1.bf16.msra.mxu0 0
      %223 = vmatprep.subr.bf16.mxu0 0
      %224 = vmatpush1.bf16.msra.mxu0 0
      %225 = vmatprep.subr.bf16.mxu0 0
      %226 = vmatpush1.bf16.msra.mxu0 0
      %227 = vmatprep.subr.bf16.mxu0 0
      %228 = vmatpush1.bf16.msra.mxu0 0
      %229 = vmatprep.subr.bf16.mxu0 0
      %230 = vmatpush1.bf16.msra.mxu0 0
      %231 = vmatprep.subr.bf16.mxu0 0
      %232 = vmatpush1.bf16.msra.mxu0 0
      %233 = vmatprep.subr.bf16.mxu0 0
      %234 = vmatpush1.bf16.msra.mxu0 0
      %235 = vmatprep.subr.bf16.mxu0 0
      %236 = vmatpush1.bf16.msra.mxu0 0
      %237 = vmatprep.subr.bf16.mxu0 0
      %238 = vmatpush1.bf16.msra.mxu0 0
      %239 = vmatprep.mubr.bf16.mxu0 0
      %240 = vmatmul.mubr.bf16.gmra.mrb[0].mxu0 %v205
      %v241 = vpop.f32.mrb[0].mxu0
      %v242 = vadd.f32 0.0, %v241
      %v243 = vpop.f32.mrb[0].mxu0
      %v244 = vpop.f32.mrb[0].mxu0
      %v245 = vpop.f32.mrb[0].mxu0
      %246 = vdwg.mxu0
      %v251 = vunpack.c.l.b16 %v166
      %v252 = vunpack.c.l.b16 %v167
      %v253 = vunpack.c.l.b16 %v168
      %v254 = vunpack.c.l.b16 %v169
      %v255 = vpack.c.b16 %v252, %v251
      %v256 = vpack.c.b16 %v254, %v253
      %v260 = vsel %vm203, %v165, 0
      %262 = vmatprep.subr.bf16.mxu0 0
      %263 = vmatpush1.bf16.msra.mxu0 %v255
      %264 = vmatprep.subr.bf16.mxu0 0
      %265 = vmatpush1.bf16.msra.mxu0 %v256
      %266 = vmatprep.subr.bf16.mxu0 0
      %267 = vmatpush1.bf16.msra.mxu0 0
      %268 = vmatprep.subr.bf16.mxu0 0
      %269 = vmatpush1.bf16.msra.mxu0 0
      %270 = vmatprep.subr.bf16.mxu0 0
      %271 = vmatpush1.bf16.msra.mxu0 0
      %272 = vmatprep.subr.bf16.mxu0 0
      %273 = vmatpush1.bf16.msra.mxu0 0
      %274 = vmatprep.subr.bf16.mxu0 0
      %275 = vmatpush1.bf16.msra.mxu0 0
      %276 = vmatprep.subr.bf16.mxu0 0
      %277 = vmatpush1.bf16.msra.mxu0 0
      %278 = vmatprep.subr.bf16.mxu0 0
      %279 = vmatpush1.bf16.msra.mxu0 0
      %280 = vmatprep.subr.bf16.mxu0 0
      %281 = vmatpush1.bf16.msra.mxu0 0
      %282 = vmatprep.subr.bf16.mxu0 0
      %283 = vmatpush1.bf16.msra.mxu0 0
      %284 = vmatprep.subr.bf16.mxu0 0
      %285 = vmatpush1.bf16.msra.mxu0 0
      %286 = vmatprep.subr.bf16.mxu0 0
      %287 = vmatpush1.bf16.msra.mxu0 0
      %288 = vmatprep.subr.bf16.mxu0 0
      %289 = vmatpush1.bf16.msra.mxu0 0
      %290 = vmatprep.subr.bf16.mxu0 0
      %291 = vmatpush1.bf16.msra.mxu0 0
      %292 = vmatprep.subr.bf16.mxu0 0
      %293 = vmatpush1.bf16.msra.mxu0 0
      %294 = vmatprep.mubr.bf16.mxu0 0
      %295 = vmatmul.mubr.bf16.gmra.mrb[0].mxu0 %v260
      %v296 = vpop.f32.mrb[0].mxu0
      %v297 = vadd.f32 %v242, %v296
      %v298 = vpop.f32.mrb[0].mxu0
      %v299 = vpop.f32.mrb[0].mxu0
      %v300 = vpop.f32.mrb[0].mxu0
      %301 = vdwg.mxu0
      %v302 = vld [vmem:[%s2] sm:$0x1]
      %v304 = vlaneseq
      %v305 = vshrl.u32 %v304, 7
      %v306 = vsub.s32 0, %v305
      %v307 = vrot.slane %v302, %v306
      %v309 = vadd.f32 %v297, %v307
      %v310 = vmax.f32 %v309, 0.0
      %v311 = vpack.c.bf16 %v310, %v310
      %312 = vst [vmem:[%s163] sm:$0x1] %v311
      %p313 = scmp.lt.s32.totalorder %s14, 1
      %s314 = scalar_select %p313, %s14, 1
      %s315 = scalar_lea.vmem %s3, %s314
      // Predicated region
      $region33: #{_lambda_.14} parent=31 // pred_check
        %p316 = pneg %p100
      $region34: #{_lambda_.14} parent=31 // pred_check_branch
        %318 = sbr.rel (%p316) target = $region36
      $region35: #{_lambda_.14} parent=31 // pred_region
        _
      $region36: #{_lambda_.14} parent=31 // pred_fallthru
        _
    $region32: #{_lambda_.14} parent=5 // pred_fallthru
      _
    %p319 = scmp.le.s32.totalorder 2, %s9
    // Predicated region
    $region37: #{_lambda_.14} parent=5 // pred_check
      %p320 = pneg %p319
    $region38: #{_lambda_.14} parent=5 // pred_check_branch
      %322 = sbr.rel (%p320) target = $region40
    $region39: #{_lambda_.14} parent=5 // pred_region
      %s323 = ssub.s32 %s9, 2
      // Predicated region
      $region41: #{_lambda_.14} parent=39 // pred_check
        %p324 = pneg %p106
      $region42: #{_lambda_.14} parent=39 // pred_check_branch
        %326 = sbr.rel (%p324) target = $region44
      $region43: #{_lambda_.14} parent=39 // pred_region
        %p327 = scmp.lt.s32.totalorder %s15, 1
        %s328 = scalar_select %p327, %s15, 1
        %s329 = scalar_lea.vmem %s3, %s328
      $region44: #{_lambda_.14} parent=39 // pred_fallthru
        _
    $region40: #{_lambda_.14} parent=5 // pred_fallthru
      _
  $region6: #{_lambda_.14} parent=0 // loop_footer
    %s13 = sadd.s32 1, %s9
  $region7: #{_lambda_.14} parent=0 // loop_footer_branch
    %8 = sbr.rel target = $region3
  $region8: #{_lambda_.14} parent=0 // loop_exit
    _

// kernel: _lambda_.13
$region0: #{_lambda_.13}
  #allocation0 [shape = 'u32[]', space=smem, size = 0x4, offset = 0x4, fixed_abs, tag = 'smem constant byte address 0x4 - core index']
  #allocation1 [shape = 'u32[144,128]{1,0:T(1,128)}', space=vmem, size = 0x12000, scoped, tag = 'internal scratch']
  %s0 = inlined_call_operand.vmem [shape: bf16[1,2,128], index: 0, kind: input, shape index: {}]
  %s1 = inlined_call_operand.vmem [shape: bf16[1,128,128], index: 1, kind: input, shape index: {}]
  %s2 = inlined_call_operand.vmem [shape: f32[1,128], index: 2, kind: input, shape index: {}]
  %s3 = inlined_call_operand.vmem [shape: bf16[1,2,128], index: 3, kind: output, shape index: {}]
  %s4 = sld [smem:[#allocation0]]
  $region22: #{_lambda_.13} parent=0
    _
  %s6 = ssub.s32 1, %s4
  %s7 = scalar_select 0, %s6, %s4
  // Predicated region
  $region2: #{_lambda_.13} parent=0 // pred_check
    _
  $region3: #{_lambda_.13} parent=0 // pred_check_branch
    %9 = sbr.rel (0) target = $region5
  $region4: #{_lambda_.13} parent=0 // pred_region
    _
  $region5: #{_lambda_.13} parent=0 // pred_fallthru
    _
  // Predicated region
  $region6: #{_lambda_.13} parent=0 // pred_check
    _
  $region7: #{_lambda_.13} parent=0 // pred_check_branch
    %11 = sbr.rel (0) target = $region9
  $region8: #{_lambda_.13} parent=0 // pred_region
    _
  $region9: #{_lambda_.13} parent=0 // pred_fallthru
    _
  // Predicated region
  $region10: #{_lambda_.13} parent=0 // pred_check
    _
  $region11: #{_lambda_.13} parent=0 // pred_check_branch
    %13 = sbr.rel (0) target = $region13
  $region12: #{_lambda_.13} parent=0 // pred_region
    _
  $region13: #{_lambda_.13} parent=0 // pred_fallthru
    _
  %v15 = vld [vmem:[%s0] sm:$0x1]
  %v16 = vld [vmem:[%s1] sm:$0xf]
  %v17 = vld [vmem:[%s1 + $0x4] sm:$0xf]
  %v18 = vld [vmem:[%s1 + $0x8] sm:$0xf]
  %v19 = vld [vmem:[%s1 + $0xc] sm:$0xf]
  %v20 = vld [vmem:[%s1 + $0x10] sm:$0xf]
  %v21 = vld [vmem:[%s1 + $0x14] sm:$0xf]
  %v22 = vld [vmem:[%s1 + $0x18] sm:$0xf]
  %v23 = vld [vmem:[%s1 + $0x1c] sm:$0xf]
  %v24 = vld [vmem:[%s1 + $0x20] sm:$0xf]
  %v25 = vld [vmem:[%s1 + $0x24] sm:$0xf]
  %v26 = vld [vmem:[%s1 + $0x28] sm:$0xf]
  %v27 = vld [vmem:[%s1 + $0x2c] sm:$0xf]
  %v28 = vld [vmem:[%s1 + $0x30] sm:$0xf]
  %v29 = vld [vmem:[%s1 + $0x34] sm:$0xf]
  %v30 = vld [vmem:[%s1 + $0x38] sm:$0xf]
  %v31 = vld [vmem:[%s1 + $0x3c] sm:$0xf]
  %v32 = vld [vmem:[%s2] sm:$0x1]
  %v34 = vlaneseq
  %v35 = vshrl.u32 %v34, 7
  %v36 = vsub.s32 0, %v35
  %v37 = vrot.slane %v32, %v36
  %v55 = vunpack.c.l.b16 %v16
  %v56 = vunpack.c.l.b16 %v17
  %v57 = vunpack.c.l.b16 %v18
  %v58 = vunpack.c.l.b16 %v19
  %v59 = vunpack.c.l.b16 %v20
  %v60 = vunpack.c.l.b16 %v21
  %v61 = vunpack.c.l.b16 %v22
  %v62 = vunpack.c.l.b16 %v23
  %v63 = vunpack.c.l.b16 %v24
  %v64 = vunpack.c.l.b16 %v25
  %v65 = vunpack.c.l.b16 %v26
  %v66 = vunpack.c.l.b16 %v27
  %v67 = vunpack.c.l.b16 %v28
  %v68 = vunpack.c.l.b16 %v29
  %v69 = vunpack.c.l.b16 %v30
  %v70 = vunpack.c.l.b16 %v31
  %v71 = vpack.c.b16 %v56, %v55
  %v72 = vpack.c.b16 %v58, %v57
  %v73 = vpack.c.b16 %v60, %v59
  %v74 = vpack.c.b16 %v62, %v61
  %v75 = vpack.c.b16 %v64, %v63
  %v76 = vpack.c.b16 %v66, %v65
  %v77 = vpack.c.b16 %v68, %v67
  %v78 = vpack.c.b16 %v70, %v69
  %87 = vmatprep.subr.bf16.mxu0 0
  %88 = vmatpush1.bf16.msra.mxu0 %v71
  %89 = vmatprep.subr.bf16.mxu0 0
  %90 = vmatpush1.bf16.msra.mxu0 %v72
  %91 = vmatprep.subr.bf16.mxu0 0
  %92 = vmatpush1.bf16.msra.mxu0 %v73
  %93 = vmatprep.subr.bf16.mxu0 0
  %94 = vmatpush1.bf16.msra.mxu0 %v74
  %95 = vmatprep.subr.bf16.mxu0 0
  %96 = vmatpush1.bf16.msra.mxu0 %v75
  %97 = vmatprep.subr.bf16.mxu0 0
  %98 = vmatpush1.bf16.msra.mxu0 %v76
  %99 = vmatprep.subr.bf16.mxu0 0
  %100 = vmatpush1.bf16.msra.mxu0 %v77
  %101 = vmatprep.subr.bf16.mxu0 0
  %102 = vmatpush1.bf16.msra.mxu0 %v78
  %103 = vmatprep.subr.bf16.mxu0 0
  %104 = vmatpush1.bf16.msra.mxu0 0
  %105 = vmatprep.subr.bf16.mxu0 0
  %106 = vmatpush1.bf16.msra.mxu0 0
  %107 = vmatprep.subr.bf16.mxu0 0
  %108 = vmatpush1.bf16.msra.mxu0 0
  %109 = vmatprep.subr.bf16.mxu0 0
  %110 = vmatpush1.bf16.msra.mxu0 0
  %111 = vmatprep.subr.bf16.mxu0 0
  %112 = vmatpush1.bf16.msra.mxu0 0
  %113 = vmatprep.subr.bf16.mxu0 0
  %114 = vmatpush1.bf16.msra.mxu0 0
  %115 = vmatprep.subr.bf16.mxu0 0
  %116 = vmatpush1.bf16.msra.mxu0 0
  %117 = vmatprep.subr.bf16.mxu0 0
  %118 = vmatpush1.bf16.msra.mxu0 0
  %119 = vmatprep.mubr.bf16.mxu0 0
  %120 = vmatmul.mubr.bf16.gmra.mrb[0].mxu0 %v15
  %v121 = vpop.f32.mrb[0].mxu0
  %v122 = vadd.f32 %v37, %v121
  %v123 = vpop.f32.mrb[0].mxu0
  %v124 = vpop.f32.mrb[0].mxu0
  %v125 = vpop.f32.mrb[0].mxu0
  %126 = vdwg.mxu0
  %v127 = vpack.c.bf16 %v122, %v122
  %128 = vst [vmem:[%s3] sm:$0x1] %v127
  // Predicated region
  $region14: #{_lambda_.13} parent=0 // pred_check
    _
  $region15: #{_lambda_.13} parent=0 // pred_check_branch
    %130 = sbr.rel (0) target = $region17
  $region16: #{_lambda_.13} parent=0 // pred_region
    _
  $region17: #{_lambda_.13} parent=0 // pred_fallthru
    _
  // Predicated region
  $region18: #{_lambda_.13} parent=0 // pred_check
    _
  $region19: #{_lambda_.13} parent=0 // pred_check_branch
    %132 = sbr.rel (0) target = $region21
  $region20: #{_lambda_.13} parent=0 // pred_region
    _
  $region21: #{_lambda_.13} parent=0 // pred_fallthru
    _

// kernel: _lambda_.15
$region0: #{_lambda_.15}
  #allocation0 [shape = 'u32[]', space=smem, size = 0x4, offset = 0x4, fixed_abs, tag = 'smem constant byte address 0x4 - core index']
  #allocation1 [shape = 'u32[144,128]{1,0:T(1,128)}', space=vmem, size = 0x12000, scoped, tag = 'internal scratch']
  %s0 = inlined_call_operand.vmem [shape: bf16[2,5,64], index: 0, kind: input, shape index: {}]
  %s1 = inlined_call_operand.vmem [shape: bf16[2,64,128], index: 1, kind: input, shape index: {}]
  %s2 = inlined_call_operand.vmem [shape: f32[1,128], index: 2, kind: input, shape index: {}]
  %s3 = inlined_call_operand.vmem [shape: bf16[2,4,128], index: 3, kind: output, shape index: {}]
  %s4 = sld [smem:[#allocation0]]
  $region45: #{_lambda_.15} parent=0
    _
  %s6 = ssub.s32 1, %s4
  %s7 = scalar_select 0, %s6, %s4
  loop: start=0, step=1, limit=4
  $region2: #{_lambda_.15} parent=0 // loop_pre_header
    _
  $region3: #{_lambda_.15} parent=0 // loop_header
    %s9 = sphi 0, %s13
    %p10 = scmp.ge.s32.totalorder %s9, 4
    %s19 = sphi 0, %s21
    %s22 = sphi 0, %s19
    %s23 = sphi 0, %s22
    %s39 = sphi 0, %s23
    %s43 = sphi 0, %s43
    %s45 = sphi 0, %s43
    %s46 = sphi 0, %s45
    %s60 = sphi 0, %s46
    %s64 = sphi 0, %s64
    %s66 = sphi 0, %s64
    %s67 = sphi 0, %s66
    %s81 = sphi 0, %s67
    %s87 = sphi 0, %s89
    %s90 = sphi 0, %s87
    %s91 = sphi 0, %s90
    %s107 = sphi 0, %s91
  $region4: #{_lambda_.15} parent=0 // loop_header_branch
    %12 = sbr.rel (%p10) target = $region8
  $region5: #{_lambda_.15} parent=0 // loop_body
    %s14 = ssub.s32 %s9, 1
    %s15 = ssub.s32 %s9, 2
    %s16 = sadd.s32 %s9, 1
    %s17 = ssub.s32 %s9, %s16
    %p18 = scmp.eq.s32.totalorder %s17, 0
    %s20 = sadd.s32 %s19, 1
    %s21 = scalar_select %p18, %s19, %s20
    %p24 = pneg %p18
    %p25 = scmp.eq.s32.totalorder %s9, 1
    %p26 = por %p24, %p25
    %p27 = scmp.ne.s32.totalorder %s19, %s22
    %p28 = scmp.eq.s32.totalorder %s9, 0
    %p29 = por %p27, %p28
    %p30 = scmp.ne.s32.totalorder %s19, %s22
    %p31 = scmp.eq.s32.totalorder %s14, 1
    %p32 = por %p30, %p31
    %p33 = scmp.ne.s32.totalorder %s22, %s23
    %p34 = scmp.eq.s32.totalorder %s14, 0
    %p35 = por %p33, %p34
    %p36 = scmp.ne.s32.totalorder %s22, %s23
    %p37 = scmp.eq.s32.totalorder %s15, 1
    %p38 = por %p36, %p37
    %p40 = scmp.ne.s32.totalorder %s23, %s39
    %p41 = scmp.eq.s32.totalorder %s15, 0
    %p42 = por %p40, %p41
    %s44 = sadd.s32 %s43, 1
    %p47 = scmp.eq.s32.totalorder %s9, 1
    %p48 = scmp.ne.s32.totalorder %s43, %s45
    %p49 = scmp.eq.s32.totalorder %s9, 0
    %p50 = por %p48, %p49
    %p51 = scmp.ne.s32.totalorder %s43, %s45
    %p52 = scmp.eq.s32.totalorder %s14, 1
    %p53 = por %p51, %p52
    %p54 = scmp.ne.s32.totalorder %s45, %s46
    %p55 = scmp.eq.s32.totalorder %s14, 0
    %p56 = por %p54, %p55
    %p57 = scmp.ne.s32.totalorder %s45, %s46
    %p58 = scmp.eq.s32.totalorder %s15, 1
    %p59 = por %p57, %p58
    %p61 = scmp.ne.s32.totalorder %s46, %s60
    %p62 = scmp.eq.s32.totalorder %s15, 0
    %p63 = por %p61, %p62
    %s65 = sadd.s32 %s64, 1
    %p68 = scmp.eq.s32.totalorder %s9, 1
    %p69 = scmp.ne.s32.totalorder %s64, %s66
    %p70 = scmp.eq.s32.totalorder %s9, 0
    %p71 = por %p69, %p70
    %p72 = scmp.ne.s32.totalorder %s64, %s66
    %p73 = scmp.eq.s32.totalorder %s14, 1
    %p74 = por %p72, %p73
    %p75 = scmp.ne.s32.totalorder %s66, %s67
    %p76 = scmp.eq.s32.totalorder %s14, 0
    %p77 = por %p75, %p76
    %p78 = scmp.ne.s32.totalorder %s66, %s67
    %p79 = scmp.eq.s32.totalorder %s15, 1
    %p80 = por %p78, %p79
    %p82 = scmp.ne.s32.totalorder %s67, %s81
    %p83 = scmp.eq.s32.totalorder %s15, 0
    %p84 = por %p82, %p83
    %s85 = ssub.s32 %s9, %s16
    %p86 = scmp.eq.s32.totalorder %s85, 0
    %s88 = sadd.s32 %s87, 1
    %s89 = scalar_select %p86, %s87, %s88
    %p92 = pneg %p86
    %p93 = scmp.eq.s32.totalorder %s9, 1
    %p94 = por %p92, %p93
    %p95 = scmp.ne.s32.totalorder %s87, %s90
    %p96 = scmp.eq.s32.totalorder %s9, 0
    %p97 = por %p95, %p96
    %p98 = scmp.ne.s32.totalorder %s87, %s90
    %p99 = scmp.eq.s32.totalorder %s14, 1
    %p100 = por %p98, %p99
    %p101 = scmp.ne.s32.totalorder %s90, %s91
    %p102 = scmp.eq.s32.totalorder %s14, 0
    %p103 = por %p101, %p102
    %p104 = scmp.ne.s32.totalorder %s90, %s91
    %p105 = scmp.eq.s32.totalorder %s15, 1
    %p106 = por %p104, %p105
    %p108 = scmp.ne.s32.totalorder %s91, %s107
    %p109 = scmp.eq.s32.totalorder %s15, 0
    %p110 = por %p108, %p109
    %p111 = scmp.le.s32.totalorder 1, %s9
    %p112 = scmp.lt.s32.totalorder %s9, 3
    %p113 = pnand %p111, %p112
    %p114 = pneg %p113
    // Predicated region
    $region9: #{_lambda_.15} parent=5 // pred_check
      _
    $region10: #{_lambda_.15} parent=5 // pred_check_branch
      %116 = sbr.rel (%p113) target = $region12
    $region11: #{_lambda_.15} parent=5 // pred_region
      %s117 = ssub.s32 %s9, 1
      // Predicated region
      $region13: #{_lambda_.15} parent=11 // pred_check
        %p118 = pneg %p56
      $region14: #{_lambda_.15} parent=11 // pred_check_branch
        %120 = sbr.rel (%p118) target = $region16
      $region15: #{_lambda_.15} parent=11 // pred_region
        _
      $region16: #{_lambda_.15} parent=11 // pred_fallthru
        _
      // Predicated region
      $region17: #{_lambda_.15} parent=11 // pred_check
        %p121 = pneg %p77
      $region18: #{_lambda_.15} parent=11 // pred_check_branch
        %123 = sbr.rel (%p121) target = $region20
      $region19: #{_lambda_.15} parent=11 // pred_region
        _
      $region20: #{_lambda_.15} parent=11 // pred_fallthru
        _
    $region12: #{_lambda_.15} parent=5 // pred_fallthru
      _
    %p124 = scmp.lt.s32.totalorder %s9, 2
    // Predicated region
    $region21: #{_lambda_.15} parent=5 // pred_check
      %p125 = pneg %p124
    $region22: #{_lambda_.15} parent=5 // pred_check_branch
      %127 = sbr.rel (%p125) target = $region24
    $region23: #{_lambda_.15} parent=5 // pred_region
      // Predicated region
      $region25: #{_lambda_.15} parent=23 // pred_check
        %p128 = pneg %p29
      $region26: #{_lambda_.15} parent=23 // pred_check_branch
        %130 = sbr.rel (%p128) target = $region28
      $region27: #{_lambda_.15} parent=23 // pred_region
        %p131 = scmp.lt.s32.totalorder %s9, 1
        %s132 = scalar_select %p131, %s9, 1
        %s133 = smul.addr %s132, 4
        %s134 = scalar_lea.vmem %s0, %s133
      $region28: #{_lambda_.15} parent=23 // pred_fallthru
        _
    $region24: #{_lambda_.15} parent=5 // pred_fallthru
      _
    %p135 = scmp.le.s32.totalorder 1, %s9
    %p136 = scmp.lt.s32.totalorder %s9, 3
    %p137 = pnand %p135, %p136
    %p138 = pneg %p137
    // Predicated region
    $region29: #{_lambda_.15} parent=5 // pred_check
      _
    $region30: #{_lambda_.15} parent=5 // pred_check_branch
      %140 = sbr.rel (%p137) target = $region32
    $region31: #{_lambda_.15} parent=5 // pred_region
      %s141 = ssub.s32 %s9, 1
      %p142 = scmp.lt.s32.totalorder %s14, 1
      %s143 = scalar_select %p142, %s14, 1
      %s144 = smul.addr %s143, 4
      %s145 = scalar_lea.vmem %s0, %s144
      %p146 = pneg %p35
      %p147 = pneg %p32
      %p148 = pneg %p56
      %p149 = pneg %p53
      %p150 = pneg %p77
      %p151 = pneg %p74
      %p152 = pneg %p103
      %p153 = pneg %p100
      %p154 = scmp.lt.s32.totalorder %s14, 1
      %s155 = scalar_select %p154, %s14, 1
      %s156 = smul.addr %s155, 2
      %s157 = scalar_lea.vmem %s3, %s156
      %p158 = scmp.lt.s32.totalorder %s14, 1
      %s159 = scalar_select %p158, %s14, 1
      %s160 = smul.addr %s159, 4
      %s161 = scalar_lea.vmem %s0, %s160
      %p162 = scmp.lt.s32.totalorder %s14, 1
      %s163 = scalar_select %p162, %s14, 1
      %s164 = smul.addr %s163, 2
      %s165 = scalar_lea.vmem %s3, %s164
      %v167 = vld [vmem:[%s161] sm:$0x3]
      %v168 = vld [vmem:[%s1] sm:$0xf]
      %v169 = vld [vmem:[%s1 + $0x4] sm:$0xf]
      %v170 = vld [vmem:[%s1 + $0x8] sm:$0xf]
      %v171 = vld [vmem:[%s1 + $0xc] sm:$0xf]
      %v172 = vld [vmem:[%s1 + $0x10] sm:$0xf]
      %v173 = vld [vmem:[%s1 + $0x14] sm:$0xf]
      %v174 = vld [vmem:[%s1 + $0x18] sm:$0xf]
      %v175 = vld [vmem:[%s1 + $0x1c] sm:$0xf]
      %v176 = vld [vmem:[%s161] sm:$0x7]
      %s177 = scalar_lea.vmem %s1, 32
      %v178 = vld [vmem:[%s177] sm:$0xf]
      %v179 = vld [vmem:[%s177 + $0x4] sm:$0xf]
      %v180 = vld [vmem:[%s177 + $0x8] sm:$0xf]
      %v181 = vld [vmem:[%s177 + $0xc] sm:$0xf]
      %v182 = vld [vmem:[%s177 + $0x10] sm:$0xf]
      %v183 = vld [vmem:[%s177 + $0x14] sm:$0xf]
      %v184 = vld [vmem:[%s177 + $0x18] sm:$0xf]
      %v185 = vld [vmem:[%s177 + $0x1c] sm:$0xf]
      %v187 = vunpack.c.l.b16 %v176
      %v188 = vpack.c.b16 %v187, %v187
      %v190 = vshrl.u32 %v188, 16
      %v192 = vshll.u32 %v188, 16
      %v194 = vrot.slane %v192, 1
      %v195 = vor.u32 %v190, %v194
      %v204 = vunpack.c.l.b16 %v178
      %v205 = vunpack.c.l.b16 %v179
      %v206 = vunpack.c.l.b16 %v180
      %v207 = vunpack.c.l.b16 %v181
      %v208 = vunpack.c.l.b16 %v182
      %v209 = vunpack.c.l.b16 %v183
      %v210 = vunpack.c.l.b16 %v184
      %v211 = vunpack.c.l.b16 %v185
      %v212 = vpack.c.b16 %v205, %v204
      %v213 = vpack.c.b16 %v207, %v206
      %v214 = vpack.c.b16 %v209, %v208
      %v215 = vpack.c.b16 %v211, %v210
      %vm220 = vcmask 523264
      %v222 = vsel %vm220, %v195, 0
      %224 = vmatprep.subr.bf16.mxu0 0
      %225 = vmatpush1.bf16.msra.mxu0 %v212
      %226 = vmatprep.subr.bf16.mxu0 0
      %227 = vmatpush1.bf16.msra.mxu0 %v213
      %228 = vmatprep.subr.bf16.mxu0 0
      %229 = vmatpush1.bf16.msra.mxu0 %v214
      %230 = vmatprep.subr.bf16.mxu0 0
      %231 = vmatpush1.bf16.msra.mxu0 %v215
      %232 = vmatprep.subr.bf16.mxu0 0
      %233 = vmatpush1.bf16.msra.mxu0 0
      %234 = vmatprep.subr.bf16.mxu0 0
      %235 = vmatpush1.bf16.msra.mxu0 0
      %236 = vmatprep.subr.bf16.mxu0 0
      %237 = vmatpush1.bf16.msra.mxu0 0
      %238 = vmatprep.subr.bf16.mxu0 0
      %239 = vmatpush1.bf16.msra.mxu0 0
      %240 = vmatprep.subr.bf16.mxu0 0
      %241 = vmatpush1.bf16.msra.mxu0 0
      %242 = vmatprep.subr.bf16.mxu0 0
      %243 = vmatpush1.bf16.msra.mxu0 0
      %244 = vmatprep.subr.bf16.mxu0 0
      %245 = vmatpush1.bf16.msra.mxu0 0
      %246 = vmatprep.subr.bf16.mxu0 0
      %247 = vmatpush1.bf16.msra.mxu0 0
      %248 = vmatprep.subr.bf16.mxu0 0
      %249 = vmatpush1.bf16.msra.mxu0 0
      %250 = vmatprep.subr.bf16.mxu0 0
      %251 = vmatpush1.bf16.msra.mxu0 0
      %252 = vmatprep.subr.bf16.mxu0 0
      %253 = vmatpush1.bf16.msra.mxu0 0
      %254 = vmatprep.subr.bf16.mxu0 0
      %255 = vmatpush1.bf16.msra.mxu0 0
      %256 = vmatprep.mubr.bf16.mxu0 0
      %257 = vmatmul.mubr.bf16.gmra.mrb[0].mxu0 %v222
      %v258 = vpop.f32.mrb[0].mxu0
      %v259 = vadd.f32 0.0, %v258
      %v260 = vpop.f32.mrb[0].mxu0
      %v261 = vpop.f32.mrb[0].mxu0
      %v262 = vpop.f32.mrb[0].mxu0
      %263 = vdwg.mxu0
      %v272 = vunpack.c.l.b16 %v168
      %v273 = vunpack.c.l.b16 %v169
      %v274 = vunpack.c.l.b16 %v170
      %v275 = vunpack.c.l.b16 %v171
      %v276 = vunpack.c.l.b16 %v172
      %v277 = vunpack.c.l.b16 %v173
      %v278 = vunpack.c.l.b16 %v174
      %v279 = vunpack.c.l.b16 %v175
      %v280 = vpack.c.b16 %v273, %v272
      %v281 = vpack.c.b16 %v275, %v274
      %v282 = vpack.c.b16 %v277, %v276
      %v283 = vpack.c.b16 %v279, %v278
      %v289 = vsel %vm220, %v167, 0
      %291 = vmatprep.subr.bf16.mxu0 0
      %292 = vmatpush1.bf16.msra.mxu0 %v280
      %293 = vmatprep.subr.bf16.mxu0 0
      %294 = vmatpush1.bf16.msra.mxu0 %v281
      %295 = vmatprep.subr.bf16.mxu0 0
      %296 = vmatpush1.bf16.msra.mxu0 %v282
      %297 = vmatprep.subr.bf16.mxu0 0
      %298 = vmatpush1.bf16.msra.mxu0 %v283
      %299 = vmatprep.subr.bf16.mxu0 0
      %300 = vmatpush1.bf16.msra.mxu0 0
      %301 = vmatprep.subr.bf16.mxu0 0
      %302 = vmatpush1.bf16.msra.mxu0 0
      %303 = vmatprep.subr.bf16.mxu0 0
      %304 = vmatpush1.bf16.msra.mxu0 0
      %305 = vmatprep.subr.bf16.mxu0 0
      %306 = vmatpush1.bf16.msra.mxu0 0
      %307 = vmatprep.subr.bf16.mxu0 0
      %308 = vmatpush1.bf16.msra.mxu0 0
      %309 = vmatprep.subr.bf16.mxu0 0
      %310 = vmatpush1.bf16.msra.mxu0 0
      %311 = vmatprep.subr.bf16.mxu0 0
      %312 = vmatpush1.bf16.msra.mxu0 0
      %313 = vmatprep.subr.bf16.mxu0 0
      %314 = vmatpush1.bf16.msra.mxu0 0
      %315 = vmatprep.subr.bf16.mxu0 0
      %316 = vmatpush1.bf16.msra.mxu0 0
      %317 = vmatprep.subr.bf16.mxu0 0
      %318 = vmatpush1.bf16.msra.mxu0 0
      %319 = vmatprep.subr.bf16.mxu0 0
      %320 = vmatpush1.bf16.msra.mxu0 0
      %321 = vmatprep.subr.bf16.mxu0 0
      %322 = vmatpush1.bf16.msra.mxu0 0
      %323 = vmatprep.mubr.bf16.mxu0 0
      %324 = vmatmul.mubr.bf16.gmra.mrb[0].mxu0 %v289
      %v325 = vpop.f32.mrb[0].mxu0
      %v326 = vadd.f32 %v259, %v325
      %v327 = vpop.f32.mrb[0].mxu0
      %v328 = vpop.f32.mrb[0].mxu0
      %v329 = vpop.f32.mrb[0].mxu0
      %330 = vdwg.mxu0
      %v331 = vld [vmem:[%s2] sm:$0x1]
      %v333 = vlaneseq
      %v334 = vshrl.u32 %v333, 7
      %v335 = vsub.s32 0, %v334
      %v336 = vrot.slane %v331, %v335
      %v338 = vadd.f32 %v326, %v336
      %v339 = vmax.f32 %v338, 0.0
      %v340 = vpack.c.bf16 %v339, %v339
      %341 = vst [vmem:[%s165] sm:$0x3] %v340
      %p342 = scmp.lt.s32.totalorder %s14, 1
      %s343 = scalar_select %p342, %s14, 1
      %s344 = smul.addr %s343, 2
      %s345 = scalar_lea.vmem %s3, %s344
      // Predicated region
      $region33: #{_lambda_.15} parent=31 // pred_check
        %p346 = pneg %p100
      $region34: #{_lambda_.15} parent=31 // pred_check_branch
        %348 = sbr.rel (%p346) target = $region36
      $region35: #{_lambda_.15} parent=31 // pred_region
        _
      $region36: #{_lambda_.15} parent=31 // pred_fallthru
        _
    $region32: #{_lambda_.15} parent=5 // pred_fallthru
      _
    %p349 = scmp.le.s32.totalorder 2, %s9
    // Predicated region
    $region37: #{_lambda_.15} parent=5 // pred_check
      %p350 = pneg %p349
    $region38: #{_lambda_.15} parent=5 // pred_check_branch
      %352 = sbr.rel (%p350) target = $region40
    $region39: #{_lambda_.15} parent=5 // pred_region
      %s353 = ssub.s32 %s9, 2
      // Predicated region
      $region41: #{_lambda_.15} parent=39 // pred_check
        %p354 = pneg %p106
      $region42: #{_lambda_.15} parent=39 // pred_check_branch
        %356 = sbr.rel (%p354) target = $region44
      $region43: #{_lambda_.15} parent=39 // pred_region
        %p357 = scmp.lt.s32.totalorder %s15, 1
        %s358 = scalar_select %p357, %s15, 1
        %s359 = smul.addr %s358, 2
        %s360 = scalar_lea.vmem %s3, %s359
      $region44: #{_lambda_.15} parent=39 // pred_fallthru
        _
    $region40: #{_lambda_.15} parent=5 // pred_fallthru
      _
  $region6: #{_lambda_.15} parent=0 // loop_footer
    %s13 = sadd.s32 1, %s9
  $region7: #{_lambda_.15} parent=0 // loop_footer_branch
    %8 = sbr.rel target = $region3
  $region8: #{_lambda_.15} parent=0 // loop_exit
    _

// kernel: _lambda_.16
$region0: #{_lambda_.16}
  #allocation0 [shape = 'u32[]', space=smem, size = 0x4, offset = 0x4, fixed_abs, tag = 'smem constant byte address 0x4 - core index']
  #allocation1 [shape = 'u32[144,128]{1,0:T(1,128)}', space=vmem, size = 0x12000, scoped, tag = 'internal scratch']
  %s0 = inlined_call_operand.vmem [shape: bf16[2,9,64], index: 0, kind: input, shape index: {}]
  %s1 = inlined_call_operand.vmem [shape: bf16[2,64,128], index: 1, kind: input, shape index: {}]
  %s2 = inlined_call_operand.vmem [shape: f32[1,128], index: 2, kind: input, shape index: {}]
  %s3 = inlined_call_operand.vmem [shape: bf16[2,8,128], index: 3, kind: output, shape index: {}]
  %s4 = sld [smem:[#allocation0]]
  $region45: #{_lambda_.16} parent=0
    _
  %s6 = ssub.s32 1, %s4
  %s7 = scalar_select 0, %s6, %s4
  loop: start=0, step=1, limit=4
  $region2: #{_lambda_.16} parent=0 // loop_pre_header
    _
  $region3: #{_lambda_.16} parent=0 // loop_header
    %s9 = sphi 0, %s13
    %p10 = scmp.ge.s32.totalorder %s9, 4
    %s19 = sphi 0, %s21
    %s22 = sphi 0, %s19
    %s23 = sphi 0, %s22
    %s39 = sphi 0, %s23
    %s43 = sphi 0, %s43
    %s45 = sphi 0, %s43
    %s46 = sphi 0, %s45
    %s60 = sphi 0, %s46
    %s64 = sphi 0, %s64
    %s66 = sphi 0, %s64
    %s67 = sphi 0, %s66
    %s81 = sphi 0, %s67
    %s87 = sphi 0, %s89
    %s90 = sphi 0, %s87
    %s91 = sphi 0, %s90
    %s107 = sphi 0, %s91
  $region4: #{_lambda_.16} parent=0 // loop_header_branch
    %12 = sbr.rel (%p10) target = $region8
  $region5: #{_lambda_.16} parent=0 // loop_body
    %s14 = ssub.s32 %s9, 1
    %s15 = ssub.s32 %s9, 2
    %s16 = sadd.s32 %s9, 1
    %s17 = ssub.s32 %s9, %s16
    %p18 = scmp.eq.s32.totalorder %s17, 0
    %s20 = sadd.s32 %s19, 1
    %s21 = scalar_select %p18, %s19, %s20
    %p24 = pneg %p18
    %p25 = scmp.eq.s32.totalorder %s9, 1
    %p26 = por %p24, %p25
    %p27 = scmp.ne.s32.totalorder %s19, %s22
    %p28 = scmp.eq.s32.totalorder %s9, 0
    %p29 = por %p27, %p28
    %p30 = scmp.ne.s32.totalorder %s19, %s22
    %p31 = scmp.eq.s32.totalorder %s14, 1
    %p32 = por %p30, %p31
    %p33 = scmp.ne.s32.totalorder %s22, %s23
    %p34 = scmp.eq.s32.totalorder %s14, 0
    %p35 = por %p33, %p34
    %p36 = scmp.ne.s32.totalorder %s22, %s23
    %p37 = scmp.eq.s32.totalorder %s15, 1
    %p38 = por %p36, %p37
    %p40 = scmp.ne.s32.totalorder %s23, %s39
    %p41 = scmp.eq.s32.totalorder %s15, 0
    %p42 = por %p40, %p41
    %s44 = sadd.s32 %s43, 1
    %p47 = scmp.eq.s32.totalorder %s9, 1
    %p48 = scmp.ne.s32.totalorder %s43, %s45
    %p49 = scmp.eq.s32.totalorder %s9, 0
    %p50 = por %p48, %p49
    %p51 = scmp.ne.s32.totalorder %s43, %s45
    %p52 = scmp.eq.s32.totalorder %s14, 1
    %p53 = por %p51, %p52
    %p54 = scmp.ne.s32.totalorder %s45, %s46
    %p55 = scmp.eq.s32.totalorder %s14, 0
    %p56 = por %p54, %p55
    %p57 = scmp.ne.s32.totalorder %s45, %s46
    %p58 = scmp.eq.s32.totalorder %s15, 1
    %p59 = por %p57, %p58
    %p61 = scmp.ne.s32.totalorder %s46, %s60
    %p62 = scmp.eq.s32.totalorder %s15, 0
    %p63 = por %p61, %p62
    %s65 = sadd.s32 %s64, 1
    %p68 = scmp.eq.s32.totalorder %s9, 1
    %p69 = scmp.ne.s32.totalorder %s64, %s66
    %p70 = scmp.eq.s32.totalorder %s9, 0
    %p71 = por %p69, %p70
    %p72 = scmp.ne.s32.totalorder %s64, %s66
    %p73 = scmp.eq.s32.totalorder %s14, 1
    %p74 = por %p72, %p73
    %p75 = scmp.ne.s32.totalorder %s66, %s67
    %p76 = scmp.eq.s32.totalorder %s14, 0
    %p77 = por %p75, %p76
    %p78 = scmp.ne.s32.totalorder %s66, %s67
    %p79 = scmp.eq.s32.totalorder %s15, 1
    %p80 = por %p78, %p79
    %p82 = scmp.ne.s32.totalorder %s67, %s81
    %p83 = scmp.eq.s32.totalorder %s15, 0
    %p84 = por %p82, %p83
    %s85 = ssub.s32 %s9, %s16
    %p86 = scmp.eq.s32.totalorder %s85, 0
    %s88 = sadd.s32 %s87, 1
    %s89 = scalar_select %p86, %s87, %s88
    %p92 = pneg %p86
    %p93 = scmp.eq.s32.totalorder %s9, 1
    %p94 = por %p92, %p93
    %p95 = scmp.ne.s32.totalorder %s87, %s90
    %p96 = scmp.eq.s32.totalorder %s9, 0
    %p97 = por %p95, %p96
    %p98 = scmp.ne.s32.totalorder %s87, %s90
    %p99 = scmp.eq.s32.totalorder %s14, 1
    %p100 = por %p98, %p99
    %p101 = scmp.ne.s32.totalorder %s90, %s91
    %p102 = scmp.eq.s32.totalorder %s14, 0
    %p103 = por %p101, %p102
    %p104 = scmp.ne.s32.totalorder %s90, %s91
    %p105 = scmp.eq.s32.totalorder %s15, 1
    %p106 = por %p104, %p105
    %p108 = scmp.ne.s32.totalorder %s91, %s107
    %p109 = scmp.eq.s32.totalorder %s15, 0
    %p110 = por %p108, %p109
    %p111 = scmp.le.s32.totalorder 1, %s9
    %p112 = scmp.lt.s32.totalorder %s9, 3
    %p113 = pnand %p111, %p112
    %p114 = pneg %p113
    // Predicated region
    $region9: #{_lambda_.16} parent=5 // pred_check
      _
    $region10: #{_lambda_.16} parent=5 // pred_check_branch
      %116 = sbr.rel (%p113) target = $region12
    $region11: #{_lambda_.16} parent=5 // pred_region
      %s117 = ssub.s32 %s9, 1
      // Predicated region
      $region13: #{_lambda_.16} parent=11 // pred_check
        %p118 = pneg %p56
      $region14: #{_lambda_.16} parent=11 // pred_check_branch
        %120 = sbr.rel (%p118) target = $region16
      $region15: #{_lambda_.16} parent=11 // pred_region
        _
      $region16: #{_lambda_.16} parent=11 // pred_fallthru
        _
      // Predicated region
      $region17: #{_lambda_.16} parent=11 // pred_check
        %p121 = pneg %p77
      $region18: #{_lambda_.16} parent=11 // pred_check_branch
        %123 = sbr.rel (%p121) target = $region20
      $region19: #{_lambda_.16} parent=11 // pred_region
        _
      $region20: #{_lambda_.16} parent=11 // pred_fallthru
        _
    $region12: #{_lambda_.16} parent=5 // pred_fallthru
      _
    %p124 = scmp.lt.s32.totalorder %s9, 2
    // Predicated region
    $region21: #{_lambda_.16} parent=5 // pred_check
      %p125 = pneg %p124
    $region22: #{_lambda_.16} parent=5 // pred_check_branch
      %127 = sbr.rel (%p125) target = $region24
    $region23: #{_lambda_.16} parent=5 // pred_region
      // Predicated region
      $region25: #{_lambda_.16} parent=23 // pred_check
        %p128 = pneg %p29
      $region26: #{_lambda_.16} parent=23 // pred_check_branch
        %130 = sbr.rel (%p128) target = $region28
      $region27: #{_lambda_.16} parent=23 // pred_region
        %p131 = scmp.lt.s32.totalorder %s9, 1
        %s132 = scalar_select %p131, %s9, 1
        %s133 = smul.addr %s132, 2
        %s134 = smul.addr %s133, 4
        %s135 = scalar_lea.vmem %s0, %s134
      $region28: #{_lambda_.16} parent=23 // pred_fallthru
        _
    $region24: #{_lambda_.16} parent=5 // pred_fallthru
      _
    %p136 = scmp.le.s32.totalorder 1, %s9
    %p137 = scmp.lt.s32.totalorder %s9, 3
    %p138 = pnand %p136, %p137
    %p139 = pneg %p138
    // Predicated region
    $region29: #{_lambda_.16} parent=5 // pred_check
      _
    $region30: #{_lambda_.16} parent=5 // pred_check_branch
      %141 = sbr.rel (%p138) target = $region32
    $region31: #{_lambda_.16} parent=5 // pred_region
      %s142 = ssub.s32 %s9, 1
      %p143 = scmp.lt.s32.totalorder %s14, 1
      %s144 = scalar_select %p143, %s14, 1
      %s145 = smul.addr %s144, 2
      %s146 = smul.addr %s145, 4
      %s147 = scalar_lea.vmem %s0, %s146
      %p148 = pneg %p35
      %p149 = pneg %p32
      %p150 = pneg %p56
      %p151 = pneg %p53
      %p152 = pneg %p77
      %p153 = pneg %p74
      %p154 = pneg %p103
      %p155 = pneg %p100
      %p156 = scmp.lt.s32.totalorder %s14, 1
      %s157 = scalar_select %p156, %s14, 1
      %s158 = smul.addr %s157, 4
      %s159 = scalar_lea.vmem %s3, %s158
      %p160 = scmp.lt.s32.totalorder %s14, 1
      %s161 = scalar_select %p160, %s14, 1
      %s162 = smul.addr %s161, 2
      %s163 = smul.addr %s162, 4
      %s164 = scalar_lea.vmem %s0, %s163
      %p165 = scmp.lt.s32.totalorder %s14, 1
      %s166 = scalar_select %p165, %s14, 1
      %s167 = smul.addr %s166, 4
      %s168 = scalar_lea.vmem %s3, %s167
      %v170 = vld [vmem:[%s164] sm:$0xf]
      %v171 = vld [vmem:[%s1] sm:$0xf]
      %v172 = vld [vmem:[%s1 + $0x4] sm:$0xf]
      %v173 = vld [vmem:[%s1 + $0x8] sm:$0xf]
      %v174 = vld [vmem:[%s1 + $0xc] sm:$0xf]
      %v175 = vld [vmem:[%s1 + $0x10] sm:$0xf]
      %v176 = vld [vmem:[%s1 + $0x14] sm:$0xf]
      %v177 = vld [vmem:[%s1 + $0x18] sm:$0xf]
      %v178 = vld [vmem:[%s1 + $0x1c] sm:$0xf]
      %v179 = vld [vmem:[%s164 + $0x4] sm:$0x1]
      %s180 = scalar_lea.vmem %s1, 32
      %v181 = vld [vmem:[%s180] sm:$0xf]
      %v182 = vld [vmem:[%s180 + $0x4] sm:$0xf]
      %v183 = vld [vmem:[%s180 + $0x8] sm:$0xf]
      %v184 = vld [vmem:[%s180 + $0xc] sm:$0xf]
      %v185 = vld [vmem:[%s180 + $0x10] sm:$0xf]
      %v186 = vld [vmem:[%s180 + $0x14] sm:$0xf]
      %v187 = vld [vmem:[%s180 + $0x18] sm:$0xf]
      %v188 = vld [vmem:[%s180 + $0x1c] sm:$0xf]
      %v191 = vunpack.c.l.b16 %v170
      %v192 = vunpack.c.l.b16 %v179
      %v193 = vpack.c.b16 %v192, %v191
      %v195 = vshrl.u32 %v193, 16
      %v197 = vshll.u32 %v193, 16
      %v199 = vrot.slane %v197, 1
      %v200 = vor.u32 %v195, %v199
      %v209 = vunpack.c.l.b16 %v181
      %v210 = vunpack.c.l.b16 %v182
      %v211 = vunpack.c.l.b16 %v183
      %v212 = vunpack.c.l.b16 %v184
      %v213 = vunpack.c.l.b16 %v185
      %v214 = vunpack.c.l.b16 %v186
      %v215 = vunpack.c.l.b16 %v187
      %v216 = vunpack.c.l.b16 %v188
      %v217 = vpack.c.b16 %v210, %v209
      %v218 = vpack.c.b16 %v212, %v211
      %v219 = vpack.c.b16 %v214, %v213
      %v220 = vpack.c.b16 %v216, %v215
      %vm225 = vcmask 523264
      %v227 = vsel %vm225, %v200, 0
      %229 = vmatprep.subr.bf16.mxu0 0
      %230 = vmatpush1.bf16.msra.mxu0 %v217
      %231 = vmatprep.subr.bf16.mxu0 0
      %232 = vmatpush1.bf16.msra.mxu0 %v218
      %233 = vmatprep.subr.bf16.mxu0 0
      %234 = vmatpush1.bf16.msra.mxu0 %v219
      %235 = vmatprep.subr.bf16.mxu0 0
      %236 = vmatpush1.bf16.msra.mxu0 %v220
      %237 = vmatprep.subr.bf16.mxu0 0
      %238 = vmatpush1.bf16.msra.mxu0 0
      %239 = vmatprep.subr.bf16.mxu0 0
      %240 = vmatpush1.bf16.msra.mxu0 0
      %241 = vmatprep.subr.bf16.mxu0 0
      %242 = vmatpush1.bf16.msra.mxu0 0
      %243 = vmatprep.subr.bf16.mxu0 0
      %244 = vmatpush1.bf16.msra.mxu0 0
      %245 = vmatprep.subr.bf16.mxu0 0
      %246 = vmatpush1.bf16.msra.mxu0 0
      %247 = vmatprep.subr.bf16.mxu0 0
      %248 = vmatpush1.bf16.msra.mxu0 0
      %249 = vmatprep.subr.bf16.mxu0 0
      %250 = vmatpush1.bf16.msra.mxu0 0
      %251 = vmatprep.subr.bf16.mxu0 0
      %252 = vmatpush1.bf16.msra.mxu0 0
      %253 = vmatprep.subr.bf16.mxu0 0
      %254 = vmatpush1.bf16.msra.mxu0 0
      %255 = vmatprep.subr.bf16.mxu0 0
      %256 = vmatpush1.bf16.msra.mxu0 0
      %257 = vmatprep.subr.bf16.mxu0 0
      %258 = vmatpush1.bf16.msra.mxu0 0
      %259 = vmatprep.subr.bf16.mxu0 0
      %260 = vmatpush1.bf16.msra.mxu0 0
      %261 = vmatprep.mubr.bf16.mxu0 0
      %262 = vmatmul.mubr.bf16.gmra.mrb[0].mxu0 %v227
      %v263 = vpop.f32.mrb[0].mxu0
      %v264 = vadd.f32 0.0, %v263
      %v265 = vpop.f32.mrb[0].mxu0
      %v266 = vpop.f32.mrb[0].mxu0
      %v267 = vpop.f32.mrb[0].mxu0
      %268 = vdwg.mxu0
      %v277 = vunpack.c.l.b16 %v171
      %v278 = vunpack.c.l.b16 %v172
      %v279 = vunpack.c.l.b16 %v173
      %v280 = vunpack.c.l.b16 %v174
      %v281 = vunpack.c.l.b16 %v175
      %v282 = vunpack.c.l.b16 %v176
      %v283 = vunpack.c.l.b16 %v177
      %v284 = vunpack.c.l.b16 %v178
      %v285 = vpack.c.b16 %v278, %v277
      %v286 = vpack.c.b16 %v280, %v279
      %v287 = vpack.c.b16 %v282, %v281
      %v288 = vpack.c.b16 %v284, %v283
      %v294 = vsel %vm225, %v170, 0
      %296 = vmatprep.subr.bf16.mxu0 0
      %297 = vmatpush1.bf16.msra.mxu0 %v285
      %298 = vmatprep.subr.bf16.mxu0 0
      %299 = vmatpush1.bf16.msra.mxu0 %v286
      %300 = vmatprep.subr.bf16.mxu0 0
      %301 = vmatpush1.bf16.msra.mxu0 %v287
      %302 = vmatprep.subr.bf16.mxu0 0
      %303 = vmatpush1.bf16.msra.mxu0 %v288
      %304 = vmatprep.subr.bf16.mxu0 0
      %305 = vmatpush1.bf16.msra.mxu0 0
      %306 = vmatprep.subr.bf16.mxu0 0
      %307 = vmatpush1.bf16.msra.mxu0 0
      %308 = vmatprep.subr.bf16.mxu0 0
      %309 = vmatpush1.bf16.msra.mxu0 0
      %310 = vmatprep.subr.bf16.mxu0 0
      %311 = vmatpush1.bf16.msra.mxu0 0
      %312 = vmatprep.subr.bf16.mxu0 0
      %313 = vmatpush1.bf16.msra.mxu0 0
      %314 = vmatprep.subr.bf16.mxu0 0
      %315 = vmatpush1.bf16.msra.mxu0 0
      %316 = vmatprep.subr.bf16.mxu0 0
      %317 = vmatpush1.bf16.msra.mxu0 0
      %318 = vmatprep.subr.bf16.mxu0 0
      %319 = vmatpush1.bf16.msra.mxu0 0
      %320 = vmatprep.subr.bf16.mxu0 0
      %321 = vmatpush1.bf16.msra.mxu0 0
      %322 = vmatprep.subr.bf16.mxu0 0
      %323 = vmatpush1.bf16.msra.mxu0 0
      %324 = vmatprep.subr.bf16.mxu0 0
      %325 = vmatpush1.bf16.msra.mxu0 0
      %326 = vmatprep.subr.bf16.mxu0 0
      %327 = vmatpush1.bf16.msra.mxu0 0
      %328 = vmatprep.mubr.bf16.mxu0 0
      %329 = vmatmul.mubr.bf16.gmra.mrb[0].mxu0 %v294
      %v330 = vpop.f32.mrb[0].mxu0
      %v331 = vadd.f32 %v264, %v330
      %v332 = vpop.f32.mrb[0].mxu0
      %v333 = vpop.f32.mrb[0].mxu0
      %v334 = vpop.f32.mrb[0].mxu0
      %335 = vdwg.mxu0
      %v336 = vld [vmem:[%s2] sm:$0x1]
      %v338 = vlaneseq
      %v339 = vshrl.u32 %v338, 7
      %v340 = vsub.s32 0, %v339
      %v341 = vrot.slane %v336, %v340
      %v343 = vadd.f32 %v331, %v341
      %v344 = vmax.f32 %v343, 0.0
      %v345 = vpack.c.bf16 %v344, %v344
      %346 = vst [vmem:[%s168] sm:$0xf] %v345
      %p347 = scmp.lt.s32.totalorder %s14, 1
      %s348 = scalar_select %p347, %s14, 1
      %s349 = smul.addr %s348, 4
      %s350 = scalar_lea.vmem %s3, %s349
      // Predicated region
      $region33: #{_lambda_.16} parent=31 // pred_check
        %p351 = pneg %p100
      $region34: #{_lambda_.16} parent=31 // pred_check_branch
        %353 = sbr.rel (%p351) target = $region36
      $region35: #{_lambda_.16} parent=31 // pred_region
        _
      $region36: #{_lambda_.16} parent=31 // pred_fallthru
        _
    $region32: #{_lambda_.16} parent=5 // pred_fallthru
      _
    %p354 = scmp.le.s32.totalorder 2, %s9
    // Predicated region
    $region37: #{_lambda_.16} parent=5 // pred_check
      %p355 = pneg %p354
    $region38: #{_lambda_.16} parent=5 // pred_check_branch
      %357 = sbr.rel (%p355) target = $region40
    $region39: #{_lambda_.16} parent=5 // pred_region
      %s358 = ssub.s32 %s9, 2
      // Predicated region
      $region41: #{_lambda_.16} parent=39 // pred_check
        %p359 = pneg %p106
      $region42: #{_lambda_.16} parent=39 // pred_check_branch
        %361 = sbr.rel (%p359) target = $region44
      $region43: #{_lambda_.16} parent=39 // pred_region
        %p362 = scmp.lt.s32.totalorder %s15, 1
        %s363 = scalar_select %p362, %s15, 1
        %s364 = smul.addr %s363, 4
        %s365 = scalar_lea.vmem %s3, %s364
      $region44: #{_lambda_.16} parent=39 // pred_fallthru
        _
    $region40: #{_lambda_.16} parent=5 // pred_fallthru
      _
  $region6: #{_lambda_.16} parent=0 // loop_footer
    %s13 = sadd.s32 1, %s9
  $region7: #{_lambda_.16} parent=0 // loop_footer_branch
    %8 = sbr.rel target = $region3
  $region8: #{_lambda_.16} parent=0 // loop_exit
    _

// kernel: _lambda_.17
$region0: #{_lambda_.17}
  #allocation0 [shape = 'u32[]', space=smem, size = 0x4, offset = 0x4, fixed_abs, tag = 'smem constant byte address 0x4 - core index']
  #allocation1 [shape = 'u32[144,128]{1,0:T(1,128)}', space=vmem, size = 0x12000, scoped, tag = 'internal scratch']
  %s0 = inlined_call_operand.vmem [shape: bf16[2,18,64], index: 0, kind: input, shape index: {}]
  %s1 = inlined_call_operand.vmem [shape: bf16[3,64,128], index: 1, kind: input, shape index: {}]
  %s2 = inlined_call_operand.vmem [shape: f32[1,128], index: 2, kind: input, shape index: {}]
  %s3 = inlined_call_operand.vmem [shape: f32[2,16,128], index: 3, kind: output, shape index: {}]
  %s4 = sld [smem:[#allocation0]]
  $region45: #{_lambda_.17} parent=0
    _
  %s6 = ssub.s32 1, %s4
  %s7 = scalar_select 0, %s6, %s4
  loop: start=0, step=1, limit=4
  $region2: #{_lambda_.17} parent=0 // loop_pre_header
    _
  $region3: #{_lambda_.17} parent=0 // loop_header
    %s9 = sphi 0, %s13
    %p10 = scmp.ge.s32.totalorder %s9, 4
    %s19 = sphi 0, %s21
    %s22 = sphi 0, %s19
    %s23 = sphi 0, %s22
    %s39 = sphi 0, %s23
    %s43 = sphi 0, %s43
    %s45 = sphi 0, %s43
    %s46 = sphi 0, %s45
    %s60 = sphi 0, %s46
    %s64 = sphi 0, %s64
    %s66 = sphi 0, %s64
    %s67 = sphi 0, %s66
    %s81 = sphi 0, %s67
    %s87 = sphi 0, %s89
    %s90 = sphi 0, %s87
    %s91 = sphi 0, %s90
    %s107 = sphi 0, %s91
  $region4: #{_lambda_.17} parent=0 // loop_header_branch
    %12 = sbr.rel (%p10) target = $region8
  $region5: #{_lambda_.17} parent=0 // loop_body
    %s14 = ssub.s32 %s9, 1
    %s15 = ssub.s32 %s9, 2
    %s16 = sadd.s32 %s9, 1
    %s17 = ssub.s32 %s9, %s16
    %p18 = scmp.eq.s32.totalorder %s17, 0
    %s20 = sadd.s32 %s19, 1
    %s21 = scalar_select %p18, %s19, %s20
    %p24 = pneg %p18
    %p25 = scmp.eq.s32.totalorder %s9, 1
    %p26 = por %p24, %p25
    %p27 = scmp.ne.s32.totalorder %s19, %s22
    %p28 = scmp.eq.s32.totalorder %s9, 0
    %p29 = por %p27, %p28
    %p30 = scmp.ne.s32.totalorder %s19, %s22
    %p31 = scmp.eq.s32.totalorder %s14, 1
    %p32 = por %p30, %p31
    %p33 = scmp.ne.s32.totalorder %s22, %s23
    %p34 = scmp.eq.s32.totalorder %s14, 0
    %p35 = por %p33, %p34
    %p36 = scmp.ne.s32.totalorder %s22, %s23
    %p37 = scmp.eq.s32.totalorder %s15, 1
    %p38 = por %p36, %p37
    %p40 = scmp.ne.s32.totalorder %s23, %s39
    %p41 = scmp.eq.s32.totalorder %s15, 0
    %p42 = por %p40, %p41
    %s44 = sadd.s32 %s43, 1
    %p47 = scmp.eq.s32.totalorder %s9, 1
    %p48 = scmp.ne.s32.totalorder %s43, %s45
    %p49 = scmp.eq.s32.totalorder %s9, 0
    %p50 = por %p48, %p49
    %p51 = scmp.ne.s32.totalorder %s43, %s45
    %p52 = scmp.eq.s32.totalorder %s14, 1
    %p53 = por %p51, %p52
    %p54 = scmp.ne.s32.totalorder %s45, %s46
    %p55 = scmp.eq.s32.totalorder %s14, 0
    %p56 = por %p54, %p55
    %p57 = scmp.ne.s32.totalorder %s45, %s46
    %p58 = scmp.eq.s32.totalorder %s15, 1
    %p59 = por %p57, %p58
    %p61 = scmp.ne.s32.totalorder %s46, %s60
    %p62 = scmp.eq.s32.totalorder %s15, 0
    %p63 = por %p61, %p62
    %s65 = sadd.s32 %s64, 1
    %p68 = scmp.eq.s32.totalorder %s9, 1
    %p69 = scmp.ne.s32.totalorder %s64, %s66
    %p70 = scmp.eq.s32.totalorder %s9, 0
    %p71 = por %p69, %p70
    %p72 = scmp.ne.s32.totalorder %s64, %s66
    %p73 = scmp.eq.s32.totalorder %s14, 1
    %p74 = por %p72, %p73
    %p75 = scmp.ne.s32.totalorder %s66, %s67
    %p76 = scmp.eq.s32.totalorder %s14, 0
    %p77 = por %p75, %p76
    %p78 = scmp.ne.s32.totalorder %s66, %s67
    %p79 = scmp.eq.s32.totalorder %s15, 1
    %p80 = por %p78, %p79
    %p82 = scmp.ne.s32.totalorder %s67, %s81
    %p83 = scmp.eq.s32.totalorder %s15, 0
    %p84 = por %p82, %p83
    %s85 = ssub.s32 %s9, %s16
    %p86 = scmp.eq.s32.totalorder %s85, 0
    %s88 = sadd.s32 %s87, 1
    %s89 = scalar_select %p86, %s87, %s88
    %p92 = pneg %p86
    %p93 = scmp.eq.s32.totalorder %s9, 1
    %p94 = por %p92, %p93
    %p95 = scmp.ne.s32.totalorder %s87, %s90
    %p96 = scmp.eq.s32.totalorder %s9, 0
    %p97 = por %p95, %p96
    %p98 = scmp.ne.s32.totalorder %s87, %s90
    %p99 = scmp.eq.s32.totalorder %s14, 1
    %p100 = por %p98, %p99
    %p101 = scmp.ne.s32.totalorder %s90, %s91
    %p102 = scmp.eq.s32.totalorder %s14, 0
    %p103 = por %p101, %p102
    %p104 = scmp.ne.s32.totalorder %s90, %s91
    %p105 = scmp.eq.s32.totalorder %s15, 1
    %p106 = por %p104, %p105
    %p108 = scmp.ne.s32.totalorder %s91, %s107
    %p109 = scmp.eq.s32.totalorder %s15, 0
    %p110 = por %p108, %p109
    %p111 = scmp.le.s32.totalorder 1, %s9
    %p112 = scmp.lt.s32.totalorder %s9, 3
    %p113 = pnand %p111, %p112
    %p114 = pneg %p113
    // Predicated region
    $region9: #{_lambda_.17} parent=5 // pred_check
      _
    $region10: #{_lambda_.17} parent=5 // pred_check_branch
      %116 = sbr.rel (%p113) target = $region12
    $region11: #{_lambda_.17} parent=5 // pred_region
      %s117 = ssub.s32 %s9, 1
      // Predicated region
      $region13: #{_lambda_.17} parent=11 // pred_check
        %p118 = pneg %p56
      $region14: #{_lambda_.17} parent=11 // pred_check_branch
        %120 = sbr.rel (%p118) target = $region16
      $region15: #{_lambda_.17} parent=11 // pred_region
        _
      $region16: #{_lambda_.17} parent=11 // pred_fallthru
        _
      // Predicated region
      $region17: #{_lambda_.17} parent=11 // pred_check
        %p121 = pneg %p77
      $region18: #{_lambda_.17} parent=11 // pred_check_branch
        %123 = sbr.rel (%p121) target = $region20
      $region19: #{_lambda_.17} parent=11 // pred_region
        _
      $region20: #{_lambda_.17} parent=11 // pred_fallthru
        _
    $region12: #{_lambda_.17} parent=5 // pred_fallthru
      _
    %p124 = scmp.lt.s32.totalorder %s9, 2
    // Predicated region
    $region21: #{_lambda_.17} parent=5 // pred_check
      %p125 = pneg %p124
    $region22: #{_lambda_.17} parent=5 // pred_check_branch
      %127 = sbr.rel (%p125) target = $region24
    $region23: #{_lambda_.17} parent=5 // pred_region
      // Predicated region
      $region25: #{_lambda_.17} parent=23 // pred_check
        %p128 = pneg %p29
      $region26: #{_lambda_.17} parent=23 // pred_check_branch
        %130 = sbr.rel (%p128) target = $region28
      $region27: #{_lambda_.17} parent=23 // pred_region
        %p131 = scmp.lt.s32.totalorder %s9, 1
        %s132 = scalar_select %p131, %s9, 1
        %s133 = smul.addr %s132, 3
        %s134 = smul.addr %s133, 4
        %s135 = scalar_lea.vmem %s0, %s134
      $region28: #{_lambda_.17} parent=23 // pred_fallthru
        _
    $region24: #{_lambda_.17} parent=5 // pred_fallthru
      _
    %p136 = scmp.le.s32.totalorder 1, %s9
    %p137 = scmp.lt.s32.totalorder %s9, 3
    %p138 = pnand %p136, %p137
    %p139 = pneg %p138
    // Predicated region
    $region29: #{_lambda_.17} parent=5 // pred_check
      _
    $region30: #{_lambda_.17} parent=5 // pred_check_branch
      %141 = sbr.rel (%p138) target = $region32
    $region31: #{_lambda_.17} parent=5 // pred_region
      %s142 = ssub.s32 %s9, 1
      %p143 = scmp.lt.s32.totalorder %s14, 1
      %s144 = scalar_select %p143, %s14, 1
      %s145 = smul.addr %s144, 3
      %s146 = smul.addr %s145, 4
      %s147 = scalar_lea.vmem %s0, %s146
      %p148 = pneg %p35
      %p149 = pneg %p32
      %p150 = pneg %p56
      %p151 = pneg %p53
      %p152 = pneg %p77
      %p153 = pneg %p74
      %p154 = pneg %p103
      %p155 = pneg %p100
      %p156 = scmp.lt.s32.totalorder %s14, 1
      %s157 = scalar_select %p156, %s14, 1
      %s158 = smul.addr %s157, 2
      %s159 = smul.addr %s158, 8
      %s160 = scalar_lea.vmem %s3, %s159
      %p161 = scmp.lt.s32.totalorder %s14, 1
      %s162 = scalar_select %p161, %s14, 1
      %s163 = smul.addr %s162, 3
      %s164 = smul.addr %s163, 4
      %s165 = scalar_lea.vmem %s0, %s164
      %p166 = scmp.lt.s32.totalorder %s14, 1
      %s167 = scalar_select %p166, %s14, 1
      %s168 = smul.addr %s167, 2
      %s169 = smul.addr %s168, 8
      %s170 = scalar_lea.vmem %s3, %s169
      %v172 = vld [vmem:[%s165] sm:$0xf]
      %v173 = vld [vmem:[%s165 + $0x4] sm:$0xf]
      %v174 = vld [vmem:[%s1] sm:$0xf]
      %v175 = vld [vmem:[%s1 + $0x4] sm:$0xf]
      %v176 = vld [vmem:[%s1 + $0x8] sm:$0xf]
      %v177 = vld [vmem:[%s1 + $0xc] sm:$0xf]
      %v178 = vld [vmem:[%s1 + $0x10] sm:$0xf]
      %v179 = vld [vmem:[%s1 + $0x14] sm:$0xf]
      %v180 = vld [vmem:[%s1 + $0x18] sm:$0xf]
      %v181 = vld [vmem:[%s1 + $0x1c] sm:$0xf]
      %v182 = vld [vmem:[%s165 + $0x8] sm:$0x1]
      %s183 = scalar_lea.vmem %s1, 32
      %v184 = vld [vmem:[%s183] sm:$0xf]
      %v185 = vld [vmem:[%s183 + $0x4] sm:$0xf]
      %v186 = vld [vmem:[%s183 + $0x8] sm:$0xf]
      %v187 = vld [vmem:[%s183 + $0xc] sm:$0xf]
      %v188 = vld [vmem:[%s183 + $0x10] sm:$0xf]
      %v189 = vld [vmem:[%s183 + $0x14] sm:$0xf]
      %v190 = vld [vmem:[%s183 + $0x18] sm:$0xf]
      %v191 = vld [vmem:[%s183 + $0x1c] sm:$0xf]
      %v195 = vunpack.c.l.b16 %v172
      %v196 = vunpack.c.l.b16 %v173
      %v197 = vunpack.c.l.b16 %v182
      %v198 = vpack.c.b16 %v196, %v195
      %v199 = vpack.c.b16 %v197, %v197
      %vm200 = vsmask.f32 7424
      %v202 = vshrl.u32 %v198, 16
      %v204 = vshll.u32 %v198, 16
      %v206 = vrot.slane %v204, 1
      %v207 = vor.u32 %v202, %v206
      %v209 = vshll.u32 %v199, 16
      %v211 = vrot.slane %v209, 1
      %v212 = vsel %vm200, %v207, %v211
      %v221 = vunpack.c.l.b16 %v184
      %v222 = vunpack.c.l.b16 %v185
      %v223 = vunpack.c.l.b16 %v186
      %v224 = vunpack.c.l.b16 %v187
      %v225 = vunpack.c.l.b16 %v188
      %v226 = vunpack.c.l.b16 %v189
      %v227 = vunpack.c.l.b16 %v190
      %v228 = vunpack.c.l.b16 %v191
      %v229 = vpack.c.b16 %v222, %v221
      %v230 = vpack.c.b16 %v224, %v223
      %v231 = vpack.c.b16 %v226, %v225
      %v232 = vpack.c.b16 %v228, %v227
      %vm237 = vcmask 523264
      %v239 = vsel %vm237, %v212, 0
      %241 = vmatprep.subr.bf16.mxu0 0
      %242 = vmatpush1.bf16.msra.mxu0 %v229
      %243 = vmatprep.subr.bf16.mxu0 0
      %244 = vmatpush1.bf16.msra.mxu0 %v230
      %245 = vmatprep.subr.bf16.mxu0 0
      %246 = vmatpush1.bf16.msra.mxu0 %v231
      %247 = vmatprep.subr.bf16.mxu0 0
      %248 = vmatpush1.bf16.msra.mxu0 %v232
      %249 = vmatprep.subr.bf16.mxu0 0
      %250 = vmatpush1.bf16.msra.mxu0 0
      %251 = vmatprep.subr.bf16.mxu0 0
      %252 = vmatpush1.bf16.msra.mxu0 0
      %253 = vmatprep.subr.bf16.mxu0 0
      %254 = vmatpush1.bf16.msra.mxu0 0
      %255 = vmatprep.subr.bf16.mxu0 0
      %256 = vmatpush1.bf16.msra.mxu0 0
      %257 = vmatprep.subr.bf16.mxu0 0
      %258 = vmatpush1.bf16.msra.mxu0 0
      %259 = vmatprep.subr.bf16.mxu0 0
      %260 = vmatpush1.bf16.msra.mxu0 0
      %261 = vmatprep.subr.bf16.mxu0 0
      %262 = vmatpush1.bf16.msra.mxu0 0
      %263 = vmatprep.subr.bf16.mxu0 0
      %264 = vmatpush1.bf16.msra.mxu0 0
      %265 = vmatprep.subr.bf16.mxu0 0
      %266 = vmatpush1.bf16.msra.mxu0 0
      %267 = vmatprep.subr.bf16.mxu0 0
      %268 = vmatpush1.bf16.msra.mxu0 0
      %269 = vmatprep.subr.bf16.mxu0 0
      %270 = vmatpush1.bf16.msra.mxu0 0
      %271 = vmatprep.subr.bf16.mxu0 0
      %272 = vmatpush1.bf16.msra.mxu0 0
      %273 = vmatprep.mubr.bf16.mxu0 0
      %274 = vmatmul.mubr.bf16.gmra.mrb[0].mxu0 %v239
      %v275 = vpop.f32.mrb[0].mxu0
      %v276 = vadd.f32 0.0, %v275
      %v277 = vpop.f32.mrb[0].mxu0
      %v278 = vpop.f32.mrb[0].mxu0
      %v279 = vadd.f32 0.0, %v278
      %v280 = vpop.f32.mrb[0].mxu0
      %281 = vdwg.mxu0
      %v290 = vunpack.c.l.b16 %v174
      %v291 = vunpack.c.l.b16 %v175
      %v292 = vunpack.c.l.b16 %v176
      %v293 = vunpack.c.l.b16 %v177
      %v294 = vunpack.c.l.b16 %v178
      %v295 = vunpack.c.l.b16 %v179
      %v296 = vunpack.c.l.b16 %v180
      %v297 = vunpack.c.l.b16 %v181
      %v298 = vpack.c.b16 %v291, %v290
      %v299 = vpack.c.b16 %v293, %v292
      %v300 = vpack.c.b16 %v295, %v294
      %v301 = vpack.c.b16 %v297, %v296
      %v306 = vsel %vm237, %v198, 0
      %308 = vmatprep.subr.bf16.mxu0 0
      %309 = vmatpush1.bf16.msra.mxu0 %v298
      %310 = vmatprep.subr.bf16.mxu0 0
      %311 = vmatpush1.bf16.msra.mxu0 %v299
      %312 = vmatprep.subr.bf16.mxu0 0
      %313 = vmatpush1.bf16.msra.mxu0 %v300
      %314 = vmatprep.subr.bf16.mxu0 0
      %315 = vmatpush1.bf16.msra.mxu0 %v301
      %316 = vmatprep.subr.bf16.mxu0 0
      %317 = vmatpush1.bf16.msra.mxu0 0
      %318 = vmatprep.subr.bf16.mxu0 0
      %319 = vmatpush1.bf16.msra.mxu0 0
      %320 = vmatprep.subr.bf16.mxu0 0
      %321 = vmatpush1.bf16.msra.mxu0 0
      %322 = vmatprep.subr.bf16.mxu0 0
      %323 = vmatpush1.bf16.msra.mxu0 0
      %324 = vmatprep.subr.bf16.mxu0 0
      %325 = vmatpush1.bf16.msra.mxu0 0
      %326 = vmatprep.subr.bf16.mxu0 0
      %327 = vmatpush1.bf16.msra.mxu0 0
      %328 = vmatprep.subr.bf16.mxu0 0
      %329 = vmatpush1.bf16.msra.mxu0 0
      %330 = vmatprep.subr.bf16.mxu0 0
      %331 = vmatpush1.bf16.msra.mxu0 0
      %332 = vmatprep.subr.bf16.mxu0 0
      %333 = vmatpush1.bf16.msra.mxu0 0
      %334 = vmatprep.subr.bf16.mxu0 0
      %335 = vmatpush1.bf16.msra.mxu0 0
      %336 = vmatprep.subr.bf16.mxu0 0
      %337 = vmatpush1.bf16.msra.mxu0 0
      %338 = vmatprep.subr.bf16.mxu0 0
      %339 = vmatpush1.bf16.msra.mxu0 0
      %340 = vmatprep.mubr.bf16.mxu0 0
      %341 = vmatmul.mubr.bf16.gmra.mrb[0].mxu0 %v306
      %v342 = vpop.f32.mrb[0].mxu0
      %v343 = vadd.f32 %v276, %v342
      %v344 = vpop.f32.mrb[0].mxu0
      %v345 = vpop.f32.mrb[0].mxu0
      %v346 = vadd.f32 %v279, %v345
      %v347 = vpop.f32.mrb[0].mxu0
      %348 = vdwg.mxu0
      %v349 = vld [vmem:[%s165] sm:$0xe]
      %s350 = scalar_lea.vmem %s1, 64
      %v351 = vld [vmem:[%s350] sm:$0xf]
      %v352 = vld [vmem:[%s350 + $0x4] sm:$0xf]
      %v353 = vld [vmem:[%s350 + $0x8] sm:$0xf]
      %v354 = vld [vmem:[%s350 + $0xc] sm:$0xf]
      %v355 = vld [vmem:[%s350 + $0x10] sm:$0xf]
      %v356 = vld [vmem:[%s350 + $0x14] sm:$0xf]
      %v357 = vld [vmem:[%s350 + $0x18] sm:$0xf]
      %v358 = vld [vmem:[%s350 + $0x1c] sm:$0xf]
      %v360 = vunpack.c.l.b16 %v349
      %v361 = vpack.c.b16 %v196, %v360
      %vm362 = vcmask 1046528
      %v363 = vrot.slane %v361, 1
      %v364 = vrot.slane %v199, 1
      %v365 = vsel %vm362, %v363, %v364
      %v374 = vunpack.c.l.b16 %v351
      %v375 = vunpack.c.l.b16 %v352
      %v376 = vunpack.c.l.b16 %v353
      %v377 = vunpack.c.l.b16 %v354
      %v378 = vunpack.c.l.b16 %v355
      %v379 = vunpack.c.l.b16 %v356
      %v380 = vunpack.c.l.b16 %v357
      %v381 = vunpack.c.l.b16 %v358
      %v382 = vpack.c.b16 %v375, %v374
      %v383 = vpack.c.b16 %v377, %v376
      %v384 = vpack.c.b16 %v379, %v378
      %v385 = vpack.c.b16 %v381, %v380
      %v391 = vsel %vm237, %v365, 0
      %393 = vmatprep.subr.bf16.mxu0 0
      %394 = vmatpush1.bf16.msra.mxu0 %v382
      %395 = vmatprep.subr.bf16.mxu0 0
      %396 = vmatpush1.bf16.msra.mxu0 %v383
      %397 = vmatprep.subr.bf16.mxu0 0
      %398 = vmatpush1.bf16.msra.mxu0 %v384
      %399 = vmatprep.subr.bf16.mxu0 0
      %400 = vmatpush1.bf16.msra.mxu0 %v385
      %401 = vmatprep.subr.bf16.mxu0 0
      %402 = vmatpush1.bf16.msra.mxu0 0
      %403 = vmatprep.subr.bf16.mxu0 0
      %404 = vmatpush1.bf16.msra.mxu0 0
      %405 = vmatprep.subr.bf16.mxu0 0
      %406 = vmatpush1.bf16.msra.mxu0 0
      %407 = vmatprep.subr.bf16.mxu0 0
      %408 = vmatpush1.bf16.msra.mxu0 0
      %409 = vmatprep.subr.bf16.mxu0 0
      %410 = vmatpush1.bf16.msra.mxu0 0
      %411 = vmatprep.subr.bf16.mxu0 0
      %412 = vmatpush1.bf16.msra.mxu0 0
      %413 = vmatprep.subr.bf16.mxu0 0
      %414 = vmatpush1.bf16.msra.mxu0 0
      %415 = vmatprep.subr.bf16.mxu0 0
      %416 = vmatpush1.bf16.msra.mxu0 0
      %417 = vmatprep.subr.bf16.mxu0 0
      %418 = vmatpush1.bf16.msra.mxu0 0
      %419 = vmatprep.subr.bf16.mxu0 0
      %420 = vmatpush1.bf16.msra.mxu0 0
      %421 = vmatprep.subr.bf16.mxu0 0
      %422 = vmatpush1.bf16.msra.mxu0 0
      %423 = vmatprep.subr.bf16.mxu0 0
      %424 = vmatpush1.bf16.msra.mxu0 0
      %425 = vmatprep.mubr.bf16.mxu0 0
      %426 = vmatmul.mubr.bf16.gmra.mrb[0].mxu0 %v391
      %v427 = vpop.f32.mrb[0].mxu0
      %v428 = vadd.f32 0.0, %v427
      %v429 = vpop.f32.mrb[0].mxu0
      %v430 = vpop.f32.mrb[0].mxu0
      %v431 = vadd.f32 0.0, %v430
      %v432 = vpop.f32.mrb[0].mxu0
      %433 = vdwg.mxu0
      %v434 = vadd.f32 %v343, %v428
      %v435 = vadd.f32 %v346, %v431
      %v436 = vld [vmem:[%s2] sm:$0x1]
      %v438 = vlaneseq
      %v439 = vshrl.u32 %v438, 7
      %v440 = vsub.s32 0, %v439
      %v441 = vrot.slane %v436, %v440
      %v443 = vadd.f32 %v434, %v441
      %v444 = vadd.f32 %v435, %v441
      %v445 = vsub.f32 0.0, %v443
      %v446 = vsub.f32 0.0, %v444
      %v447 = vmul.f32 %v445, 1.442695
      %v448 = vpow.pop %v447
      %v449 = vmul.f32 %v446, 1.442695
      %v450 = vpow.pop %v449
      %v451 = vadd.f32 %v448, 1.0
      %v452 = vadd.f32 %v450, 1.0
      %v453 = vrcp.pop %v451
      %v454 = vrcp.pop %v452
      %v455 = vmax.f32 %v453, 0.0
      %v456 = vmax.f32 %v454, 0.0
      %v457 = vmin.f32 %v455, 1.0
      %v458 = vmin.f32 %v456, 1.0
      %459 = vst [vmem:[%s170] sm:$0xff] %v457
      %460 = vst [vmem:[%s170 + $0x8] sm:$0xff] %v458
      %p461 = scmp.lt.s32.totalorder %s14, 1
      %s462 = scalar_select %p461, %s14, 1
      %s463 = smul.addr %s462, 2
      %s464 = smul.addr %s463, 8
      %s465 = scalar_lea.vmem %s3, %s464
      // Predicated region
      $region33: #{_lambda_.17} parent=31 // pred_check
        %p466 = pneg %p100
      $region34: #{_lambda_.17} parent=31 // pred_check_branch
        %468 = sbr.rel (%p466) target = $region36
      $region35: #{_lambda_.17} parent=31 // pred_region
        _
      $region36: #{_lambda_.17} parent=31 // pred_fallthru
        _
    $region32: #{_lambda_.17} parent=5 // pred_fallthru
      _
    %p469 = scmp.le.s32.totalorder 2, %s9
    // Predicated region
    $region37: #{_lambda_.17} parent=5 // pred_check
      %p470 = pneg %p469
    $region38: #{_lambda_.17} parent=5 // pred_check_branch
      %472 = sbr.rel (%p470) target = $region40
    $region39: #{_lambda_.17} parent=5 // pred_region
      %s473 = ssub.s32 %s9, 2
      // Predicated region
      $region41: #{_lambda_.17} parent=39 // pred_check
        %p474 = pneg %p106
      $region42: #{_lambda_.17} parent=39 // pred_check_branch
        %476 = sbr.rel (%p474) target = $region44
      $region43: #{_lambda_.17} parent=39 // pred_region
        %p477 = scmp.lt.s32.totalorder %s15, 1
        %s478 = scalar_select %p477, %s15, 1
        %s479 = smul.addr %s478, 2
        %s480 = smul.addr %s479, 8
        %s481 = scalar_lea.vmem %s3, %s480
      $region44: #{_lambda_.17} parent=39 // pred_fallthru
        _
    $region40: #{_lambda_.17} parent=5 // pred_fallthru
      _
  $region6: #{_lambda_.17} parent=0 // loop_footer
    %s13 = sadd.s32 1, %s9
  $region7: #{_lambda_.17} parent=0 // loop_footer_branch
    %8 = sbr.rel target = $region3
  $region8: #{_lambda_.17} parent=0 // loop_exit
    _

</llo_original>
